<compile_context>
chip_gen: v6e
topology: v6e:2x2x1
jax: 0.10.0
libtpu: 0.0.40
codegen_flags: <defaults>
</compile_context>

<pallas_src>
import jax
import jax.numpy as jnp
import numpy as np
from jax.experimental import pallas as pl
from jax.experimental.pallas import tpu as pltpu

# ---- configuration (SKConv(in_channels=32, out_channels=32, M=2, r=16, L=32)) ----
IN_C = 32
OUT_C = 32
GROUPS = 32          # hard-coded in the PyTorch module -> depthwise here
M = 2
R = 16
L = 32
D = max(IN_C // R, L)   # = 32
BN_EPS = 1e-5
KSIZE = 3
PADMAX = M              # max padding/dilation over branches (padding = 1 + i)

assert GROUPS == IN_C == OUT_C, "kernel assumes the depthwise case (groups==Cin==Cout)"


# --------------------------- fused Pallas kernel ------------------------------

def _skconv_kernel(x_ref, wconv_ref, bias_ref, w1f_ref, b1_ref, w2t_ref, out_ref):
    """Whole SKConv forward for a block of images, W folded into the lane axis.

    x_ref    : (bblk, Hp, Wp*C)   max-padded input images (pad = PADMAX per side)
    wconv_ref: (M, 9, W*C)        depthwise taps, BN scale folded, tiled along W
    bias_ref : (M, W*C)           folded branch BatchNorm bias, tiled along W
    w1f_ref  : (W*C, D)           fc1 weight with bn1 scale, W-sum pooling and
                                  the 1/(H*W) factor folded in
    b1_ref   : (1, D)             folded fc1 BatchNorm bias
    w2t_ref  : (D, M*W*C)         fc2 weights, branch-stacked and tiled along W
    out_ref  : (bblk, H, W*C)
    """
    bblk, H, WC = out_ref.shape
    C = IN_C

    wconv = wconv_ref[...]          # (M, 9, W*C)
    bias = bias_ref[...]            # (M, W*C)

    # --- M depthwise dilated 3x3 convs + folded BN + ReLU (pure VPU) ---
    ys = []
    for m in range(M):
        dil = 1 + m
        base = PADMAX - dil         # this branch's padding origin in max-pad coords
        acc = None
        for kh in range(KSIZE):
            oh = base + kh * dil
            band = x_ref[:, oh:oh + H, :]                   # (bblk, H, Wp*C), one load
            for kw in range(KSIZE):
                s = (base + kw * dil) * C                   # static lane offset
                patch = band[:, :, s:s + WC]                # lane-shifted window
                term = patch * wconv[m, kh * KSIZE + kw]    # (W*C,) lane broadcast
                acc = term if acc is None else acc + term
        ys.append(jnp.maximum(acc + bias[m], 0.0))          # (bblk, H, W*C)

    # --- U = sum of branches; global average pool (W-sum + 1/(HW) folded into w1f) ---
    U = ys[0]
    for m in range(1, M):
        U = U + ys[m]
    s_hw = jnp.sum(U, axis=1)                               # (bblk, W*C)

    # --- fc1 (+ folded BN + ReLU), fc2 (stacked, W-tiled) on the MXU ---
    z = jnp.maximum(
        jnp.dot(s_hw, w1f_ref[...], preferred_element_type=jnp.float32) + b1_ref[...],
        0.0)                                                # (bblk, D)
    logits = jnp.dot(z, w2t_ref[...], preferred_element_type=jnp.float32)  # (bblk, M*W*C)

    # --- softmax over branches + attention-weighted sum ---
    if M == 2:
        l0 = logits[:, :WC]
        l1 = logits[:, WC:]
        a0 = 1.0 / (1.0 + jnp.exp(l1 - l0))                 # sigmoid; exact divide (tiny)
        out_ref[...] = ys[1] + a0[:, None, :] * (ys[0] - ys[1])
    else:
        ls = [logits[:, m * WC:(m + 1) * WC] for m in range(M)]
        mx = ls[0]
        for m in range(1, M):
            mx = jnp.maximum(mx, ls[m])
        es = [jnp.exp(l - mx) for l in ls]
        den = es[0]
        for m in range(1, M):
            den = den + es[m]
        inv = 1.0 / den
        V = ys[0] * ((es[0] * inv)[:, None, :])
        for m in range(1, M):
            V = V + ys[m] * ((es[m] * inv)[:, None, :])
        out_ref[...] = V


# --------------------------- wrapper (layout glue) ----------------------------

def skconv_pallas(x, params, *, block_b=8):
    """x: (B, Cin, H, W) float32 -> (B, Cout, H, W) float32."""
    B, Cin, H, W = x.shape
    assert Cin == IN_C
    Hp, Wp = H + 2 * PADMAX, W + 2 * PADMAX
    WC = W * OUT_C
    WpC = Wp * IN_C

    # NCHW -> NHWC, pad once with the max padding, fold W into the lane axis
    # (the reshape on contiguous NHWC is free).
    x_nhwc = jnp.transpose(x, (0, 2, 3, 1))
    x_pad = jnp.pad(x_nhwc, ((0, 0), (PADMAX, PADMAX), (PADMAX, PADMAX), (0, 0)))
    x_fold = x_pad.reshape(B, Hp, WpC)

    # Batch block: amortize per-grid-step overhead, capped by a VMEM budget
    # (~4 MiB for the double-buffered input block -> fits v5e/v6e/v7x defaults).
    per_img = Hp * WpC * 4
    bblk = max(1, min(block_b, B, (4 * 1024 * 1024) // (2 * per_img) or 1))
    nb = -(-B // bblk)
    Bpad = nb * bblk
    if Bpad != B:
        x_fold = jnp.pad(x_fold, ((0, Bpad - B), (0, 0), (0, 0)))

    # ---- weight prep (tiny): fold BN scales / pooling / W-tiling into weights ----
    conv_w = params["conv_w"]                       # (M, Cout, 1, 3, 3) depthwise
    bn_scale, bn_bias = params["bn_scale"], params["bn_bias"]   # (M, C)
    taps = conv_w[:, :, 0, :, :].transpose(0, 2, 3, 1).reshape(M, KSIZE * KSIZE, OUT_C)
    taps = taps * bn_scale[:, None, :]              # fold BN scale into the taps
    wconv_t = jnp.broadcast_to(taps[:, :, None, :],
                               (M, KSIZE * KSIZE, W, OUT_C)).reshape(M, KSIZE * KSIZE, WC)
    bias_t = jnp.broadcast_to(bn_bias[:, None, :], (M, W, OUT_C)).reshape(M, WC)

    # fc1: fold bn1 scale, the W-sum of global-average-pooling and 1/(H*W)
    w1t_bn = params["w1"].T * params["bn1_scale"][None, :]           # (C, D)
    w1f = (jnp.broadcast_to(w1t_bn[None, :, :], (W, OUT_C, D))
           .reshape(WC, D) / float(H * W))                           # (W*C, D)
    b1 = params["bn1_bias"][None, :]                                 # (1, D)

    # fc2: stack the M branch weights and tile along W -> logits come out folded
    w2t = params["w2"].T.reshape(D, M, OUT_C)                        # (D, M, C)
    w2t_t = jnp.broadcast_to(w2t[:, :, None, :], (D, M, W, OUT_C)).reshape(D, M * WC)

    out = pl.pallas_call(
        _skconv_kernel,
        out_shape=jax.ShapeDtypeStruct((Bpad, H, WC), jnp.float32),
        grid=(nb,),
        in_specs=[
            pl.BlockSpec((bblk, Hp, WpC), lambda b: (b, 0, 0)),
            pl.BlockSpec((M, KSIZE * KSIZE, WC), lambda b: (0, 0, 0)),
            pl.BlockSpec((M, WC), lambda b: (0, 0)),
            pl.BlockSpec((WC, D), lambda b: (0, 0)),
            pl.BlockSpec((1, D), lambda b: (0, 0)),
            pl.BlockSpec((D, M * WC), lambda b: (0, 0)),
        ],
        out_specs=pl.BlockSpec((bblk, H, WC), lambda b: (b, 0, 0)),
        compiler_params=pltpu.CompilerParams(
            dimension_semantics=("parallel",),      # shard batch blocks over TCs (v7x)
            vmem_limit_bytes=32 * 1024 * 1024),
    )(x_fold, wconv_t, bias_t, w1f, b1, w2t_t)

    out = out[:B].reshape(B, H, W, OUT_C)           # un-fold W (free)
    return jnp.transpose(out, (0, 3, 1, 2))         # NHWC -> NCHW


# --------------------------- parameter setup ---------------------------------

def _fold_bn(gamma, beta, mean, var):
    scale = gamma / jnp.sqrt(var + BN_EPS)
    bias = beta - mean * scale
    return scale, bias


def make_params(key):
    ks = jax.random.split(key, 11)

    # branch grouped (depthwise) conv weights, PyTorch layout (Cout, Cin/groups, 3, 3)
    conv_w = jax.random.normal(ks[0], (M, OUT_C, IN_C // GROUPS, KSIZE, KSIZE),
                               jnp.float32) * 0.1
    bn_gamma = 1.0 + 0.1 * jax.random.normal(ks[1], (M, OUT_C), jnp.float32)
    bn_beta = 0.1 * jax.random.normal(ks[2], (M, OUT_C), jnp.float32)
    bn_mean = 0.1 * jax.random.normal(ks[3], (M, OUT_C), jnp.float32)
    bn_var = 1.0 + 0.1 * jax.random.uniform(ks[4], (M, OUT_C), jnp.float32)

    w1 = jax.random.normal(ks[5], (D, OUT_C), jnp.float32) * 0.1
    bn1_gamma = 1.0 + 0.1 * jax.random.normal(ks[6], (D,), jnp.float32)
    bn1_beta = 0.1 * jax.random.normal(ks[7], (D,), jnp.float32)
    bn1_mean = 0.1 * jax.random.normal(ks[8], (D,), jnp.float32)
    bn1_var = 1.0 + 0.1 * jax.random.uniform(ks[9], (D,), jnp.float32)

    w2 = jax.random.normal(ks[10], (M * OUT_C, D), jnp.float32) * 0.1

    bn_scale, bn_bias = _fold_bn(bn_gamma, bn_beta, bn_mean, bn_var)
    bn1_scale, bn1_bias = _fold_bn(bn1_gamma, bn1_beta, bn1_mean, bn1_var)

    return {
        "conv_w": conv_w,          # (M, Cout, 1, 3, 3)
        "bn_scale": bn_scale,      # (M, Cout)
        "bn_bias": bn_bias,        # (M, Cout)
        "w1": w1,                  # (D, Cout)
        "bn1_scale": bn1_scale,    # (D,)
        "bn1_bias": bn1_bias,      # (D,)
        "w2": w2,                  # (M*Cout, D)
    }


# --------------------------- pure-JAX reference -------------------------------

def skconv_reference(x, params):
    B = x.shape[0]
    outs = []
    for i in range(M):
        dil = 1 + i
        y = jax.lax.conv_general_dilated(
            x, params["conv_w"][i],
            window_strides=(1, 1),
            padding=((dil, dil), (dil, dil)),
            rhs_dilation=(dil, dil),
            dimension_numbers=("NCHW", "OIHW", "NCHW"),
            feature_group_count=GROUPS,
            precision=jax.lax.Precision.HIGHEST)
        y = jnp.maximum(y * params["bn_scale"][i][None, :, None, None]
                        + params["bn_bias"][i][None, :, None, None], 0.0)
        outs.append(y)
    U = outs[0]
    for i in range(1, M):
        U = U + outs[i]
    s = U.mean(axis=(2, 3))                                    # (B, Cout)
    z = s @ params["w1"].T                                     # (B, D)
    z = jnp.maximum(z * params["bn1_scale"] + params["bn1_bias"], 0.0)
    a = z @ params["w2"].T                                     # (B, M*Cout)
    a = jax.nn.softmax(a.reshape(B, M, OUT_C), axis=1)
    V = outs[0] * a[:, 0][:, :, None, None]
    for i in range(1, M):
        V = V + outs[i] * a[:, i][:, :, None, None]
    return V


# --------------------------------- main ---------------------------------------

if __name__ == "__main__":
    key = jax.random.PRNGKey(0)
    kx, kp = jax.random.split(key)
    x = jax.random.normal(kx, (2, IN_C, 16, 16), jnp.float32)
    params = make_params(kp)

    out = jax.jit(skconv_pallas)(x, params)
    out = jax.block_until_ready(out)

    ref = skconv_reference(x, params)
    np.testing.assert_allclose(np.asarray(out), np.asarray(ref),
                               rtol=2e-2, atol=2e-2)
    print("KERNEL_OK")
</pallas_src>

<mosaic_0001>
module attributes {stable_mosaic.version = 11 : i64} {
  func.func @_skconv_kernel(%arg0: i32, %arg1: memref<2x20x640xf32, #tpu.memory_space<vmem>>, %arg2: memref<2x9x512xf32, #tpu.memory_space<vmem>>, %arg3: memref<2x512xf32, #tpu.memory_space<vmem>>, %arg4: memref<512x32xf32, #tpu.memory_space<vmem>>, %arg5: memref<1x32xf32, #tpu.memory_space<vmem>>, %arg6: memref<32x1024xf32, #tpu.memory_space<vmem>>, %arg7: memref<2x16x512xf32, #tpu.memory_space<vmem>>) attributes {dimension_semantics = [#tpu.dimension_semantics<parallel>], iteration_bounds = array<i64: 1>, scalar_prefetch = 0 : i64, scratch_operands = 0 : i64, tpu.core_type = #tpu.core_type<tc>, window_params = [{transform_indices = @transform_0, window_bounds = array<i64: 2, 20, 640>}, {pipeline_mode = #tpu.pipeline_mode<synchronous>, transform_indices = @transform_1, window_bounds = array<i64: 2, 9, 512>}, {pipeline_mode = #tpu.pipeline_mode<synchronous>, transform_indices = @transform_2, window_bounds = array<i64: 2, 512>}, {pipeline_mode = #tpu.pipeline_mode<synchronous>, transform_indices = @transform_3, window_bounds = array<i64: 512, 32>}, {pipeline_mode = #tpu.pipeline_mode<synchronous>, transform_indices = @transform_4, window_bounds = array<i64: 1, 32>}, {pipeline_mode = #tpu.pipeline_mode<synchronous>, transform_indices = @transform_5, window_bounds = array<i64: 32, 1024>}, {transform_indices = @transform_6, window_bounds = array<i64: 2, 16, 512>}]} {
    %c0 = arith.constant 0 : index
    %c0_0 = arith.constant 0 : index
    %c0_1 = arith.constant 0 : index
    %0 = vector.load %arg2[%c0, %c0_0, %c0_1] : memref<2x9x512xf32, #tpu.memory_space<vmem>>, vector<2x9x512xf32>
    %c0_2 = arith.constant 0 : index
    %c0_3 = arith.constant 0 : index
    %1 = vector.load %arg3[%c0_2, %c0_3] : memref<2x512xf32, #tpu.memory_space<vmem>>, vector<2x512xf32>
    %c0_4 = arith.constant 0 : index
    %c1 = arith.constant 1 : index
    %c0_5 = arith.constant 0 : index
    %2 = vector.load %arg1[%c0_4, %c1, %c0_5] : memref<2x20x640xf32, #tpu.memory_space<vmem>>, vector<2x16x640xf32>
    %3 = vector.extract_strided_slice %2 {offsets = [0, 0, 32], sizes = [2, 16, 512], strides = [1, 1, 1]} : vector<2x16x640xf32> to vector<2x16x512xf32>
    %4 = vector.extract_strided_slice %0 {offsets = [0, 0, 0], sizes = [1, 1, 512], strides = [1, 1, 1]} : vector<2x9x512xf32> to vector<1x1x512xf32>
    %5 = vector.shape_cast %4 : vector<1x1x512xf32> to vector<512xf32>
    %6 = vector.shape_cast %5 : vector<512xf32> to vector<1x1x512xf32>
    %7 = vector.broadcast %6 : vector<1x1x512xf32> to vector<2x16x512xf32>
    %8 = arith.mulf %3, %7 : vector<2x16x512xf32>
    %9 = vector.extract_strided_slice %2 {offsets = [0, 0, 64], sizes = [2, 16, 512], strides = [1, 1, 1]} : vector<2x16x640xf32> to vector<2x16x512xf32>
    %10 = vector.extract_strided_slice %0 {offsets = [0, 1, 0], sizes = [1, 1, 512], strides = [1, 1, 1]} : vector<2x9x512xf32> to vector<1x1x512xf32>
    %11 = vector.shape_cast %10 : vector<1x1x512xf32> to vector<512xf32>
    %12 = vector.shape_cast %11 : vector<512xf32> to vector<1x1x512xf32>
    %13 = vector.broadcast %12 : vector<1x1x512xf32> to vector<2x16x512xf32>
    %14 = arith.mulf %9, %13 : vector<2x16x512xf32>
    %15 = arith.addf %8, %14 : vector<2x16x512xf32>
    %16 = vector.extract_strided_slice %2 {offsets = [0, 0, 96], sizes = [2, 16, 512], strides = [1, 1, 1]} : vector<2x16x640xf32> to vector<2x16x512xf32>
    %17 = vector.extract_strided_slice %0 {offsets = [0, 2, 0], sizes = [1, 1, 512], strides = [1, 1, 1]} : vector<2x9x512xf32> to vector<1x1x512xf32>
    %18 = vector.shape_cast %17 : vector<1x1x512xf32> to vector<512xf32>
    %19 = vector.shape_cast %18 : vector<512xf32> to vector<1x1x512xf32>
    %20 = vector.broadcast %19 : vector<1x1x512xf32> to vector<2x16x512xf32>
    %21 = arith.mulf %16, %20 : vector<2x16x512xf32>
    %22 = arith.addf %15, %21 : vector<2x16x512xf32>
    %c0_6 = arith.constant 0 : index
    %c2 = arith.constant 2 : index
    %c0_7 = arith.constant 0 : index
    %23 = vector.load %arg1[%c0_6, %c2, %c0_7] : memref<2x20x640xf32, #tpu.memory_space<vmem>>, vector<2x16x640xf32>
    %24 = vector.extract_strided_slice %23 {offsets = [0, 0, 32], sizes = [2, 16, 512], strides = [1, 1, 1]} : vector<2x16x640xf32> to vector<2x16x512xf32>
    %25 = vector.extract_strided_slice %0 {offsets = [0, 3, 0], sizes = [1, 1, 512], strides = [1, 1, 1]} : vector<2x9x512xf32> to vector<1x1x512xf32>
    %26 = vector.shape_cast %25 : vector<1x1x512xf32> to vector<512xf32>
    %27 = vector.shape_cast %26 : vector<512xf32> to vector<1x1x512xf32>
    %28 = vector.broadcast %27 : vector<1x1x512xf32> to vector<2x16x512xf32>
    %29 = arith.mulf %24, %28 : vector<2x16x512xf32>
    %30 = arith.addf %22, %29 : vector<2x16x512xf32>
    %31 = vector.extract_strided_slice %23 {offsets = [0, 0, 64], sizes = [2, 16, 512], strides = [1, 1, 1]} : vector<2x16x640xf32> to vector<2x16x512xf32>
    %32 = vector.extract_strided_slice %0 {offsets = [0, 4, 0], sizes = [1, 1, 512], strides = [1, 1, 1]} : vector<2x9x512xf32> to vector<1x1x512xf32>
    %33 = vector.shape_cast %32 : vector<1x1x512xf32> to vector<512xf32>
    %34 = vector.shape_cast %33 : vector<512xf32> to vector<1x1x512xf32>
    %35 = vector.broadcast %34 : vector<1x1x512xf32> to vector<2x16x512xf32>
    %36 = arith.mulf %31, %35 : vector<2x16x512xf32>
    %37 = arith.addf %30, %36 : vector<2x16x512xf32>
    %38 = vector.extract_strided_slice %23 {offsets = [0, 0, 96], sizes = [2, 16, 512], strides = [1, 1, 1]} : vector<2x16x640xf32> to vector<2x16x512xf32>
    %39 = vector.extract_strided_slice %0 {offsets = [0, 5, 0], sizes = [1, 1, 512], strides = [1, 1, 1]} : vector<2x9x512xf32> to vector<1x1x512xf32>
    %40 = vector.shape_cast %39 : vector<1x1x512xf32> to vector<512xf32>
    %41 = vector.shape_cast %40 : vector<512xf32> to vector<1x1x512xf32>
    %42 = vector.broadcast %41 : vector<1x1x512xf32> to vector<2x16x512xf32>
    %43 = arith.mulf %38, %42 : vector<2x16x512xf32>
    %44 = arith.addf %37, %43 : vector<2x16x512xf32>
    %c0_8 = arith.constant 0 : index
    %c3 = arith.constant 3 : index
    %c0_9 = arith.constant 0 : index
    %45 = vector.load %arg1[%c0_8, %c3, %c0_9] : memref<2x20x640xf32, #tpu.memory_space<vmem>>, vector<2x16x640xf32>
    %46 = vector.extract_strided_slice %45 {offsets = [0, 0, 32], sizes = [2, 16, 512], strides = [1, 1, 1]} : vector<2x16x640xf32> to vector<2x16x512xf32>
    %47 = vector.extract_strided_slice %0 {offsets = [0, 6, 0], sizes = [1, 1, 512], strides = [1, 1, 1]} : vector<2x9x512xf32> to vector<1x1x512xf32>
    %48 = vector.shape_cast %47 : vector<1x1x512xf32> to vector<512xf32>
    %49 = vector.shape_cast %48 : vector<512xf32> to vector<1x1x512xf32>
    %50 = vector.broadcast %49 : vector<1x1x512xf32> to vector<2x16x512xf32>
    %51 = arith.mulf %46, %50 : vector<2x16x512xf32>
    %52 = arith.addf %44, %51 : vector<2x16x512xf32>
    %53 = vector.extract_strided_slice %45 {offsets = [0, 0, 64], sizes = [2, 16, 512], strides = [1, 1, 1]} : vector<2x16x640xf32> to vector<2x16x512xf32>
    %54 = vector.extract_strided_slice %0 {offsets = [0, 7, 0], sizes = [1, 1, 512], strides = [1, 1, 1]} : vector<2x9x512xf32> to vector<1x1x512xf32>
    %55 = vector.shape_cast %54 : vector<1x1x512xf32> to vector<512xf32>
    %56 = vector.shape_cast %55 : vector<512xf32> to vector<1x1x512xf32>
    %57 = vector.broadcast %56 : vector<1x1x512xf32> to vector<2x16x512xf32>
    %58 = arith.mulf %53, %57 : vector<2x16x512xf32>
    %59 = arith.addf %52, %58 : vector<2x16x512xf32>
    %60 = vector.extract_strided_slice %45 {offsets = [0, 0, 96], sizes = [2, 16, 512], strides = [1, 1, 1]} : vector<2x16x640xf32> to vector<2x16x512xf32>
    %61 = vector.extract_strided_slice %0 {offsets = [0, 8, 0], sizes = [1, 1, 512], strides = [1, 1, 1]} : vector<2x9x512xf32> to vector<1x1x512xf32>
    %62 = vector.shape_cast %61 : vector<1x1x512xf32> to vector<512xf32>
    %63 = vector.shape_cast %62 : vector<512xf32> to vector<1x1x512xf32>
    %64 = vector.broadcast %63 : vector<1x1x512xf32> to vector<2x16x512xf32>
    %65 = arith.mulf %60, %64 : vector<2x16x512xf32>
    %66 = arith.addf %59, %65 : vector<2x16x512xf32>
    %67 = vector.extract_strided_slice %1 {offsets = [0, 0], sizes = [1, 512], strides = [1, 1]} : vector<2x512xf32> to vector<1x512xf32>
    %68 = vector.shape_cast %67 : vector<1x512xf32> to vector<512xf32>
    %69 = vector.shape_cast %68 : vector<512xf32> to vector<1x1x512xf32>
    %70 = vector.broadcast %69 : vector<1x1x512xf32> to vector<2x16x512xf32>
    %71 = arith.addf %66, %70 : vector<2x16x512xf32>
    %cst = arith.constant 0.000000e+00 : f32
    %72 = vector.broadcast %cst : f32 to vector<2x16x512xf32>
    %73 = arith.maximumf %71, %72 : vector<2x16x512xf32>
    %c0_10 = arith.constant 0 : index
    %c0_11 = arith.constant 0 : index
    %c0_12 = arith.constant 0 : index
    %74 = vector.load %arg1[%c0_10, %c0_11, %c0_12] : memref<2x20x640xf32, #tpu.memory_space<vmem>>, vector<2x16x640xf32>
    %75 = vector.extract_strided_slice %74 {offsets = [0, 0, 0], sizes = [2, 16, 512], strides = [1, 1, 1]} : vector<2x16x640xf32> to vector<2x16x512xf32>
    %76 = vector.extract_strided_slice %0 {offsets = [1, 0, 0], sizes = [1, 1, 512], strides = [1, 1, 1]} : vector<2x9x512xf32> to vector<1x1x512xf32>
    %77 = vector.shape_cast %76 : vector<1x1x512xf32> to vector<512xf32>
    %78 = vector.shape_cast %77 : vector<512xf32> to vector<1x1x512xf32>
    %79 = vector.broadcast %78 : vector<1x1x512xf32> to vector<2x16x512xf32>
    %80 = arith.mulf %75, %79 : vector<2x16x512xf32>
    %81 = vector.extract_strided_slice %74 {offsets = [0, 0, 64], sizes = [2, 16, 512], strides = [1, 1, 1]} : vector<2x16x640xf32> to vector<2x16x512xf32>
    %82 = vector.extract_strided_slice %0 {offsets = [1, 1, 0], sizes = [1, 1, 512], strides = [1, 1, 1]} : vector<2x9x512xf32> to vector<1x1x512xf32>
    %83 = vector.shape_cast %82 : vector<1x1x512xf32> to vector<512xf32>
    %84 = vector.shape_cast %83 : vector<512xf32> to vector<1x1x512xf32>
    %85 = vector.broadcast %84 : vector<1x1x512xf32> to vector<2x16x512xf32>
    %86 = arith.mulf %81, %85 : vector<2x16x512xf32>
    %87 = arith.addf %80, %86 : vector<2x16x512xf32>
    %88 = vector.extract_strided_slice %74 {offsets = [0, 0, 128], sizes = [2, 16, 512], strides = [1, 1, 1]} : vector<2x16x640xf32> to vector<2x16x512xf32>
    %89 = vector.extract_strided_slice %0 {offsets = [1, 2, 0], sizes = [1, 1, 512], strides = [1, 1, 1]} : vector<2x9x512xf32> to vector<1x1x512xf32>
    %90 = vector.shape_cast %89 : vector<1x1x512xf32> to vector<512xf32>
    %91 = vector.shape_cast %90 : vector<512xf32> to vector<1x1x512xf32>
    %92 = vector.broadcast %91 : vector<1x1x512xf32> to vector<2x16x512xf32>
    %93 = arith.mulf %88, %92 : vector<2x16x512xf32>
    %94 = arith.addf %87, %93 : vector<2x16x512xf32>
    %c0_13 = arith.constant 0 : index
    %c2_14 = arith.constant 2 : index
    %c0_15 = arith.constant 0 : index
    %95 = vector.load %arg1[%c0_13, %c2_14, %c0_15] : memref<2x20x640xf32, #tpu.memory_space<vmem>>, vector<2x16x640xf32>
    %96 = vector.extract_strided_slice %95 {offsets = [0, 0, 0], sizes = [2, 16, 512], strides = [1, 1, 1]} : vector<2x16x640xf32> to vector<2x16x512xf32>
    %97 = vector.extract_strided_slice %0 {offsets = [1, 3, 0], sizes = [1, 1, 512], strides = [1, 1, 1]} : vector<2x9x512xf32> to vector<1x1x512xf32>
    %98 = vector.shape_cast %97 : vector<1x1x512xf32> to vector<512xf32>
    %99 = vector.shape_cast %98 : vector<512xf32> to vector<1x1x512xf32>
    %100 = vector.broadcast %99 : vector<1x1x512xf32> to vector<2x16x512xf32>
    %101 = arith.mulf %96, %100 : vector<2x16x512xf32>
    %102 = arith.addf %94, %101 : vector<2x16x512xf32>
    %103 = vector.extract_strided_slice %95 {offsets = [0, 0, 64], sizes = [2, 16, 512], strides = [1, 1, 1]} : vector<2x16x640xf32> to vector<2x16x512xf32>
    %104 = vector.extract_strided_slice %0 {offsets = [1, 4, 0], sizes = [1, 1, 512], strides = [1, 1, 1]} : vector<2x9x512xf32> to vector<1x1x512xf32>
    %105 = vector.shape_cast %104 : vector<1x1x512xf32> to vector<512xf32>
    %106 = vector.shape_cast %105 : vector<512xf32> to vector<1x1x512xf32>
    %107 = vector.broadcast %106 : vector<1x1x512xf32> to vector<2x16x512xf32>
    %108 = arith.mulf %103, %107 : vector<2x16x512xf32>
    %109 = arith.addf %102, %108 : vector<2x16x512xf32>
    %110 = vector.extract_strided_slice %95 {offsets = [0, 0, 128], sizes = [2, 16, 512], strides = [1, 1, 1]} : vector<2x16x640xf32> to vector<2x16x512xf32>
    %111 = vector.extract_strided_slice %0 {offsets = [1, 5, 0], sizes = [1, 1, 512], strides = [1, 1, 1]} : vector<2x9x512xf32> to vector<1x1x512xf32>
    %112 = vector.shape_cast %111 : vector<1x1x512xf32> to vector<512xf32>
    %113 = vector.shape_cast %112 : vector<512xf32> to vector<1x1x512xf32>
    %114 = vector.broadcast %113 : vector<1x1x512xf32> to vector<2x16x512xf32>
    %115 = arith.mulf %110, %114 : vector<2x16x512xf32>
    %116 = arith.addf %109, %115 : vector<2x16x512xf32>
    %c0_16 = arith.constant 0 : index
    %c4 = arith.constant 4 : index
    %c0_17 = arith.constant 0 : index
    %117 = vector.load %arg1[%c0_16, %c4, %c0_17] : memref<2x20x640xf32, #tpu.memory_space<vmem>>, vector<2x16x640xf32>
    %118 = vector.extract_strided_slice %117 {offsets = [0, 0, 0], sizes = [2, 16, 512], strides = [1, 1, 1]} : vector<2x16x640xf32> to vector<2x16x512xf32>
    %119 = vector.extract_strided_slice %0 {offsets = [1, 6, 0], sizes = [1, 1, 512], strides = [1, 1, 1]} : vector<2x9x512xf32> to vector<1x1x512xf32>
    %120 = vector.shape_cast %119 : vector<1x1x512xf32> to vector<512xf32>
    %121 = vector.shape_cast %120 : vector<512xf32> to vector<1x1x512xf32>
    %122 = vector.broadcast %121 : vector<1x1x512xf32> to vector<2x16x512xf32>
    %123 = arith.mulf %118, %122 : vector<2x16x512xf32>
    %124 = arith.addf %116, %123 : vector<2x16x512xf32>
    %125 = vector.extract_strided_slice %117 {offsets = [0, 0, 64], sizes = [2, 16, 512], strides = [1, 1, 1]} : vector<2x16x640xf32> to vector<2x16x512xf32>
    %126 = vector.extract_strided_slice %0 {offsets = [1, 7, 0], sizes = [1, 1, 512], strides = [1, 1, 1]} : vector<2x9x512xf32> to vector<1x1x512xf32>
    %127 = vector.shape_cast %126 : vector<1x1x512xf32> to vector<512xf32>
    %128 = vector.shape_cast %127 : vector<512xf32> to vector<1x1x512xf32>
    %129 = vector.broadcast %128 : vector<1x1x512xf32> to vector<2x16x512xf32>
    %130 = arith.mulf %125, %129 : vector<2x16x512xf32>
    %131 = arith.addf %124, %130 : vector<2x16x512xf32>
    %132 = vector.extract_strided_slice %117 {offsets = [0, 0, 128], sizes = [2, 16, 512], strides = [1, 1, 1]} : vector<2x16x640xf32> to vector<2x16x512xf32>
    %133 = vector.extract_strided_slice %0 {offsets = [1, 8, 0], sizes = [1, 1, 512], strides = [1, 1, 1]} : vector<2x9x512xf32> to vector<1x1x512xf32>
    %134 = vector.shape_cast %133 : vector<1x1x512xf32> to vector<512xf32>
    %135 = vector.shape_cast %134 : vector<512xf32> to vector<1x1x512xf32>
    %136 = vector.broadcast %135 : vector<1x1x512xf32> to vector<2x16x512xf32>
    %137 = arith.mulf %132, %136 : vector<2x16x512xf32>
    %138 = arith.addf %131, %137 : vector<2x16x512xf32>
    %139 = vector.extract_strided_slice %1 {offsets = [1, 0], sizes = [1, 512], strides = [1, 1]} : vector<2x512xf32> to vector<1x512xf32>
    %140 = vector.shape_cast %139 : vector<1x512xf32> to vector<512xf32>
    %141 = vector.shape_cast %140 : vector<512xf32> to vector<1x1x512xf32>
    %142 = vector.broadcast %141 : vector<1x1x512xf32> to vector<2x16x512xf32>
    %143 = arith.addf %138, %142 : vector<2x16x512xf32>
    %cst_18 = arith.constant 0.000000e+00 : f32
    %144 = vector.broadcast %cst_18 : f32 to vector<2x16x512xf32>
    %145 = arith.maximumf %143, %144 : vector<2x16x512xf32>
    %146 = arith.addf %73, %145 : vector<2x16x512xf32>
    %cst_19 = arith.constant dense<0.000000e+00> : vector<2x512xf32>
    %147 = vector.multi_reduction <add>, %146, %cst_19 [1] : vector<2x16x512xf32> to vector<2x512xf32>
    %c0_20 = arith.constant 0 : index
    %c0_21 = arith.constant 0 : index
    %148 = vector.load %arg4[%c0_20, %c0_21] : memref<512x32xf32, #tpu.memory_space<vmem>>, vector<512x32xf32>
    %cst_22 = arith.constant dense<0.000000e+00> : vector<2x32xf32>
    %149 = tpu.matmul %147, %148, %cst_22 {dimension_numbers = #tpu.dot_dimension_numbers<[1], [0], [0], [1], [0, 0, 1, 1], [], []>} : vector<2x512xf32>, vector<512x32xf32>, vector<2x32xf32> -> vector<2x32xf32>
    %c0_23 = arith.constant 0 : index
    %c0_24 = arith.constant 0 : index
    %150 = vector.load %arg5[%c0_23, %c0_24] : memref<1x32xf32, #tpu.memory_space<vmem>>, vector<1x32xf32>
    %151 = vector.broadcast %150 : vector<1x32xf32> to vector<2x32xf32>
    %152 = arith.addf %149, %151 : vector<2x32xf32>
    %cst_25 = arith.constant 0.000000e+00 : f32
    %153 = vector.broadcast %cst_25 : f32 to vector<2x32xf32>
    %154 = arith.maximumf %152, %153 : vector<2x32xf32>
    %c0_26 = arith.constant 0 : index
    %c0_27 = arith.constant 0 : index
    %155 = vector.load %arg6[%c0_26, %c0_27] : memref<32x1024xf32, #tpu.memory_space<vmem>>, vector<32x1024xf32>
    %cst_28 = arith.constant dense<0.000000e+00> : vector<2x1024xf32>
    %156 = tpu.matmul %154, %155, %cst_28 {dimension_numbers = #tpu.dot_dimension_numbers<[1], [0], [0], [1], [0, 0, 1, 1], [], []>} : vector<2x32xf32>, vector<32x1024xf32>, vector<2x1024xf32> -> vector<2x1024xf32>
    %157 = vector.extract_strided_slice %156 {offsets = [0, 0], sizes = [2, 512], strides = [1, 1]} : vector<2x1024xf32> to vector<2x512xf32>
    %158 = vector.extract_strided_slice %156 {offsets = [0, 512], sizes = [2, 512], strides = [1, 1]} : vector<2x1024xf32> to vector<2x512xf32>
    %159 = arith.subf %158, %157 : vector<2x512xf32>
    %160 = math.exp %159 : vector<2x512xf32>
    %cst_29 = arith.constant 1.000000e+00 : f32
    %161 = vector.broadcast %cst_29 : f32 to vector<2x512xf32>
    %162 = arith.addf %161, %160 : vector<2x512xf32>
    %cst_30 = arith.constant 1.000000e+00 : f32
    %163 = vector.broadcast %cst_30 : f32 to vector<2x512xf32>
    %164 = arith.divf %163, %162 : vector<2x512xf32>
    %165 = vector.shape_cast %164 : vector<2x512xf32> to vector<2x1x512xf32>
    %166 = arith.subf %73, %145 : vector<2x16x512xf32>
    %167 = vector.broadcast %165 : vector<2x1x512xf32> to vector<2x16x512xf32>
    %168 = arith.mulf %167, %166 : vector<2x16x512xf32>
    %169 = arith.addf %145, %168 : vector<2x16x512xf32>
    %c0_31 = arith.constant 0 : index
    %c0_32 = arith.constant 0 : index
    %c0_33 = arith.constant 0 : index
    %170 = vector.load %arg7[%c0_31, %c0_32, %c0_33] : memref<2x16x512xf32, #tpu.memory_space<vmem>>, vector<2x16x512xf32>
    tpu.vector_store %arg7[%c0_31, %c0_32, %c0_33], %169 {strides = array<i32>} : memref<2x16x512xf32, #tpu.memory_space<vmem>>, vector<2x16x512xf32>,
    return
  }
  func.func @transform_0(%arg0: i32) -> (i32, i32, i32) {
    %c0_i32 = arith.constant 0 : i32
    %c0_i32_0 = arith.constant 0 : i32
    %c0_i32_1 = arith.constant 0 : i32
    return %arg0, %c0_i32, %c0_i32_0 : i32, i32, i32
  }
  func.func @transform_1(%arg0: i32) -> (i32, i32, i32) {
    %c0_i32 = arith.constant 0 : i32
    %c0_i32_0 = arith.constant 0 : i32
    %c0_i32_1 = arith.constant 0 : i32
    %c0_i32_2 = arith.constant 0 : i32
    return %c0_i32, %c0_i32_0, %c0_i32_1 : i32, i32, i32
  }
  func.func @transform_2(%arg0: i32) -> (i32, i32) {
    %c0_i32 = arith.constant 0 : i32
    %c0_i32_0 = arith.constant 0 : i32
    %c0_i32_1 = arith.constant 0 : i32
    return %c0_i32, %c0_i32_0 : i32, i32
  }
  func.func @transform_3(%arg0: i32) -> (i32, i32) {
    %c0_i32 = arith.constant 0 : i32
    %c0_i32_0 = arith.constant 0 : i32
    %c0_i32_1 = arith.constant 0 : i32
    return %c0_i32, %c0_i32_0 : i32, i32
  }
  func.func @transform_4(%arg0: i32) -> (i32, i32) {
    %c0_i32 = arith.constant 0 : i32
    %c0_i32_0 = arith.constant 0 : i32
    %c0_i32_1 = arith.constant 0 : i32
    return %c0_i32, %c0_i32_0 : i32, i32
  }
  func.func @transform_5(%arg0: i32) -> (i32, i32) {
    %c0_i32 = arith.constant 0 : i32
    %c0_i32_0 = arith.constant 0 : i32
    %c0_i32_1 = arith.constant 0 : i32
    return %c0_i32, %c0_i32_0 : i32, i32
  }
  func.func @transform_6(%arg0: i32) -> (i32, i32, i32) {
    %c0_i32 = arith.constant 0 : i32
    %c0_i32_0 = arith.constant 0 : i32
    %c0_i32_1 = arith.constant 0 : i32
    return %arg0, %c0_i32, %c0_i32_0 : i32, i32, i32
  }
}

</mosaic_0001>

<llo_original>
// kernel: skconv_pallas.1
$region0: #{skconv_pallas.1}
  #allocation0 [shape = 'u32[]', space=smem, size = 0x4, offset = 0x4, fixed_abs, tag = 'smem constant byte address 0x4 - core index']
  #allocation1 [shape = 'u32[144,128]{1,0:T(1,128)}', space=vmem, size = 0x12000, scoped, tag = 'internal scratch']
  %s0 = inlined_call_operand.vmem [shape: f32[2,20,640], index: 0, kind: input, shape index: {}]
  %s1 = inlined_call_operand.vmem [shape: f32[2,9,512], index: 1, kind: input, shape index: {}]
  %s2 = inlined_call_operand.vmem [shape: f32[2,512], index: 2, kind: input, shape index: {}]
  %s3 = inlined_call_operand.vmem [shape: f32[512,32], index: 3, kind: input, shape index: {}]
  %s4 = inlined_call_operand.vmem [shape: f32[1,32], index: 4, kind: input, shape index: {}]
  %s5 = inlined_call_operand.vmem [shape: f32[32,1024], index: 5, kind: input, shape index: {}]
  %s6 = inlined_call_operand.vmem [shape: f32[2,16,512], index: 6, kind: output, shape index: {}]
  %s7 = sld [smem:[#allocation0]]
  $region34: #{skconv_pallas.1} parent=0
    _
  %s9 = ssub.s32 1, %s7
  %s10 = scalar_select 0, %s9, %s7
  // Predicated region
  $region2: #{skconv_pallas.1} parent=0 // pred_check
    _
  $region3: #{skconv_pallas.1} parent=0 // pred_check_branch
    %12 = sbr.rel (0) target = $region5
  $region4: #{skconv_pallas.1} parent=0 // pred_region
    _
  $region5: #{skconv_pallas.1} parent=0 // pred_fallthru
    _
  // Predicated region
  $region6: #{skconv_pallas.1} parent=0 // pred_check
    _
  $region7: #{skconv_pallas.1} parent=0 // pred_check_branch
    %14 = sbr.rel (0) target = $region9
  $region8: #{skconv_pallas.1} parent=0 // pred_region
    _
  $region9: #{skconv_pallas.1} parent=0 // pred_fallthru
    _
  // Predicated region
  $region10: #{skconv_pallas.1} parent=0 // pred_check
    _
  $region11: #{skconv_pallas.1} parent=0 // pred_check_branch
    %16 = sbr.rel (0) target = $region13
  $region12: #{skconv_pallas.1} parent=0 // pred_region
    _
  $region13: #{skconv_pallas.1} parent=0 // pred_fallthru
    _
  // Predicated region
  $region14: #{skconv_pallas.1} parent=0 // pred_check
    _
  $region15: #{skconv_pallas.1} parent=0 // pred_check_branch
    %18 = sbr.rel (0) target = $region17
  $region16: #{skconv_pallas.1} parent=0 // pred_region
    _
  $region17: #{skconv_pallas.1} parent=0 // pred_fallthru
    _
  // Predicated region
  $region18: #{skconv_pallas.1} parent=0 // pred_check
    _
  $region19: #{skconv_pallas.1} parent=0 // pred_check_branch
    %20 = sbr.rel (0) target = $region21
  $region20: #{skconv_pallas.1} parent=0 // pred_region
    _
  $region21: #{skconv_pallas.1} parent=0 // pred_fallthru
    _
  // Predicated region
  $region22: #{skconv_pallas.1} parent=0 // pred_check
    _
  $region23: #{skconv_pallas.1} parent=0 // pred_check_branch
    %22 = sbr.rel (0) target = $region25
  $region24: #{skconv_pallas.1} parent=0 // pred_region
    _
  $region25: #{skconv_pallas.1} parent=0 // pred_fallthru
    _
  %v23 = vld [vmem:[%s1] sm:$0xff]
  %v24 = vld [vmem:[%s1 + $0x8] sm:$0xff]
  %v25 = vld [vmem:[%s1 + $0x10] sm:$0xff]
  %v26 = vld [vmem:[%s1 + $0x18] sm:$0xff]
  %v27 = vld [vmem:[%s1 + $0x20] sm:$0x1]
  %v28 = vld [vmem:[%s1 + $0x28] sm:$0x1]
  %v29 = vld [vmem:[%s1 + $0x30] sm:$0x1]
  %v30 = vld [vmem:[%s1 + $0x38] sm:$0x1]
  %v31 = vld [vmem:[%s1 + $0x40] sm:$0xff]
  %v32 = vld [vmem:[%s1 + $0x48] sm:$0xff]
  %v33 = vld [vmem:[%s1 + $0x50] sm:$0xff]
  %v34 = vld [vmem:[%s1 + $0x58] sm:$0xff]
  %v35 = vld [vmem:[%s1 + $0x60] sm:$0x1]
  %v36 = vld [vmem:[%s1 + $0x68] sm:$0x1]
  %v37 = vld [vmem:[%s1 + $0x70] sm:$0x1]
  %v38 = vld [vmem:[%s1 + $0x78] sm:$0x1]
  %v39 = vld [vmem:[%s2] sm:$0xff]
  %v40 = vld [vmem:[%s0] sm:$0xfe]
  %v41 = vld [vmem:[%s0 + $0x8] sm:$0xfe]
  %v42 = vld [vmem:[%s0 + $0x10] sm:$0xfe]
  %v43 = vld [vmem:[%s0 + $0x18] sm:$0xfe]
  %v44 = vld [vmem:[%s0 + $0x20] sm:$0xfe]
  %v45 = vld [vmem:[%s0 + $0x28] sm:$0xff]
  %v46 = vld [vmem:[%s0 + $0x30] sm:$0xff]
  %v47 = vld [vmem:[%s0 + $0x38] sm:$0xff]
  %v48 = vld [vmem:[%s0 + $0x40] sm:$0xff]
  %v49 = vld [vmem:[%s0 + $0x48] sm:$0xff]
  %v50 = vld [vmem:[%s0 + $0x50] sm:$0x1]
  %v51 = vld [vmem:[%s0 + $0x58] sm:$0x1]
  %v52 = vld [vmem:[%s0 + $0x60] sm:$0x1]
  %v53 = vld [vmem:[%s0 + $0x68] sm:$0x1]
  %v54 = vld [vmem:[%s0 + $0x70] sm:$0x1]
  %v55 = vld [vmem:[%s0 + $0x78] sm:$0xfe]
  %v56 = vld [vmem:[%s0 + $0x80] sm:$0xfe]
  %v57 = vld [vmem:[%s0 + $0x88] sm:$0xfe]
  %v58 = vld [vmem:[%s0 + $0x90] sm:$0xfe]
  %v59 = vld [vmem:[%s0 + $0x98] sm:$0xfe]
  %v60 = vld [vmem:[%s0 + $0xa0] sm:$0xff]
  %v61 = vld [vmem:[%s0 + $0xa8] sm:$0xff]
  %v62 = vld [vmem:[%s0 + $0xb0] sm:$0xff]
  %v63 = vld [vmem:[%s0 + $0xb8] sm:$0xff]
  %v64 = vld [vmem:[%s0 + $0xc0] sm:$0xff]
  %v65 = vld [vmem:[%s0 + $0xc8] sm:$0x1]
  %v66 = vld [vmem:[%s0 + $0xd0] sm:$0x1]
  %v67 = vld [vmem:[%s0 + $0xd8] sm:$0x1]
  %v68 = vld [vmem:[%s0 + $0xe0] sm:$0x1]
  %v69 = vld [vmem:[%s0 + $0xe8] sm:$0x1]
  %v70 = vlaneseq
  %v71 = vshrl.u32 %v70, 7
  %v72 = vsub.s32 0, %v71
  %v73 = vrot.slane %v23, %v72
  %v74 = vlaneseq
  %v75 = vshrl.u32 %v74, 7
  %v76 = vsub.s32 0, %v75
  %v77 = vrot.slane %v24, %v76
  %v78 = vlaneseq
  %v79 = vshrl.u32 %v78, 7
  %v80 = vsub.s32 0, %v79
  %v81 = vrot.slane %v25, %v80
  %v82 = vlaneseq
  %v83 = vshrl.u32 %v82, 7
  %v84 = vsub.s32 0, %v83
  %v85 = vrot.slane %v26, %v84
  %90 = vrot.lane.b32.xlu0 %v73, 32
  %v91 = vpop.permute.xlu0 %90
  %92 = vrot.lane.b32.xlu0 %v77, 32
  %v93 = vpop.permute.xlu0 %92
  %94 = vrot.lane.b32.xlu0 %v81, 32
  %v95 = vpop.permute.xlu0 %94
  %96 = vrot.lane.b32.xlu0 %v85, 32
  %v97 = vpop.permute.xlu0 %96
  %vm98 = vcmask 261120
  %v99 = vsel %vm98, %v91, %v93
  %v100 = vsel %vm98, %v93, %v95
  %v101 = vsel %vm98, %v95, %v97
  %v107 = vmul.f32 %v40, %v91
  %v108 = vmul.f32 %v41, %v99
  %v109 = vmul.f32 %v42, %v100
  %v110 = vmul.f32 %v43, %v101
  %v111 = vmul.f32 %v44, %v97
  %v112 = vmul.f32 %v45, %v91
  %v113 = vmul.f32 %v46, %v99
  %v114 = vmul.f32 %v47, %v100
  %v115 = vmul.f32 %v48, %v101
  %v116 = vmul.f32 %v49, %v97
  %v117 = vmul.f32 %v50, %v91
  %v118 = vmul.f32 %v51, %v99
  %v119 = vmul.f32 %v52, %v100
  %v120 = vmul.f32 %v53, %v101
  %v121 = vmul.f32 %v54, %v97
  %v122 = vmul.f32 %v55, %v91
  %v123 = vmul.f32 %v56, %v99
  %v124 = vmul.f32 %v57, %v100
  %v125 = vmul.f32 %v58, %v101
  %v126 = vmul.f32 %v59, %v97
  %v127 = vmul.f32 %v60, %v91
  %v128 = vmul.f32 %v61, %v99
  %v129 = vmul.f32 %v62, %v100
  %v130 = vmul.f32 %v63, %v101
  %v131 = vmul.f32 %v64, %v97
  %v132 = vmul.f32 %v65, %v91
  %v133 = vmul.f32 %v66, %v99
  %v134 = vmul.f32 %v67, %v100
  %v135 = vmul.f32 %v68, %v101
  %v136 = vmul.f32 %v69, %v97
  %v137 = vlaneseq
  %v138 = vshrl.u32 %v137, 7
  %v139 = vsub.s32 1, %v138
  %v140 = vrot.slane %v23, %v139
  %v141 = vlaneseq
  %v142 = vshrl.u32 %v141, 7
  %v143 = vsub.s32 1, %v142
  %v144 = vrot.slane %v24, %v143
  %v145 = vlaneseq
  %v146 = vshrl.u32 %v145, 7
  %v147 = vsub.s32 1, %v146
  %v148 = vrot.slane %v25, %v147
  %v149 = vlaneseq
  %v150 = vshrl.u32 %v149, 7
  %v151 = vsub.s32 1, %v150
  %v152 = vrot.slane %v26, %v151
  %157 = vrot.lane.b32.xlu0 %v140, 64
  %v158 = vpop.permute.xlu0 %157
  %159 = vrot.lane.b32.xlu0 %v144, 64
  %v160 = vpop.permute.xlu0 %159
  %161 = vrot.lane.b32.xlu0 %v148, 64
  %v162 = vpop.permute.xlu0 %161
  %163 = vrot.lane.b32.xlu0 %v152, 64
  %v164 = vpop.permute.xlu0 %163
  %vm165 = vcmask 523264
  %v166 = vsel %vm165, %v158, %v160
  %v167 = vsel %vm165, %v160, %v162
  %v168 = vsel %vm165, %v162, %v164
  %v174 = vmul.f32 %v40, %v158
  %v175 = vmul.f32 %v41, %v166
  %v176 = vmul.f32 %v42, %v167
  %v177 = vmul.f32 %v43, %v168
  %v178 = vmul.f32 %v44, %v164
  %v179 = vmul.f32 %v45, %v158
  %v180 = vmul.f32 %v46, %v166
  %v181 = vmul.f32 %v47, %v167
  %v182 = vmul.f32 %v48, %v168
  %v183 = vmul.f32 %v49, %v164
  %v184 = vmul.f32 %v50, %v158
  %v185 = vmul.f32 %v51, %v166
  %v186 = vmul.f32 %v52, %v167
  %v187 = vmul.f32 %v53, %v168
  %v188 = vmul.f32 %v54, %v164
  %v189 = vmul.f32 %v55, %v158
  %v190 = vmul.f32 %v56, %v166
  %v191 = vmul.f32 %v57, %v167
  %v192 = vmul.f32 %v58, %v168
  %v193 = vmul.f32 %v59, %v164
  %v194 = vmul.f32 %v60, %v158
  %v195 = vmul.f32 %v61, %v166
  %v196 = vmul.f32 %v62, %v167
  %v197 = vmul.f32 %v63, %v168
  %v198 = vmul.f32 %v64, %v164
  %v199 = vmul.f32 %v65, %v158
  %v200 = vmul.f32 %v66, %v166
  %v201 = vmul.f32 %v67, %v167
  %v202 = vmul.f32 %v68, %v168
  %v203 = vmul.f32 %v69, %v164
  %234 = vrot.lane.b32.xlu0 %v174, 96
  %v235 = vpop.permute.xlu0 %234
  %236 = vrot.lane.b32.xlu0 %v175, 96
  %v237 = vpop.permute.xlu0 %236
  %238 = vrot.lane.b32.xlu0 %v176, 96
  %v239 = vpop.permute.xlu0 %238
  %240 = vrot.lane.b32.xlu0 %v177, 96
  %v241 = vpop.permute.xlu0 %240
  %242 = vrot.lane.b32.xlu0 %v178, 96
  %v243 = vpop.permute.xlu0 %242
  %244 = vrot.lane.b32.xlu0 %v179, 96
  %v245 = vpop.permute.xlu0 %244
  %246 = vrot.lane.b32.xlu0 %v180, 96
  %v247 = vpop.permute.xlu0 %246
  %248 = vrot.lane.b32.xlu0 %v181, 96
  %v249 = vpop.permute.xlu0 %248
  %250 = vrot.lane.b32.xlu0 %v182, 96
  %v251 = vpop.permute.xlu0 %250
  %252 = vrot.lane.b32.xlu0 %v183, 96
  %v253 = vpop.permute.xlu0 %252
  %254 = vrot.lane.b32.xlu0 %v184, 96
  %v255 = vpop.permute.xlu0 %254
  %256 = vrot.lane.b32.xlu0 %v185, 96
  %v257 = vpop.permute.xlu0 %256
  %258 = vrot.lane.b32.xlu0 %v186, 96
  %v259 = vpop.permute.xlu0 %258
  %260 = vrot.lane.b32.xlu0 %v187, 96
  %v261 = vpop.permute.xlu0 %260
  %262 = vrot.lane.b32.xlu0 %v188, 96
  %v263 = vpop.permute.xlu0 %262
  %264 = vrot.lane.b32.xlu0 %v189, 96
  %v265 = vpop.permute.xlu0 %264
  %266 = vrot.lane.b32.xlu0 %v190, 96
  %v267 = vpop.permute.xlu0 %266
  %268 = vrot.lane.b32.xlu0 %v191, 96
  %v269 = vpop.permute.xlu0 %268
  %270 = vrot.lane.b32.xlu0 %v192, 96
  %v271 = vpop.permute.xlu0 %270
  %272 = vrot.lane.b32.xlu0 %v193, 96
  %v273 = vpop.permute.xlu0 %272
  %274 = vrot.lane.b32.xlu0 %v194, 96
  %v275 = vpop.permute.xlu0 %274
  %276 = vrot.lane.b32.xlu0 %v195, 96
  %v277 = vpop.permute.xlu0 %276
  %278 = vrot.lane.b32.xlu0 %v196, 96
  %v279 = vpop.permute.xlu0 %278
  %280 = vrot.lane.b32.xlu0 %v197, 96
  %v281 = vpop.permute.xlu0 %280
  %282 = vrot.lane.b32.xlu0 %v198, 96
  %v283 = vpop.permute.xlu0 %282
  %284 = vrot.lane.b32.xlu0 %v199, 96
  %v285 = vpop.permute.xlu0 %284
  %286 = vrot.lane.b32.xlu0 %v200, 96
  %v287 = vpop.permute.xlu0 %286
  %288 = vrot.lane.b32.xlu0 %v201, 96
  %v289 = vpop.permute.xlu0 %288
  %290 = vrot.lane.b32.xlu0 %v202, 96
  %v291 = vpop.permute.xlu0 %290
  %292 = vrot.lane.b32.xlu0 %v203, 96
  %v293 = vpop.permute.xlu0 %292
  %vm294 = vcmask 785408
  %v295 = vsel %vm294, %v235, %v237
  %v296 = vsel %vm294, %v237, %v239
  %v297 = vsel %vm294, %v239, %v241
  %v298 = vsel %vm294, %v241, %v243
  %v299 = vsel %vm294, %v245, %v247
  %v300 = vsel %vm294, %v247, %v249
  %v301 = vsel %vm294, %v249, %v251
  %v302 = vsel %vm294, %v251, %v253
  %v303 = vsel %vm294, %v255, %v257
  %v304 = vsel %vm294, %v257, %v259
  %v305 = vsel %vm294, %v259, %v261
  %v306 = vsel %vm294, %v261, %v263
  %v307 = vsel %vm294, %v265, %v267
  %v308 = vsel %vm294, %v267, %v269
  %v309 = vsel %vm294, %v269, %v271
  %v310 = vsel %vm294, %v271, %v273
  %v311 = vsel %vm294, %v275, %v277
  %v312 = vsel %vm294, %v277, %v279
  %v313 = vsel %vm294, %v279, %v281
  %v314 = vsel %vm294, %v281, %v283
  %v315 = vsel %vm294, %v285, %v287
  %v316 = vsel %vm294, %v287, %v289
  %v317 = vsel %vm294, %v289, %v291
  %v318 = vsel %vm294, %v291, %v293
  %v349 = vadd.f32 %v107, %v295
  %v350 = vadd.f32 %v108, %v296
  %v351 = vadd.f32 %v109, %v297
  %v352 = vadd.f32 %v110, %v298
  %v353 = vadd.f32 %v111, %v243
  %v354 = vadd.f32 %v112, %v299
  %v355 = vadd.f32 %v113, %v300
  %v356 = vadd.f32 %v114, %v301
  %v357 = vadd.f32 %v115, %v302
  %v358 = vadd.f32 %v116, %v253
  %v359 = vadd.f32 %v117, %v303
  %v360 = vadd.f32 %v118, %v304
  %v361 = vadd.f32 %v119, %v305
  %v362 = vadd.f32 %v120, %v306
  %v363 = vadd.f32 %v121, %v263
  %v364 = vadd.f32 %v122, %v307
  %v365 = vadd.f32 %v123, %v308
  %v366 = vadd.f32 %v124, %v309
  %v367 = vadd.f32 %v125, %v310
  %v368 = vadd.f32 %v126, %v273
  %v369 = vadd.f32 %v127, %v311
  %v370 = vadd.f32 %v128, %v312
  %v371 = vadd.f32 %v129, %v313
  %v372 = vadd.f32 %v130, %v314
  %v373 = vadd.f32 %v131, %v283
  %v374 = vadd.f32 %v132, %v315
  %v375 = vadd.f32 %v133, %v316
  %v376 = vadd.f32 %v134, %v317
  %v377 = vadd.f32 %v135, %v318
  %v378 = vadd.f32 %v136, %v293
  %v379 = vlaneseq
  %v380 = vshrl.u32 %v379, 7
  %v381 = vsub.s32 2, %v380
  %v382 = vrot.slane %v23, %v381
  %v383 = vlaneseq
  %v384 = vshrl.u32 %v383, 7
  %v385 = vsub.s32 2, %v384
  %v386 = vrot.slane %v24, %v385
  %v387 = vlaneseq
  %v388 = vshrl.u32 %v387, 7
  %v389 = vsub.s32 2, %v388
  %v390 = vrot.slane %v25, %v389
  %v391 = vlaneseq
  %v392 = vshrl.u32 %v391, 7
  %v393 = vsub.s32 2, %v392
  %v394 = vrot.slane %v26, %v393
  %399 = vrot.lane.b32.xlu0 %v382, 96
  %v400 = vpop.permute.xlu0 %399
  %401 = vrot.lane.b32.xlu0 %v386, 96
  %v402 = vpop.permute.xlu0 %401
  %403 = vrot.lane.b32.xlu0 %v390, 96
  %v404 = vpop.permute.xlu0 %403
  %405 = vrot.lane.b32.xlu0 %v394, 96
  %v406 = vpop.permute.xlu0 %405
  %v407 = vsel %vm294, %v400, %v402
  %v408 = vsel %vm294, %v402, %v404
  %v409 = vsel %vm294, %v404, %v406
  %v415 = vmul.f32 %v40, %v400
  %v416 = vmul.f32 %v41, %v407
  %v417 = vmul.f32 %v42, %v408
  %v418 = vmul.f32 %v43, %v409
  %v419 = vmul.f32 %v44, %v406
  %v420 = vmul.f32 %v45, %v400
  %v421 = vmul.f32 %v46, %v407
  %v422 = vmul.f32 %v47, %v408
  %v423 = vmul.f32 %v48, %v409
  %v424 = vmul.f32 %v49, %v406
  %v425 = vmul.f32 %v50, %v400
  %v426 = vmul.f32 %v51, %v407
  %v427 = vmul.f32 %v52, %v408
  %v428 = vmul.f32 %v53, %v409
  %v429 = vmul.f32 %v54, %v406
  %v430 = vmul.f32 %v55, %v400
  %v431 = vmul.f32 %v56, %v407
  %v432 = vmul.f32 %v57, %v408
  %v433 = vmul.f32 %v58, %v409
  %v434 = vmul.f32 %v59, %v406
  %v435 = vmul.f32 %v60, %v400
  %v436 = vmul.f32 %v61, %v407
  %v437 = vmul.f32 %v62, %v408
  %v438 = vmul.f32 %v63, %v409
  %v439 = vmul.f32 %v64, %v406
  %v440 = vmul.f32 %v65, %v400
  %v441 = vmul.f32 %v66, %v407
  %v442 = vmul.f32 %v67, %v408
  %v443 = vmul.f32 %v68, %v409
  %v444 = vmul.f32 %v69, %v406
  %475 = vrot.lane.b32.xlu0 %v415, 64
  %v476 = vpop.permute.xlu0 %475
  %477 = vrot.lane.b32.xlu0 %v416, 64
  %v478 = vpop.permute.xlu0 %477
  %479 = vrot.lane.b32.xlu0 %v417, 64
  %v480 = vpop.permute.xlu0 %479
  %481 = vrot.lane.b32.xlu0 %v418, 64
  %v482 = vpop.permute.xlu0 %481
  %483 = vrot.lane.b32.xlu0 %v419, 64
  %v484 = vpop.permute.xlu0 %483
  %485 = vrot.lane.b32.xlu0 %v420, 64
  %v486 = vpop.permute.xlu0 %485
  %487 = vrot.lane.b32.xlu0 %v421, 64
  %v488 = vpop.permute.xlu0 %487
  %489 = vrot.lane.b32.xlu0 %v422, 64
  %v490 = vpop.permute.xlu0 %489
  %491 = vrot.lane.b32.xlu0 %v423, 64
  %v492 = vpop.permute.xlu0 %491
  %493 = vrot.lane.b32.xlu0 %v424, 64
  %v494 = vpop.permute.xlu0 %493
  %495 = vrot.lane.b32.xlu0 %v425, 64
  %v496 = vpop.permute.xlu0 %495
  %497 = vrot.lane.b32.xlu0 %v426, 64
  %v498 = vpop.permute.xlu0 %497
  %499 = vrot.lane.b32.xlu0 %v427, 64
  %v500 = vpop.permute.xlu0 %499
  %501 = vrot.lane.b32.xlu0 %v428, 64
  %v502 = vpop.permute.xlu0 %501
  %503 = vrot.lane.b32.xlu0 %v429, 64
  %v504 = vpop.permute.xlu0 %503
  %505 = vrot.lane.b32.xlu0 %v430, 64
  %v506 = vpop.permute.xlu0 %505
  %507 = vrot.lane.b32.xlu0 %v431, 64
  %v508 = vpop.permute.xlu0 %507
  %509 = vrot.lane.b32.xlu0 %v432, 64
  %v510 = vpop.permute.xlu0 %509
  %511 = vrot.lane.b32.xlu0 %v433, 64
  %v512 = vpop.permute.xlu0 %511
  %513 = vrot.lane.b32.xlu0 %v434, 64
  %v514 = vpop.permute.xlu0 %513
  %515 = vrot.lane.b32.xlu0 %v435, 64
  %v516 = vpop.permute.xlu0 %515
  %517 = vrot.lane.b32.xlu0 %v436, 64
  %v518 = vpop.permute.xlu0 %517
  %519 = vrot.lane.b32.xlu0 %v437, 64
  %v520 = vpop.permute.xlu0 %519
  %521 = vrot.lane.b32.xlu0 %v438, 64
  %v522 = vpop.permute.xlu0 %521
  %523 = vrot.lane.b32.xlu0 %v439, 64
  %v524 = vpop.permute.xlu0 %523
  %525 = vrot.lane.b32.xlu0 %v440, 64
  %v526 = vpop.permute.xlu0 %525
  %527 = vrot.lane.b32.xlu0 %v441, 64
  %v528 = vpop.permute.xlu0 %527
  %529 = vrot.lane.b32.xlu0 %v442, 64
  %v530 = vpop.permute.xlu0 %529
  %531 = vrot.lane.b32.xlu0 %v443, 64
  %v532 = vpop.permute.xlu0 %531
  %533 = vrot.lane.b32.xlu0 %v444, 64
  %v534 = vpop.permute.xlu0 %533
  %v535 = vsel %vm165, %v476, %v478
  %v536 = vsel %vm165, %v478, %v480
  %v537 = vsel %vm165, %v480, %v482
  %v538 = vsel %vm165, %v482, %v484
  %v539 = vsel %vm165, %v486, %v488
  %v540 = vsel %vm165, %v488, %v490
  %v541 = vsel %vm165, %v490, %v492
  %v542 = vsel %vm165, %v492, %v494
  %v543 = vsel %vm165, %v496, %v498
  %v544 = vsel %vm165, %v498, %v500
  %v545 = vsel %vm165, %v500, %v502
  %v546 = vsel %vm165, %v502, %v504
  %v547 = vsel %vm165, %v506, %v508
  %v548 = vsel %vm165, %v508, %v510
  %v549 = vsel %vm165, %v510, %v512
  %v550 = vsel %vm165, %v512, %v514
  %v551 = vsel %vm165, %v516, %v518
  %v552 = vsel %vm165, %v518, %v520
  %v553 = vsel %vm165, %v520, %v522
  %v554 = vsel %vm165, %v522, %v524
  %v555 = vsel %vm165, %v526, %v528
  %v556 = vsel %vm165, %v528, %v530
  %v557 = vsel %vm165, %v530, %v532
  %v558 = vsel %vm165, %v532, %v534
  %v589 = vadd.f32 %v349, %v535
  %v590 = vadd.f32 %v350, %v536
  %v591 = vadd.f32 %v351, %v537
  %v592 = vadd.f32 %v352, %v538
  %v593 = vadd.f32 %v353, %v484
  %v594 = vadd.f32 %v354, %v539
  %v595 = vadd.f32 %v355, %v540
  %v596 = vadd.f32 %v356, %v541
  %v597 = vadd.f32 %v357, %v542
  %v598 = vadd.f32 %v358, %v494
  %v599 = vadd.f32 %v359, %v543
  %v600 = vadd.f32 %v360, %v544
  %v601 = vadd.f32 %v361, %v545
  %v602 = vadd.f32 %v362, %v546
  %v603 = vadd.f32 %v363, %v504
  %v604 = vadd.f32 %v364, %v547
  %v605 = vadd.f32 %v365, %v548
  %v606 = vadd.f32 %v366, %v549
  %v607 = vadd.f32 %v367, %v550
  %v608 = vadd.f32 %v368, %v514
  %v609 = vadd.f32 %v369, %v551
  %v610 = vadd.f32 %v370, %v552
  %v611 = vadd.f32 %v371, %v553
  %v612 = vadd.f32 %v372, %v554
  %v613 = vadd.f32 %v373, %v524
  %v614 = vadd.f32 %v374, %v555
  %v615 = vadd.f32 %v375, %v556
  %v616 = vadd.f32 %v376, %v557
  %v617 = vadd.f32 %v377, %v558
  %v618 = vadd.f32 %v378, %v534
  %v619 = vld [vmem:[%s0] sm:$0xfc]
  %v620 = vld [vmem:[%s0 + $0x8] sm:$0xfc]
  %v621 = vld [vmem:[%s0 + $0x10] sm:$0xfc]
  %v622 = vld [vmem:[%s0 + $0x18] sm:$0xfc]
  %v623 = vld [vmem:[%s0 + $0x20] sm:$0xfc]
  %v624 = vld [vmem:[%s0 + $0x50] sm:$0x3]
  %v625 = vld [vmem:[%s0 + $0x58] sm:$0x3]
  %v626 = vld [vmem:[%s0 + $0x60] sm:$0x3]
  %v627 = vld [vmem:[%s0 + $0x68] sm:$0x3]
  %v628 = vld [vmem:[%s0 + $0x70] sm:$0x3]
  %v629 = vld [vmem:[%s0 + $0x78] sm:$0xfc]
  %v630 = vld [vmem:[%s0 + $0x80] sm:$0xfc]
  %v631 = vld [vmem:[%s0 + $0x88] sm:$0xfc]
  %v632 = vld [vmem:[%s0 + $0x90] sm:$0xfc]
  %v633 = vld [vmem:[%s0 + $0x98] sm:$0xfc]
  %v634 = vld [vmem:[%s0 + $0xc8] sm:$0x3]
  %v635 = vld [vmem:[%s0 + $0xd0] sm:$0x3]
  %v636 = vld [vmem:[%s0 + $0xd8] sm:$0x3]
  %v637 = vld [vmem:[%s0 + $0xe0] sm:$0x3]
  %v638 = vld [vmem:[%s0 + $0xe8] sm:$0x3]
  %v639 = vlaneseq
  %v640 = vshrl.u32 %v639, 7
  %v641 = vsub.s32 3, %v640
  %v642 = vrot.slane %v23, %v641
  %v643 = vlaneseq
  %v644 = vshrl.u32 %v643, 7
  %v645 = vsub.s32 3, %v644
  %v646 = vrot.slane %v24, %v645
  %v647 = vlaneseq
  %v648 = vshrl.u32 %v647, 7
  %v649 = vsub.s32 3, %v648
  %v650 = vrot.slane %v25, %v649
  %v651 = vlaneseq
  %v652 = vshrl.u32 %v651, 7
  %v653 = vsub.s32 3, %v652
  %v654 = vrot.slane %v26, %v653
  %659 = vrot.lane.b32.xlu0 %v642, 32
  %v660 = vpop.permute.xlu0 %659
  %661 = vrot.lane.b32.xlu0 %v646, 32
  %v662 = vpop.permute.xlu0 %661
  %663 = vrot.lane.b32.xlu0 %v650, 32
  %v664 = vpop.permute.xlu0 %663
  %665 = vrot.lane.b32.xlu0 %v654, 32
  %v666 = vpop.permute.xlu0 %665
  %v667 = vsel %vm98, %v660, %v662
  %v668 = vsel %vm98, %v662, %v664
  %v669 = vsel %vm98, %v664, %v666
  %v675 = vmul.f32 %v619, %v660
  %v676 = vmul.f32 %v620, %v667
  %v677 = vmul.f32 %v621, %v668
  %v678 = vmul.f32 %v622, %v669
  %v679 = vmul.f32 %v623, %v666
  %v680 = vmul.f32 %v45, %v660
  %v681 = vmul.f32 %v46, %v667
  %v682 = vmul.f32 %v47, %v668
  %v683 = vmul.f32 %v48, %v669
  %v684 = vmul.f32 %v49, %v666
  %v685 = vmul.f32 %v624, %v660
  %v686 = vmul.f32 %v625, %v667
  %v687 = vmul.f32 %v626, %v668
  %v688 = vmul.f32 %v627, %v669
  %v689 = vmul.f32 %v628, %v666
  %v690 = vmul.f32 %v629, %v660
  %v691 = vmul.f32 %v630, %v667
  %v692 = vmul.f32 %v631, %v668
  %v693 = vmul.f32 %v632, %v669
  %v694 = vmul.f32 %v633, %v666
  %v695 = vmul.f32 %v60, %v660
  %v696 = vmul.f32 %v61, %v667
  %v697 = vmul.f32 %v62, %v668
  %v698 = vmul.f32 %v63, %v669
  %v699 = vmul.f32 %v64, %v666
  %v700 = vmul.f32 %v634, %v660
  %v701 = vmul.f32 %v635, %v667
  %v702 = vmul.f32 %v636, %v668
  %v703 = vmul.f32 %v637, %v669
  %v704 = vmul.f32 %v638, %v666
  %vm735 = vcmask 1046528
  %v736 = vrot.slane %v675, 1
  %v737 = vrot.slane %v680, 1
  %v738 = vsel %vm735, %v736, %v737
  %v739 = vrot.slane %v676, 1
  %v740 = vrot.slane %v681, 1
  %v741 = vsel %vm735, %v739, %v740
  %v742 = vrot.slane %v677, 1
  %v743 = vrot.slane %v682, 1
  %v744 = vsel %vm735, %v742, %v743
  %v745 = vrot.slane %v678, 1
  %v746 = vrot.slane %v683, 1
  %v747 = vsel %vm735, %v745, %v746
  %v748 = vrot.slane %v679, 1
  %v749 = vrot.slane %v684, 1
  %v750 = vsel %vm735, %v748, %v749
  %v751 = vrot.slane %v685, 1
  %v752 = vsel %vm735, %v737, %v751
  %v753 = vrot.slane %v686, 1
  %v754 = vsel %vm735, %v740, %v753
  %v755 = vrot.slane %v687, 1
  %v756 = vsel %vm735, %v743, %v755
  %v757 = vrot.slane %v688, 1
  %v758 = vsel %vm735, %v746, %v757
  %v759 = vrot.slane %v689, 1
  %v760 = vsel %vm735, %v749, %v759
  %v761 = vrot.slane %v690, 1
  %v762 = vrot.slane %v695, 1
  %v763 = vsel %vm735, %v761, %v762
  %v764 = vrot.slane %v691, 1
  %v765 = vrot.slane %v696, 1
  %v766 = vsel %vm735, %v764, %v765
  %v767 = vrot.slane %v692, 1
  %v768 = vrot.slane %v697, 1
  %v769 = vsel %vm735, %v767, %v768
  %v770 = vrot.slane %v693, 1
  %v771 = vrot.slane %v698, 1
  %v772 = vsel %vm735, %v770, %v771
  %v773 = vrot.slane %v694, 1
  %v774 = vrot.slane %v699, 1
  %v775 = vsel %vm735, %v773, %v774
  %v776 = vrot.slane %v700, 1
  %v777 = vsel %vm735, %v762, %v776
  %v778 = vrot.slane %v701, 1
  %v779 = vsel %vm735, %v765, %v778
  %v780 = vrot.slane %v702, 1
  %v781 = vsel %vm735, %v768, %v780
  %v782 = vrot.slane %v703, 1
  %v783 = vsel %vm735, %v771, %v782
  %v784 = vrot.slane %v704, 1
  %v785 = vsel %vm735, %v774, %v784
  %v816 = vadd.f32 %v589, %v738
  %v817 = vadd.f32 %v590, %v741
  %v818 = vadd.f32 %v591, %v744
  %v819 = vadd.f32 %v592, %v747
  %v820 = vadd.f32 %v593, %v750
  %v821 = vadd.f32 %v594, %v752
  %v822 = vadd.f32 %v595, %v754
  %v823 = vadd.f32 %v596, %v756
  %v824 = vadd.f32 %v597, %v758
  %v825 = vadd.f32 %v598, %v760
  %v826 = vadd.f32 %v599, %v751
  %v827 = vadd.f32 %v600, %v753
  %v828 = vadd.f32 %v601, %v755
  %v829 = vadd.f32 %v602, %v757
  %v830 = vadd.f32 %v603, %v759
  %v831 = vadd.f32 %v604, %v763
  %v832 = vadd.f32 %v605, %v766
  %v833 = vadd.f32 %v606, %v769
  %v834 = vadd.f32 %v607, %v772
  %v835 = vadd.f32 %v608, %v775
  %v836 = vadd.f32 %v609, %v777
  %v837 = vadd.f32 %v610, %v779
  %v838 = vadd.f32 %v611, %v781
  %v839 = vadd.f32 %v612, %v783
  %v840 = vadd.f32 %v613, %v785
  %v841 = vadd.f32 %v614, %v776
  %v842 = vadd.f32 %v615, %v778
  %v843 = vadd.f32 %v616, %v780
  %v844 = vadd.f32 %v617, %v782
  %v845 = vadd.f32 %v618, %v784
  %v846 = vlaneseq
  %v847 = vshrl.u32 %v846, 7
  %v848 = vsub.s32 4, %v847
  %v849 = vrot.slane %v23, %v848
  %v850 = vlaneseq
  %v851 = vshrl.u32 %v850, 7
  %v852 = vsub.s32 4, %v851
  %v853 = vrot.slane %v24, %v852
  %v854 = vlaneseq
  %v855 = vshrl.u32 %v854, 7
  %v856 = vsub.s32 4, %v855
  %v857 = vrot.slane %v25, %v856
  %v858 = vlaneseq
  %v859 = vshrl.u32 %v858, 7
  %v860 = vsub.s32 4, %v859
  %v861 = vrot.slane %v26, %v860
  %866 = vrot.lane.b32.xlu0 %v849, 64
  %v867 = vpop.permute.xlu0 %866
  %868 = vrot.lane.b32.xlu0 %v853, 64
  %v869 = vpop.permute.xlu0 %868
  %870 = vrot.lane.b32.xlu0 %v857, 64
  %v871 = vpop.permute.xlu0 %870
  %872 = vrot.lane.b32.xlu0 %v861, 64
  %v873 = vpop.permute.xlu0 %872
  %v874 = vsel %vm165, %v867, %v869
  %v875 = vsel %vm165, %v869, %v871
  %v876 = vsel %vm165, %v871, %v873
  %v882 = vmul.f32 %v619, %v867
  %v883 = vmul.f32 %v620, %v874
  %v884 = vmul.f32 %v621, %v875
  %v885 = vmul.f32 %v622, %v876
  %v886 = vmul.f32 %v623, %v873
  %v887 = vmul.f32 %v45, %v867
  %v888 = vmul.f32 %v46, %v874
  %v889 = vmul.f32 %v47, %v875
  %v890 = vmul.f32 %v48, %v876
  %v891 = vmul.f32 %v49, %v873
  %v892 = vmul.f32 %v624, %v867
  %v893 = vmul.f32 %v625, %v874
  %v894 = vmul.f32 %v626, %v875
  %v895 = vmul.f32 %v627, %v876
  %v896 = vmul.f32 %v628, %v873
  %v897 = vmul.f32 %v629, %v867
  %v898 = vmul.f32 %v630, %v874
  %v899 = vmul.f32 %v631, %v875
  %v900 = vmul.f32 %v632, %v876
  %v901 = vmul.f32 %v633, %v873
  %v902 = vmul.f32 %v60, %v867
  %v903 = vmul.f32 %v61, %v874
  %v904 = vmul.f32 %v62, %v875
  %v905 = vmul.f32 %v63, %v876
  %v906 = vmul.f32 %v64, %v873
  %v907 = vmul.f32 %v634, %v867
  %v908 = vmul.f32 %v635, %v874
  %v909 = vmul.f32 %v636, %v875
  %v910 = vmul.f32 %v637, %v876
  %v911 = vmul.f32 %v638, %v873
  %v942 = vrot.slane %v882, 1
  %v943 = vrot.slane %v887, 1
  %v944 = vsel %vm735, %v942, %v943
  %v945 = vrot.slane %v883, 1
  %v946 = vrot.slane %v888, 1
  %v947 = vsel %vm735, %v945, %v946
  %v948 = vrot.slane %v884, 1
  %v949 = vrot.slane %v889, 1
  %v950 = vsel %vm735, %v948, %v949
  %v951 = vrot.slane %v885, 1
  %v952 = vrot.slane %v890, 1
  %v953 = vsel %vm735, %v951, %v952
  %v954 = vrot.slane %v886, 1
  %v955 = vrot.slane %v891, 1
  %v956 = vsel %vm735, %v954, %v955
  %v957 = vrot.slane %v892, 1
  %v958 = vsel %vm735, %v943, %v957
  %v959 = vrot.slane %v893, 1
  %v960 = vsel %vm735, %v946, %v959
  %v961 = vrot.slane %v894, 1
  %v962 = vsel %vm735, %v949, %v961
  %v963 = vrot.slane %v895, 1
  %v964 = vsel %vm735, %v952, %v963
  %v965 = vrot.slane %v896, 1
  %v966 = vsel %vm735, %v955, %v965
  %v967 = vrot.slane %v897, 1
  %v968 = vrot.slane %v902, 1
  %v969 = vsel %vm735, %v967, %v968
  %v970 = vrot.slane %v898, 1
  %v971 = vrot.slane %v903, 1
  %v972 = vsel %vm735, %v970, %v971
  %v973 = vrot.slane %v899, 1
  %v974 = vrot.slane %v904, 1
  %v975 = vsel %vm735, %v973, %v974
  %v976 = vrot.slane %v900, 1
  %v977 = vrot.slane %v905, 1
  %v978 = vsel %vm735, %v976, %v977
  %v979 = vrot.slane %v901, 1
  %v980 = vrot.slane %v906, 1
  %v981 = vsel %vm735, %v979, %v980
  %v982 = vrot.slane %v907, 1
  %v983 = vsel %vm735, %v968, %v982
  %v984 = vrot.slane %v908, 1
  %v985 = vsel %vm735, %v971, %v984
  %v986 = vrot.slane %v909, 1
  %v987 = vsel %vm735, %v974, %v986
  %v988 = vrot.slane %v910, 1
  %v989 = vsel %vm735, %v977, %v988
  %v990 = vrot.slane %v911, 1
  %v991 = vsel %vm735, %v980, %v990
  %992 = vrot.lane.b32.xlu0 %v944, 96
  %v993 = vpop.permute.xlu0 %992
  %994 = vrot.lane.b32.xlu0 %v947, 96
  %v995 = vpop.permute.xlu0 %994
  %996 = vrot.lane.b32.xlu0 %v950, 96
  %v997 = vpop.permute.xlu0 %996
  %998 = vrot.lane.b32.xlu0 %v953, 96
  %v999 = vpop.permute.xlu0 %998
  %1000 = vrot.lane.b32.xlu0 %v956, 96
  %v1001 = vpop.permute.xlu0 %1000
  %1002 = vrot.lane.b32.xlu0 %v958, 96
  %v1003 = vpop.permute.xlu0 %1002
  %1004 = vrot.lane.b32.xlu0 %v960, 96
  %v1005 = vpop.permute.xlu0 %1004
  %1006 = vrot.lane.b32.xlu0 %v962, 96
  %v1007 = vpop.permute.xlu0 %1006
  %1008 = vrot.lane.b32.xlu0 %v964, 96
  %v1009 = vpop.permute.xlu0 %1008
  %1010 = vrot.lane.b32.xlu0 %v966, 96
  %v1011 = vpop.permute.xlu0 %1010
  %1012 = vrot.lane.b32.xlu0 %v957, 96
  %v1013 = vpop.permute.xlu0 %1012
  %1014 = vrot.lane.b32.xlu0 %v959, 96
  %v1015 = vpop.permute.xlu0 %1014
  %1016 = vrot.lane.b32.xlu0 %v961, 96
  %v1017 = vpop.permute.xlu0 %1016
  %1018 = vrot.lane.b32.xlu0 %v963, 96
  %v1019 = vpop.permute.xlu0 %1018
  %1020 = vrot.lane.b32.xlu0 %v965, 96
  %v1021 = vpop.permute.xlu0 %1020
  %1022 = vrot.lane.b32.xlu0 %v969, 96
  %v1023 = vpop.permute.xlu0 %1022
  %1024 = vrot.lane.b32.xlu0 %v972, 96
  %v1025 = vpop.permute.xlu0 %1024
  %1026 = vrot.lane.b32.xlu0 %v975, 96
  %v1027 = vpop.permute.xlu0 %1026
  %1028 = vrot.lane.b32.xlu0 %v978, 96
  %v1029 = vpop.permute.xlu0 %1028
  %1030 = vrot.lane.b32.xlu0 %v981, 96
  %v1031 = vpop.permute.xlu0 %1030
  %1032 = vrot.lane.b32.xlu0 %v983, 96
  %v1033 = vpop.permute.xlu0 %1032
  %1034 = vrot.lane.b32.xlu0 %v985, 96
  %v1035 = vpop.permute.xlu0 %1034
  %1036 = vrot.lane.b32.xlu0 %v987, 96
  %v1037 = vpop.permute.xlu0 %1036
  %1038 = vrot.lane.b32.xlu0 %v989, 96
  %v1039 = vpop.permute.xlu0 %1038
  %1040 = vrot.lane.b32.xlu0 %v991, 96
  %v1041 = vpop.permute.xlu0 %1040
  %1042 = vrot.lane.b32.xlu0 %v982, 96
  %v1043 = vpop.permute.xlu0 %1042
  %1044 = vrot.lane.b32.xlu0 %v984, 96
  %v1045 = vpop.permute.xlu0 %1044
  %1046 = vrot.lane.b32.xlu0 %v986, 96
  %v1047 = vpop.permute.xlu0 %1046
  %1048 = vrot.lane.b32.xlu0 %v988, 96
  %v1049 = vpop.permute.xlu0 %1048
  %1050 = vrot.lane.b32.xlu0 %v990, 96
  %v1051 = vpop.permute.xlu0 %1050
  %v1052 = vsel %vm294, %v993, %v995
  %v1053 = vsel %vm294, %v995, %v997
  %v1054 = vsel %vm294, %v997, %v999
  %v1055 = vsel %vm294, %v999, %v1001
  %v1056 = vsel %vm294, %v1003, %v1005
  %v1057 = vsel %vm294, %v1005, %v1007
  %v1058 = vsel %vm294, %v1007, %v1009
  %v1059 = vsel %vm294, %v1009, %v1011
  %v1060 = vsel %vm294, %v1013, %v1015
  %v1061 = vsel %vm294, %v1015, %v1017
  %v1062 = vsel %vm294, %v1017, %v1019
  %v1063 = vsel %vm294, %v1019, %v1021
  %v1064 = vsel %vm294, %v1023, %v1025
  %v1065 = vsel %vm294, %v1025, %v1027
  %v1066 = vsel %vm294, %v1027, %v1029
  %v1067 = vsel %vm294, %v1029, %v1031
  %v1068 = vsel %vm294, %v1033, %v1035
  %v1069 = vsel %vm294, %v1035, %v1037
  %v1070 = vsel %vm294, %v1037, %v1039
  %v1071 = vsel %vm294, %v1039, %v1041
  %v1072 = vsel %vm294, %v1043, %v1045
  %v1073 = vsel %vm294, %v1045, %v1047
  %v1074 = vsel %vm294, %v1047, %v1049
  %v1075 = vsel %vm294, %v1049, %v1051
  %v1106 = vadd.f32 %v816, %v1052
  %v1107 = vadd.f32 %v817, %v1053
  %v1108 = vadd.f32 %v818, %v1054
  %v1109 = vadd.f32 %v819, %v1055
  %v1110 = vadd.f32 %v820, %v1001
  %v1111 = vadd.f32 %v821, %v1056
  %v1112 = vadd.f32 %v822, %v1057
  %v1113 = vadd.f32 %v823, %v1058
  %v1114 = vadd.f32 %v824, %v1059
  %v1115 = vadd.f32 %v825, %v1011
  %v1116 = vadd.f32 %v826, %v1060
  %v1117 = vadd.f32 %v827, %v1061
  %v1118 = vadd.f32 %v828, %v1062
  %v1119 = vadd.f32 %v829, %v1063
  %v1120 = vadd.f32 %v830, %v1021
  %v1121 = vadd.f32 %v831, %v1064
  %v1122 = vadd.f32 %v832, %v1065
  %v1123 = vadd.f32 %v833, %v1066
  %v1124 = vadd.f32 %v834, %v1067
  %v1125 = vadd.f32 %v835, %v1031
  %v1126 = vadd.f32 %v836, %v1068
  %v1127 = vadd.f32 %v837, %v1069
  %v1128 = vadd.f32 %v838, %v1070
  %v1129 = vadd.f32 %v839, %v1071
  %v1130 = vadd.f32 %v840, %v1041
  %v1131 = vadd.f32 %v841, %v1072
  %v1132 = vadd.f32 %v842, %v1073
  %v1133 = vadd.f32 %v843, %v1074
  %v1134 = vadd.f32 %v844, %v1075
  %v1135 = vadd.f32 %v845, %v1051
  %v1136 = vlaneseq
  %v1137 = vshrl.u32 %v1136, 7
  %v1138 = vsub.s32 5, %v1137
  %v1139 = vrot.slane %v23, %v1138
  %v1140 = vlaneseq
  %v1141 = vshrl.u32 %v1140, 7
  %v1142 = vsub.s32 5, %v1141
  %v1143 = vrot.slane %v24, %v1142
  %v1144 = vlaneseq
  %v1145 = vshrl.u32 %v1144, 7
  %v1146 = vsub.s32 5, %v1145
  %v1147 = vrot.slane %v25, %v1146
  %v1148 = vlaneseq
  %v1149 = vshrl.u32 %v1148, 7
  %v1150 = vsub.s32 5, %v1149
  %v1151 = vrot.slane %v26, %v1150
  %1156 = vrot.lane.b32.xlu0 %v1139, 96
  %v1157 = vpop.permute.xlu0 %1156
  %1158 = vrot.lane.b32.xlu0 %v1143, 96
  %v1159 = vpop.permute.xlu0 %1158
  %1160 = vrot.lane.b32.xlu0 %v1147, 96
  %v1161 = vpop.permute.xlu0 %1160
  %1162 = vrot.lane.b32.xlu0 %v1151, 96
  %v1163 = vpop.permute.xlu0 %1162
  %v1164 = vsel %vm294, %v1157, %v1159
  %v1165 = vsel %vm294, %v1159, %v1161
  %v1166 = vsel %vm294, %v1161, %v1163
  %v1172 = vmul.f32 %v619, %v1157
  %v1173 = vmul.f32 %v620, %v1164
  %v1174 = vmul.f32 %v621, %v1165
  %v1175 = vmul.f32 %v622, %v1166
  %v1176 = vmul.f32 %v623, %v1163
  %v1177 = vmul.f32 %v45, %v1157
  %v1178 = vmul.f32 %v46, %v1164
  %v1179 = vmul.f32 %v47, %v1165
  %v1180 = vmul.f32 %v48, %v1166
  %v1181 = vmul.f32 %v49, %v1163
  %v1182 = vmul.f32 %v624, %v1157
  %v1183 = vmul.f32 %v625, %v1164
  %v1184 = vmul.f32 %v626, %v1165
  %v1185 = vmul.f32 %v627, %v1166
  %v1186 = vmul.f32 %v628, %v1163
  %v1187 = vmul.f32 %v629, %v1157
  %v1188 = vmul.f32 %v630, %v1164
  %v1189 = vmul.f32 %v631, %v1165
  %v1190 = vmul.f32 %v632, %v1166
  %v1191 = vmul.f32 %v633, %v1163
  %v1192 = vmul.f32 %v60, %v1157
  %v1193 = vmul.f32 %v61, %v1164
  %v1194 = vmul.f32 %v62, %v1165
  %v1195 = vmul.f32 %v63, %v1166
  %v1196 = vmul.f32 %v64, %v1163
  %v1197 = vmul.f32 %v634, %v1157
  %v1198 = vmul.f32 %v635, %v1164
  %v1199 = vmul.f32 %v636, %v1165
  %v1200 = vmul.f32 %v637, %v1166
  %v1201 = vmul.f32 %v638, %v1163
  %v1232 = vrot.slane %v1172, 1
  %v1233 = vrot.slane %v1177, 1
  %v1234 = vsel %vm735, %v1232, %v1233
  %v1235 = vrot.slane %v1173, 1
  %v1236 = vrot.slane %v1178, 1
  %v1237 = vsel %vm735, %v1235, %v1236
  %v1238 = vrot.slane %v1174, 1
  %v1239 = vrot.slane %v1179, 1
  %v1240 = vsel %vm735, %v1238, %v1239
  %v1241 = vrot.slane %v1175, 1
  %v1242 = vrot.slane %v1180, 1
  %v1243 = vsel %vm735, %v1241, %v1242
  %v1244 = vrot.slane %v1176, 1
  %v1245 = vrot.slane %v1181, 1
  %v1246 = vsel %vm735, %v1244, %v1245
  %v1247 = vrot.slane %v1182, 1
  %v1248 = vsel %vm735, %v1233, %v1247
  %v1249 = vrot.slane %v1183, 1
  %v1250 = vsel %vm735, %v1236, %v1249
  %v1251 = vrot.slane %v1184, 1
  %v1252 = vsel %vm735, %v1239, %v1251
  %v1253 = vrot.slane %v1185, 1
  %v1254 = vsel %vm735, %v1242, %v1253
  %v1255 = vrot.slane %v1186, 1
  %v1256 = vsel %vm735, %v1245, %v1255
  %v1257 = vrot.slane %v1187, 1
  %v1258 = vrot.slane %v1192, 1
  %v1259 = vsel %vm735, %v1257, %v1258
  %v1260 = vrot.slane %v1188, 1
  %v1261 = vrot.slane %v1193, 1
  %v1262 = vsel %vm735, %v1260, %v1261
  %v1263 = vrot.slane %v1189, 1
  %v1264 = vrot.slane %v1194, 1
  %v1265 = vsel %vm735, %v1263, %v1264
  %v1266 = vrot.slane %v1190, 1
  %v1267 = vrot.slane %v1195, 1
  %v1268 = vsel %vm735, %v1266, %v1267
  %v1269 = vrot.slane %v1191, 1
  %v1270 = vrot.slane %v1196, 1
  %v1271 = vsel %vm735, %v1269, %v1270
  %v1272 = vrot.slane %v1197, 1
  %v1273 = vsel %vm735, %v1258, %v1272
  %v1274 = vrot.slane %v1198, 1
  %v1275 = vsel %vm735, %v1261, %v1274
  %v1276 = vrot.slane %v1199, 1
  %v1277 = vsel %vm735, %v1264, %v1276
  %v1278 = vrot.slane %v1200, 1
  %v1279 = vsel %vm735, %v1267, %v1278
  %v1280 = vrot.slane %v1201, 1
  %v1281 = vsel %vm735, %v1270, %v1280
  %1282 = vrot.lane.b32.xlu0 %v1234, 64
  %v1283 = vpop.permute.xlu0 %1282
  %1284 = vrot.lane.b32.xlu0 %v1237, 64
  %v1285 = vpop.permute.xlu0 %1284
  %1286 = vrot.lane.b32.xlu0 %v1240, 64
  %v1287 = vpop.permute.xlu0 %1286
  %1288 = vrot.lane.b32.xlu0 %v1243, 64
  %v1289 = vpop.permute.xlu0 %1288
  %1290 = vrot.lane.b32.xlu0 %v1246, 64
  %v1291 = vpop.permute.xlu0 %1290
  %1292 = vrot.lane.b32.xlu0 %v1248, 64
  %v1293 = vpop.permute.xlu0 %1292
  %1294 = vrot.lane.b32.xlu0 %v1250, 64
  %v1295 = vpop.permute.xlu0 %1294
  %1296 = vrot.lane.b32.xlu0 %v1252, 64
  %v1297 = vpop.permute.xlu0 %1296
  %1298 = vrot.lane.b32.xlu0 %v1254, 64
  %v1299 = vpop.permute.xlu0 %1298
  %1300 = vrot.lane.b32.xlu0 %v1256, 64
  %v1301 = vpop.permute.xlu0 %1300
  %1302 = vrot.lane.b32.xlu0 %v1247, 64
  %v1303 = vpop.permute.xlu0 %1302
  %1304 = vrot.lane.b32.xlu0 %v1249, 64
  %v1305 = vpop.permute.xlu0 %1304
  %1306 = vrot.lane.b32.xlu0 %v1251, 64
  %v1307 = vpop.permute.xlu0 %1306
  %1308 = vrot.lane.b32.xlu0 %v1253, 64
  %v1309 = vpop.permute.xlu0 %1308
  %1310 = vrot.lane.b32.xlu0 %v1255, 64
  %v1311 = vpop.permute.xlu0 %1310
  %1312 = vrot.lane.b32.xlu0 %v1259, 64
  %v1313 = vpop.permute.xlu0 %1312
  %1314 = vrot.lane.b32.xlu0 %v1262, 64
  %v1315 = vpop.permute.xlu0 %1314
  %1316 = vrot.lane.b32.xlu0 %v1265, 64
  %v1317 = vpop.permute.xlu0 %1316
  %1318 = vrot.lane.b32.xlu0 %v1268, 64
  %v1319 = vpop.permute.xlu0 %1318
  %1320 = vrot.lane.b32.xlu0 %v1271, 64
  %v1321 = vpop.permute.xlu0 %1320
  %1322 = vrot.lane.b32.xlu0 %v1273, 64
  %v1323 = vpop.permute.xlu0 %1322
  %1324 = vrot.lane.b32.xlu0 %v1275, 64
  %v1325 = vpop.permute.xlu0 %1324
  %1326 = vrot.lane.b32.xlu0 %v1277, 64
  %v1327 = vpop.permute.xlu0 %1326
  %1328 = vrot.lane.b32.xlu0 %v1279, 64
  %v1329 = vpop.permute.xlu0 %1328
  %1330 = vrot.lane.b32.xlu0 %v1281, 64
  %v1331 = vpop.permute.xlu0 %1330
  %1332 = vrot.lane.b32.xlu0 %v1272, 64
  %v1333 = vpop.permute.xlu0 %1332
  %1334 = vrot.lane.b32.xlu0 %v1274, 64
  %v1335 = vpop.permute.xlu0 %1334
  %1336 = vrot.lane.b32.xlu0 %v1276, 64
  %v1337 = vpop.permute.xlu0 %1336
  %1338 = vrot.lane.b32.xlu0 %v1278, 64
  %v1339 = vpop.permute.xlu0 %1338
  %1340 = vrot.lane.b32.xlu0 %v1280, 64
  %v1341 = vpop.permute.xlu0 %1340
  %v1342 = vsel %vm165, %v1283, %v1285
  %v1343 = vsel %vm165, %v1285, %v1287
  %v1344 = vsel %vm165, %v1287, %v1289
  %v1345 = vsel %vm165, %v1289, %v1291
  %v1346 = vsel %vm165, %v1293, %v1295
  %v1347 = vsel %vm165, %v1295, %v1297
  %v1348 = vsel %vm165, %v1297, %v1299
  %v1349 = vsel %vm165, %v1299, %v1301
  %v1350 = vsel %vm165, %v1303, %v1305
  %v1351 = vsel %vm165, %v1305, %v1307
  %v1352 = vsel %vm165, %v1307, %v1309
  %v1353 = vsel %vm165, %v1309, %v1311
  %v1354 = vsel %vm165, %v1313, %v1315
  %v1355 = vsel %vm165, %v1315, %v1317
  %v1356 = vsel %vm165, %v1317, %v1319
  %v1357 = vsel %vm165, %v1319, %v1321
  %v1358 = vsel %vm165, %v1323, %v1325
  %v1359 = vsel %vm165, %v1325, %v1327
  %v1360 = vsel %vm165, %v1327, %v1329
  %v1361 = vsel %vm165, %v1329, %v1331
  %v1362 = vsel %vm165, %v1333, %v1335
  %v1363 = vsel %vm165, %v1335, %v1337
  %v1364 = vsel %vm165, %v1337, %v1339
  %v1365 = vsel %vm165, %v1339, %v1341
  %v1396 = vadd.f32 %v1106, %v1342
  %v1397 = vadd.f32 %v1107, %v1343
  %v1398 = vadd.f32 %v1108, %v1344
  %v1399 = vadd.f32 %v1109, %v1345
  %v1400 = vadd.f32 %v1110, %v1291
  %v1401 = vadd.f32 %v1111, %v1346
  %v1402 = vadd.f32 %v1112, %v1347
  %v1403 = vadd.f32 %v1113, %v1348
  %v1404 = vadd.f32 %v1114, %v1349
  %v1405 = vadd.f32 %v1115, %v1301
  %v1406 = vadd.f32 %v1116, %v1350
  %v1407 = vadd.f32 %v1117, %v1351
  %v1408 = vadd.f32 %v1118, %v1352
  %v1409 = vadd.f32 %v1119, %v1353
  %v1410 = vadd.f32 %v1120, %v1311
  %v1411 = vadd.f32 %v1121, %v1354
  %v1412 = vadd.f32 %v1122, %v1355
  %v1413 = vadd.f32 %v1123, %v1356
  %v1414 = vadd.f32 %v1124, %v1357
  %v1415 = vadd.f32 %v1125, %v1321
  %v1416 = vadd.f32 %v1126, %v1358
  %v1417 = vadd.f32 %v1127, %v1359
  %v1418 = vadd.f32 %v1128, %v1360
  %v1419 = vadd.f32 %v1129, %v1361
  %v1420 = vadd.f32 %v1130, %v1331
  %v1421 = vadd.f32 %v1131, %v1362
  %v1422 = vadd.f32 %v1132, %v1363
  %v1423 = vadd.f32 %v1133, %v1364
  %v1424 = vadd.f32 %v1134, %v1365
  %v1425 = vadd.f32 %v1135, %v1341
  %v1426 = vld [vmem:[%s0] sm:$0xf8]
  %v1427 = vld [vmem:[%s0 + $0x8] sm:$0xf8]
  %v1428 = vld [vmem:[%s0 + $0x10] sm:$0xf8]
  %v1429 = vld [vmem:[%s0 + $0x18] sm:$0xf8]
  %v1430 = vld [vmem:[%s0 + $0x20] sm:$0xf8]
  %v1431 = vld [vmem:[%s0 + $0x50] sm:$0x7]
  %v1432 = vld [vmem:[%s0 + $0x58] sm:$0x7]
  %v1433 = vld [vmem:[%s0 + $0x60] sm:$0x7]
  %v1434 = vld [vmem:[%s0 + $0x68] sm:$0x7]
  %v1435 = vld [vmem:[%s0 + $0x70] sm:$0x7]
  %v1436 = vld [vmem:[%s0 + $0x78] sm:$0xf8]
  %v1437 = vld [vmem:[%s0 + $0x80] sm:$0xf8]
  %v1438 = vld [vmem:[%s0 + $0x88] sm:$0xf8]
  %v1439 = vld [vmem:[%s0 + $0x90] sm:$0xf8]
  %v1440 = vld [vmem:[%s0 + $0x98] sm:$0xf8]
  %v1441 = vld [vmem:[%s0 + $0xc8] sm:$0x7]
  %v1442 = vld [vmem:[%s0 + $0xd0] sm:$0x7]
  %v1443 = vld [vmem:[%s0 + $0xd8] sm:$0x7]
  %v1444 = vld [vmem:[%s0 + $0xe0] sm:$0x7]
  %v1445 = vld [vmem:[%s0 + $0xe8] sm:$0x7]
  %v1446 = vlaneseq
  %v1447 = vshrl.u32 %v1446, 7
  %v1448 = vsub.s32 6, %v1447
  %v1449 = vrot.slane %v23, %v1448
  %v1450 = vlaneseq
  %v1451 = vshrl.u32 %v1450, 7
  %v1452 = vsub.s32 6, %v1451
  %v1453 = vrot.slane %v24, %v1452
  %v1454 = vlaneseq
  %v1455 = vshrl.u32 %v1454, 7
  %v1456 = vsub.s32 6, %v1455
  %v1457 = vrot.slane %v25, %v1456
  %v1458 = vlaneseq
  %v1459 = vshrl.u32 %v1458, 7
  %v1460 = vsub.s32 6, %v1459
  %v1461 = vrot.slane %v26, %v1460
  %1466 = vrot.lane.b32.xlu0 %v1449, 32
  %v1467 = vpop.permute.xlu0 %1466
  %1468 = vrot.lane.b32.xlu0 %v1453, 32
  %v1469 = vpop.permute.xlu0 %1468
  %1470 = vrot.lane.b32.xlu0 %v1457, 32
  %v1471 = vpop.permute.xlu0 %1470
  %1472 = vrot.lane.b32.xlu0 %v1461, 32
  %v1473 = vpop.permute.xlu0 %1472
  %v1474 = vsel %vm98, %v1467, %v1469
  %v1475 = vsel %vm98, %v1469, %v1471
  %v1476 = vsel %vm98, %v1471, %v1473
  %v1482 = vmul.f32 %v1426, %v1467
  %v1483 = vmul.f32 %v1427, %v1474
  %v1484 = vmul.f32 %v1428, %v1475
  %v1485 = vmul.f32 %v1429, %v1476
  %v1486 = vmul.f32 %v1430, %v1473
  %v1487 = vmul.f32 %v45, %v1467
  %v1488 = vmul.f32 %v46, %v1474
  %v1489 = vmul.f32 %v47, %v1475
  %v1490 = vmul.f32 %v48, %v1476
  %v1491 = vmul.f32 %v49, %v1473
  %v1492 = vmul.f32 %v1431, %v1467
  %v1493 = vmul.f32 %v1432, %v1474
  %v1494 = vmul.f32 %v1433, %v1475
  %v1495 = vmul.f32 %v1434, %v1476
  %v1496 = vmul.f32 %v1435, %v1473
  %v1497 = vmul.f32 %v1436, %v1467
  %v1498 = vmul.f32 %v1437, %v1474
  %v1499 = vmul.f32 %v1438, %v1475
  %v1500 = vmul.f32 %v1439, %v1476
  %v1501 = vmul.f32 %v1440, %v1473
  %v1502 = vmul.f32 %v60, %v1467
  %v1503 = vmul.f32 %v61, %v1474
  %v1504 = vmul.f32 %v62, %v1475
  %v1505 = vmul.f32 %v63, %v1476
  %v1506 = vmul.f32 %v64, %v1473
  %v1507 = vmul.f32 %v1441, %v1467
  %v1508 = vmul.f32 %v1442, %v1474
  %v1509 = vmul.f32 %v1443, %v1475
  %v1510 = vmul.f32 %v1444, %v1476
  %v1511 = vmul.f32 %v1445, %v1473
  %vm1542 = vcmask 1045504
  %v1543 = vrot.slane %v1482, 2
  %v1544 = vrot.slane %v1487, 2
  %v1545 = vsel %vm1542, %v1543, %v1544
  %v1546 = vrot.slane %v1483, 2
  %v1547 = vrot.slane %v1488, 2
  %v1548 = vsel %vm1542, %v1546, %v1547
  %v1549 = vrot.slane %v1484, 2
  %v1550 = vrot.slane %v1489, 2
  %v1551 = vsel %vm1542, %v1549, %v1550
  %v1552 = vrot.slane %v1485, 2
  %v1553 = vrot.slane %v1490, 2
  %v1554 = vsel %vm1542, %v1552, %v1553
  %v1555 = vrot.slane %v1486, 2
  %v1556 = vrot.slane %v1491, 2
  %v1557 = vsel %vm1542, %v1555, %v1556
  %v1558 = vrot.slane %v1492, 2
  %v1559 = vsel %vm1542, %v1544, %v1558
  %v1560 = vrot.slane %v1493, 2
  %v1561 = vsel %vm1542, %v1547, %v1560
  %v1562 = vrot.slane %v1494, 2
  %v1563 = vsel %vm1542, %v1550, %v1562
  %v1564 = vrot.slane %v1495, 2
  %v1565 = vsel %vm1542, %v1553, %v1564
  %v1566 = vrot.slane %v1496, 2
  %v1567 = vsel %vm1542, %v1556, %v1566
  %v1568 = vrot.slane %v1497, 2
  %v1569 = vrot.slane %v1502, 2
  %v1570 = vsel %vm1542, %v1568, %v1569
  %v1571 = vrot.slane %v1498, 2
  %v1572 = vrot.slane %v1503, 2
  %v1573 = vsel %vm1542, %v1571, %v1572
  %v1574 = vrot.slane %v1499, 2
  %v1575 = vrot.slane %v1504, 2
  %v1576 = vsel %vm1542, %v1574, %v1575
  %v1577 = vrot.slane %v1500, 2
  %v1578 = vrot.slane %v1505, 2
  %v1579 = vsel %vm1542, %v1577, %v1578
  %v1580 = vrot.slane %v1501, 2
  %v1581 = vrot.slane %v1506, 2
  %v1582 = vsel %vm1542, %v1580, %v1581
  %v1583 = vrot.slane %v1507, 2
  %v1584 = vsel %vm1542, %v1569, %v1583
  %v1585 = vrot.slane %v1508, 2
  %v1586 = vsel %vm1542, %v1572, %v1585
  %v1587 = vrot.slane %v1509, 2
  %v1588 = vsel %vm1542, %v1575, %v1587
  %v1589 = vrot.slane %v1510, 2
  %v1590 = vsel %vm1542, %v1578, %v1589
  %v1591 = vrot.slane %v1511, 2
  %v1592 = vsel %vm1542, %v1581, %v1591
  %v1623 = vadd.f32 %v1396, %v1545
  %v1624 = vadd.f32 %v1397, %v1548
  %v1625 = vadd.f32 %v1398, %v1551
  %v1626 = vadd.f32 %v1399, %v1554
  %v1627 = vadd.f32 %v1400, %v1557
  %v1628 = vadd.f32 %v1401, %v1559
  %v1629 = vadd.f32 %v1402, %v1561
  %v1630 = vadd.f32 %v1403, %v1563
  %v1631 = vadd.f32 %v1404, %v1565
  %v1632 = vadd.f32 %v1405, %v1567
  %v1633 = vadd.f32 %v1406, %v1558
  %v1634 = vadd.f32 %v1407, %v1560
  %v1635 = vadd.f32 %v1408, %v1562
  %v1636 = vadd.f32 %v1409, %v1564
  %v1637 = vadd.f32 %v1410, %v1566
  %v1638 = vadd.f32 %v1411, %v1570
  %v1639 = vadd.f32 %v1412, %v1573
  %v1640 = vadd.f32 %v1413, %v1576
  %v1641 = vadd.f32 %v1414, %v1579
  %v1642 = vadd.f32 %v1415, %v1582
  %v1643 = vadd.f32 %v1416, %v1584
  %v1644 = vadd.f32 %v1417, %v1586
  %v1645 = vadd.f32 %v1418, %v1588
  %v1646 = vadd.f32 %v1419, %v1590
  %v1647 = vadd.f32 %v1420, %v1592
  %v1648 = vadd.f32 %v1421, %v1583
  %v1649 = vadd.f32 %v1422, %v1585
  %v1650 = vadd.f32 %v1423, %v1587
  %v1651 = vadd.f32 %v1424, %v1589
  %v1652 = vadd.f32 %v1425, %v1591
  %v1653 = vlaneseq
  %v1654 = vshrl.u32 %v1653, 7
  %v1655 = vsub.s32 7, %v1654
  %v1656 = vrot.slane %v23, %v1655
  %v1657 = vlaneseq
  %v1658 = vshrl.u32 %v1657, 7
  %v1659 = vsub.s32 7, %v1658
  %v1660 = vrot.slane %v24, %v1659
  %v1661 = vlaneseq
  %v1662 = vshrl.u32 %v1661, 7
  %v1663 = vsub.s32 7, %v1662
  %v1664 = vrot.slane %v25, %v1663
  %v1665 = vlaneseq
  %v1666 = vshrl.u32 %v1665, 7
  %v1667 = vsub.s32 7, %v1666
  %v1668 = vrot.slane %v26, %v1667
  %1673 = vrot.lane.b32.xlu0 %v1656, 64
  %v1674 = vpop.permute.xlu0 %1673
  %1675 = vrot.lane.b32.xlu0 %v1660, 64
  %v1676 = vpop.permute.xlu0 %1675
  %1677 = vrot.lane.b32.xlu0 %v1664, 64
  %v1678 = vpop.permute.xlu0 %1677
  %1679 = vrot.lane.b32.xlu0 %v1668, 64
  %v1680 = vpop.permute.xlu0 %1679
  %v1681 = vsel %vm165, %v1674, %v1676
  %v1682 = vsel %vm165, %v1676, %v1678
  %v1683 = vsel %vm165, %v1678, %v1680
  %v1689 = vmul.f32 %v1426, %v1674
  %v1690 = vmul.f32 %v1427, %v1681
  %v1691 = vmul.f32 %v1428, %v1682
  %v1692 = vmul.f32 %v1429, %v1683
  %v1693 = vmul.f32 %v1430, %v1680
  %v1694 = vmul.f32 %v45, %v1674
  %v1695 = vmul.f32 %v46, %v1681
  %v1696 = vmul.f32 %v47, %v1682
  %v1697 = vmul.f32 %v48, %v1683
  %v1698 = vmul.f32 %v49, %v1680
  %v1699 = vmul.f32 %v1431, %v1674
  %v1700 = vmul.f32 %v1432, %v1681
  %v1701 = vmul.f32 %v1433, %v1682
  %v1702 = vmul.f32 %v1434, %v1683
  %v1703 = vmul.f32 %v1435, %v1680
  %v1704 = vmul.f32 %v1436, %v1674
  %v1705 = vmul.f32 %v1437, %v1681
  %v1706 = vmul.f32 %v1438, %v1682
  %v1707 = vmul.f32 %v1439, %v1683
  %v1708 = vmul.f32 %v1440, %v1680
  %v1709 = vmul.f32 %v60, %v1674
  %v1710 = vmul.f32 %v61, %v1681
  %v1711 = vmul.f32 %v62, %v1682
  %v1712 = vmul.f32 %v63, %v1683
  %v1713 = vmul.f32 %v64, %v1680
  %v1714 = vmul.f32 %v1441, %v1674
  %v1715 = vmul.f32 %v1442, %v1681
  %v1716 = vmul.f32 %v1443, %v1682
  %v1717 = vmul.f32 %v1444, %v1683
  %v1718 = vmul.f32 %v1445, %v1680
  %v1749 = vrot.slane %v1689, 2
  %v1750 = vrot.slane %v1694, 2
  %v1751 = vsel %vm1542, %v1749, %v1750
  %v1752 = vrot.slane %v1690, 2
  %v1753 = vrot.slane %v1695, 2
  %v1754 = vsel %vm1542, %v1752, %v1753
  %v1755 = vrot.slane %v1691, 2
  %v1756 = vrot.slane %v1696, 2
  %v1757 = vsel %vm1542, %v1755, %v1756
  %v1758 = vrot.slane %v1692, 2
  %v1759 = vrot.slane %v1697, 2
  %v1760 = vsel %vm1542, %v1758, %v1759
  %v1761 = vrot.slane %v1693, 2
  %v1762 = vrot.slane %v1698, 2
  %v1763 = vsel %vm1542, %v1761, %v1762
  %v1764 = vrot.slane %v1699, 2
  %v1765 = vsel %vm1542, %v1750, %v1764
  %v1766 = vrot.slane %v1700, 2
  %v1767 = vsel %vm1542, %v1753, %v1766
  %v1768 = vrot.slane %v1701, 2
  %v1769 = vsel %vm1542, %v1756, %v1768
  %v1770 = vrot.slane %v1702, 2
  %v1771 = vsel %vm1542, %v1759, %v1770
  %v1772 = vrot.slane %v1703, 2
  %v1773 = vsel %vm1542, %v1762, %v1772
  %v1774 = vrot.slane %v1704, 2
  %v1775 = vrot.slane %v1709, 2
  %v1776 = vsel %vm1542, %v1774, %v1775
  %v1777 = vrot.slane %v1705, 2
  %v1778 = vrot.slane %v1710, 2
  %v1779 = vsel %vm1542, %v1777, %v1778
  %v1780 = vrot.slane %v1706, 2
  %v1781 = vrot.slane %v1711, 2
  %v1782 = vsel %vm1542, %v1780, %v1781
  %v1783 = vrot.slane %v1707, 2
  %v1784 = vrot.slane %v1712, 2
  %v1785 = vsel %vm1542, %v1783, %v1784
  %v1786 = vrot.slane %v1708, 2
  %v1787 = vrot.slane %v1713, 2
  %v1788 = vsel %vm1542, %v1786, %v1787
  %v1789 = vrot.slane %v1714, 2
  %v1790 = vsel %vm1542, %v1775, %v1789
  %v1791 = vrot.slane %v1715, 2
  %v1792 = vsel %vm1542, %v1778, %v1791
  %v1793 = vrot.slane %v1716, 2
  %v1794 = vsel %vm1542, %v1781, %v1793
  %v1795 = vrot.slane %v1717, 2
  %v1796 = vsel %vm1542, %v1784, %v1795
  %v1797 = vrot.slane %v1718, 2
  %v1798 = vsel %vm1542, %v1787, %v1797
  %1799 = vrot.lane.b32.xlu0 %v1751, 96
  %v1800 = vpop.permute.xlu0 %1799
  %1801 = vrot.lane.b32.xlu0 %v1754, 96
  %v1802 = vpop.permute.xlu0 %1801
  %1803 = vrot.lane.b32.xlu0 %v1757, 96
  %v1804 = vpop.permute.xlu0 %1803
  %1805 = vrot.lane.b32.xlu0 %v1760, 96
  %v1806 = vpop.permute.xlu0 %1805
  %1807 = vrot.lane.b32.xlu0 %v1763, 96
  %v1808 = vpop.permute.xlu0 %1807
  %1809 = vrot.lane.b32.xlu0 %v1765, 96
  %v1810 = vpop.permute.xlu0 %1809
  %1811 = vrot.lane.b32.xlu0 %v1767, 96
  %v1812 = vpop.permute.xlu0 %1811
  %1813 = vrot.lane.b32.xlu0 %v1769, 96
  %v1814 = vpop.permute.xlu0 %1813
  %1815 = vrot.lane.b32.xlu0 %v1771, 96
  %v1816 = vpop.permute.xlu0 %1815
  %1817 = vrot.lane.b32.xlu0 %v1773, 96
  %v1818 = vpop.permute.xlu0 %1817
  %1819 = vrot.lane.b32.xlu0 %v1764, 96
  %v1820 = vpop.permute.xlu0 %1819
  %1821 = vrot.lane.b32.xlu0 %v1766, 96
  %v1822 = vpop.permute.xlu0 %1821
  %1823 = vrot.lane.b32.xlu0 %v1768, 96
  %v1824 = vpop.permute.xlu0 %1823
  %1825 = vrot.lane.b32.xlu0 %v1770, 96
  %v1826 = vpop.permute.xlu0 %1825
  %1827 = vrot.lane.b32.xlu0 %v1772, 96
  %v1828 = vpop.permute.xlu0 %1827
  %1829 = vrot.lane.b32.xlu0 %v1776, 96
  %v1830 = vpop.permute.xlu0 %1829
  %1831 = vrot.lane.b32.xlu0 %v1779, 96
  %v1832 = vpop.permute.xlu0 %1831
  %1833 = vrot.lane.b32.xlu0 %v1782, 96
  %v1834 = vpop.permute.xlu0 %1833
  %1835 = vrot.lane.b32.xlu0 %v1785, 96
  %v1836 = vpop.permute.xlu0 %1835
  %1837 = vrot.lane.b32.xlu0 %v1788, 96
  %v1838 = vpop.permute.xlu0 %1837
  %1839 = vrot.lane.b32.xlu0 %v1790, 96
  %v1840 = vpop.permute.xlu0 %1839
  %1841 = vrot.lane.b32.xlu0 %v1792, 96
  %v1842 = vpop.permute.xlu0 %1841
  %1843 = vrot.lane.b32.xlu0 %v1794, 96
  %v1844 = vpop.permute.xlu0 %1843
  %1845 = vrot.lane.b32.xlu0 %v1796, 96
  %v1846 = vpop.permute.xlu0 %1845
  %1847 = vrot.lane.b32.xlu0 %v1798, 96
  %v1848 = vpop.permute.xlu0 %1847
  %1849 = vrot.lane.b32.xlu0 %v1789, 96
  %v1850 = vpop.permute.xlu0 %1849
  %1851 = vrot.lane.b32.xlu0 %v1791, 96
  %v1852 = vpop.permute.xlu0 %1851
  %1853 = vrot.lane.b32.xlu0 %v1793, 96
  %v1854 = vpop.permute.xlu0 %1853
  %1855 = vrot.lane.b32.xlu0 %v1795, 96
  %v1856 = vpop.permute.xlu0 %1855
  %1857 = vrot.lane.b32.xlu0 %v1797, 96
  %v1858 = vpop.permute.xlu0 %1857
  %v1859 = vsel %vm294, %v1800, %v1802
  %v1860 = vsel %vm294, %v1802, %v1804
  %v1861 = vsel %vm294, %v1804, %v1806
  %v1862 = vsel %vm294, %v1806, %v1808
  %v1863 = vsel %vm294, %v1810, %v1812
  %v1864 = vsel %vm294, %v1812, %v1814
  %v1865 = vsel %vm294, %v1814, %v1816
  %v1866 = vsel %vm294, %v1816, %v1818
  %v1867 = vsel %vm294, %v1820, %v1822
  %v1868 = vsel %vm294, %v1822, %v1824
  %v1869 = vsel %vm294, %v1824, %v1826
  %v1870 = vsel %vm294, %v1826, %v1828
  %v1871 = vsel %vm294, %v1830, %v1832
  %v1872 = vsel %vm294, %v1832, %v1834
  %v1873 = vsel %vm294, %v1834, %v1836
  %v1874 = vsel %vm294, %v1836, %v1838
  %v1875 = vsel %vm294, %v1840, %v1842
  %v1876 = vsel %vm294, %v1842, %v1844
  %v1877 = vsel %vm294, %v1844, %v1846
  %v1878 = vsel %vm294, %v1846, %v1848
  %v1879 = vsel %vm294, %v1850, %v1852
  %v1880 = vsel %vm294, %v1852, %v1854
  %v1881 = vsel %vm294, %v1854, %v1856
  %v1882 = vsel %vm294, %v1856, %v1858
  %v1913 = vadd.f32 %v1623, %v1859
  %v1914 = vadd.f32 %v1624, %v1860
  %v1915 = vadd.f32 %v1625, %v1861
  %v1916 = vadd.f32 %v1626, %v1862
  %v1917 = vadd.f32 %v1627, %v1808
  %v1918 = vadd.f32 %v1628, %v1863
  %v1919 = vadd.f32 %v1629, %v1864
  %v1920 = vadd.f32 %v1630, %v1865
  %v1921 = vadd.f32 %v1631, %v1866
  %v1922 = vadd.f32 %v1632, %v1818
  %v1923 = vadd.f32 %v1633, %v1867
  %v1924 = vadd.f32 %v1634, %v1868
  %v1925 = vadd.f32 %v1635, %v1869
  %v1926 = vadd.f32 %v1636, %v1870
  %v1927 = vadd.f32 %v1637, %v1828
  %v1928 = vadd.f32 %v1638, %v1871
  %v1929 = vadd.f32 %v1639, %v1872
  %v1930 = vadd.f32 %v1640, %v1873
  %v1931 = vadd.f32 %v1641, %v1874
  %v1932 = vadd.f32 %v1642, %v1838
  %v1933 = vadd.f32 %v1643, %v1875
  %v1934 = vadd.f32 %v1644, %v1876
  %v1935 = vadd.f32 %v1645, %v1877
  %v1936 = vadd.f32 %v1646, %v1878
  %v1937 = vadd.f32 %v1647, %v1848
  %v1938 = vadd.f32 %v1648, %v1879
  %v1939 = vadd.f32 %v1649, %v1880
  %v1940 = vadd.f32 %v1650, %v1881
  %v1941 = vadd.f32 %v1651, %v1882
  %v1942 = vadd.f32 %v1652, %v1858
  %v1943 = vlaneseq
  %v1944 = vshrl.u32 %v1943, 7
  %v1945 = vsub.s32 0, %v1944
  %v1946 = vrot.slane %v27, %v1945
  %v1947 = vlaneseq
  %v1948 = vshrl.u32 %v1947, 7
  %v1949 = vsub.s32 0, %v1948
  %v1950 = vrot.slane %v28, %v1949
  %v1951 = vlaneseq
  %v1952 = vshrl.u32 %v1951, 7
  %v1953 = vsub.s32 0, %v1952
  %v1954 = vrot.slane %v29, %v1953
  %v1955 = vlaneseq
  %v1956 = vshrl.u32 %v1955, 7
  %v1957 = vsub.s32 0, %v1956
  %v1958 = vrot.slane %v30, %v1957
  %1963 = vrot.lane.b32.xlu0 %v1946, 96
  %v1964 = vpop.permute.xlu0 %1963
  %1965 = vrot.lane.b32.xlu0 %v1950, 96
  %v1966 = vpop.permute.xlu0 %1965
  %1967 = vrot.lane.b32.xlu0 %v1954, 96
  %v1968 = vpop.permute.xlu0 %1967
  %1969 = vrot.lane.b32.xlu0 %v1958, 96
  %v1970 = vpop.permute.xlu0 %1969
  %v1971 = vsel %vm294, %v1964, %v1966
  %v1972 = vsel %vm294, %v1966, %v1968
  %v1973 = vsel %vm294, %v1968, %v1970
  %v1979 = vmul.f32 %v1426, %v1964
  %v1980 = vmul.f32 %v1427, %v1971
  %v1981 = vmul.f32 %v1428, %v1972
  %v1982 = vmul.f32 %v1429, %v1973
  %v1983 = vmul.f32 %v1430, %v1970
  %v1984 = vmul.f32 %v45, %v1964
  %v1985 = vmul.f32 %v46, %v1971
  %v1986 = vmul.f32 %v47, %v1972
  %v1987 = vmul.f32 %v48, %v1973
  %v1988 = vmul.f32 %v49, %v1970
  %v1989 = vmul.f32 %v1431, %v1964
  %v1990 = vmul.f32 %v1432, %v1971
  %v1991 = vmul.f32 %v1433, %v1972
  %v1992 = vmul.f32 %v1434, %v1973
  %v1993 = vmul.f32 %v1435, %v1970
  %v1994 = vmul.f32 %v1436, %v1964
  %v1995 = vmul.f32 %v1437, %v1971
  %v1996 = vmul.f32 %v1438, %v1972
  %v1997 = vmul.f32 %v1439, %v1973
  %v1998 = vmul.f32 %v1440, %v1970
  %v1999 = vmul.f32 %v60, %v1964
  %v2000 = vmul.f32 %v61, %v1971
  %v2001 = vmul.f32 %v62, %v1972
  %v2002 = vmul.f32 %v63, %v1973
  %v2003 = vmul.f32 %v64, %v1970
  %v2004 = vmul.f32 %v1441, %v1964
  %v2005 = vmul.f32 %v1442, %v1971
  %v2006 = vmul.f32 %v1443, %v1972
  %v2007 = vmul.f32 %v1444, %v1973
  %v2008 = vmul.f32 %v1445, %v1970
  %v2039 = vrot.slane %v1979, 2
  %v2040 = vrot.slane %v1984, 2
  %v2041 = vsel %vm1542, %v2039, %v2040
  %v2042 = vrot.slane %v1980, 2
  %v2043 = vrot.slane %v1985, 2
  %v2044 = vsel %vm1542, %v2042, %v2043
  %v2045 = vrot.slane %v1981, 2
  %v2046 = vrot.slane %v1986, 2
  %v2047 = vsel %vm1542, %v2045, %v2046
  %v2048 = vrot.slane %v1982, 2
  %v2049 = vrot.slane %v1987, 2
  %v2050 = vsel %vm1542, %v2048, %v2049
  %v2051 = vrot.slane %v1983, 2
  %v2052 = vrot.slane %v1988, 2
  %v2053 = vsel %vm1542, %v2051, %v2052
  %v2054 = vrot.slane %v1989, 2
  %v2055 = vsel %vm1542, %v2040, %v2054
  %v2056 = vrot.slane %v1990, 2
  %v2057 = vsel %vm1542, %v2043, %v2056
  %v2058 = vrot.slane %v1991, 2
  %v2059 = vsel %vm1542, %v2046, %v2058
  %v2060 = vrot.slane %v1992, 2
  %v2061 = vsel %vm1542, %v2049, %v2060
  %v2062 = vrot.slane %v1993, 2
  %v2063 = vsel %vm1542, %v2052, %v2062
  %v2064 = vrot.slane %v1994, 2
  %v2065 = vrot.slane %v1999, 2
  %v2066 = vsel %vm1542, %v2064, %v2065
  %v2067 = vrot.slane %v1995, 2
  %v2068 = vrot.slane %v2000, 2
  %v2069 = vsel %vm1542, %v2067, %v2068
  %v2070 = vrot.slane %v1996, 2
  %v2071 = vrot.slane %v2001, 2
  %v2072 = vsel %vm1542, %v2070, %v2071
  %v2073 = vrot.slane %v1997, 2
  %v2074 = vrot.slane %v2002, 2
  %v2075 = vsel %vm1542, %v2073, %v2074
  %v2076 = vrot.slane %v1998, 2
  %v2077 = vrot.slane %v2003, 2
  %v2078 = vsel %vm1542, %v2076, %v2077
  %v2079 = vrot.slane %v2004, 2
  %v2080 = vsel %vm1542, %v2065, %v2079
  %v2081 = vrot.slane %v2005, 2
  %v2082 = vsel %vm1542, %v2068, %v2081
  %v2083 = vrot.slane %v2006, 2
  %v2084 = vsel %vm1542, %v2071, %v2083
  %v2085 = vrot.slane %v2007, 2
  %v2086 = vsel %vm1542, %v2074, %v2085
  %v2087 = vrot.slane %v2008, 2
  %v2088 = vsel %vm1542, %v2077, %v2087
  %2089 = vrot.lane.b32.xlu0 %v2041, 64
  %v2090 = vpop.permute.xlu0 %2089
  %2091 = vrot.lane.b32.xlu0 %v2044, 64
  %v2092 = vpop.permute.xlu0 %2091
  %2093 = vrot.lane.b32.xlu0 %v2047, 64
  %v2094 = vpop.permute.xlu0 %2093
  %2095 = vrot.lane.b32.xlu0 %v2050, 64
  %v2096 = vpop.permute.xlu0 %2095
  %2097 = vrot.lane.b32.xlu0 %v2053, 64
  %v2098 = vpop.permute.xlu0 %2097
  %2099 = vrot.lane.b32.xlu0 %v2055, 64
  %v2100 = vpop.permute.xlu0 %2099
  %2101 = vrot.lane.b32.xlu0 %v2057, 64
  %v2102 = vpop.permute.xlu0 %2101
  %2103 = vrot.lane.b32.xlu0 %v2059, 64
  %v2104 = vpop.permute.xlu0 %2103
  %2105 = vrot.lane.b32.xlu0 %v2061, 64
  %v2106 = vpop.permute.xlu0 %2105
  %2107 = vrot.lane.b32.xlu0 %v2063, 64
  %v2108 = vpop.permute.xlu0 %2107
  %2109 = vrot.lane.b32.xlu0 %v2054, 64
  %v2110 = vpop.permute.xlu0 %2109
  %2111 = vrot.lane.b32.xlu0 %v2056, 64
  %v2112 = vpop.permute.xlu0 %2111
  %2113 = vrot.lane.b32.xlu0 %v2058, 64
  %v2114 = vpop.permute.xlu0 %2113
  %2115 = vrot.lane.b32.xlu0 %v2060, 64
  %v2116 = vpop.permute.xlu0 %2115
  %2117 = vrot.lane.b32.xlu0 %v2062, 64
  %v2118 = vpop.permute.xlu0 %2117
  %2119 = vrot.lane.b32.xlu0 %v2066, 64
  %v2120 = vpop.permute.xlu0 %2119
  %2121 = vrot.lane.b32.xlu0 %v2069, 64
  %v2122 = vpop.permute.xlu0 %2121
  %2123 = vrot.lane.b32.xlu0 %v2072, 64
  %v2124 = vpop.permute.xlu0 %2123
  %2125 = vrot.lane.b32.xlu0 %v2075, 64
  %v2126 = vpop.permute.xlu0 %2125
  %2127 = vrot.lane.b32.xlu0 %v2078, 64
  %v2128 = vpop.permute.xlu0 %2127
  %2129 = vrot.lane.b32.xlu0 %v2080, 64
  %v2130 = vpop.permute.xlu0 %2129
  %2131 = vrot.lane.b32.xlu0 %v2082, 64
  %v2132 = vpop.permute.xlu0 %2131
  %2133 = vrot.lane.b32.xlu0 %v2084, 64
  %v2134 = vpop.permute.xlu0 %2133
  %2135 = vrot.lane.b32.xlu0 %v2086, 64
  %v2136 = vpop.permute.xlu0 %2135
  %2137 = vrot.lane.b32.xlu0 %v2088, 64
  %v2138 = vpop.permute.xlu0 %2137
  %2139 = vrot.lane.b32.xlu0 %v2079, 64
  %v2140 = vpop.permute.xlu0 %2139
  %2141 = vrot.lane.b32.xlu0 %v2081, 64
  %v2142 = vpop.permute.xlu0 %2141
  %2143 = vrot.lane.b32.xlu0 %v2083, 64
  %v2144 = vpop.permute.xlu0 %2143
  %2145 = vrot.lane.b32.xlu0 %v2085, 64
  %v2146 = vpop.permute.xlu0 %2145
  %2147 = vrot.lane.b32.xlu0 %v2087, 64
  %v2148 = vpop.permute.xlu0 %2147
  %v2149 = vsel %vm165, %v2090, %v2092
  %v2150 = vsel %vm165, %v2092, %v2094
  %v2151 = vsel %vm165, %v2094, %v2096
  %v2152 = vsel %vm165, %v2096, %v2098
  %v2153 = vsel %vm165, %v2100, %v2102
  %v2154 = vsel %vm165, %v2102, %v2104
  %v2155 = vsel %vm165, %v2104, %v2106
  %v2156 = vsel %vm165, %v2106, %v2108
  %v2157 = vsel %vm165, %v2110, %v2112
  %v2158 = vsel %vm165, %v2112, %v2114
  %v2159 = vsel %vm165, %v2114, %v2116
  %v2160 = vsel %vm165, %v2116, %v2118
  %v2161 = vsel %vm165, %v2120, %v2122
  %v2162 = vsel %vm165, %v2122, %v2124
  %v2163 = vsel %vm165, %v2124, %v2126
  %v2164 = vsel %vm165, %v2126, %v2128
  %v2165 = vsel %vm165, %v2130, %v2132
  %v2166 = vsel %vm165, %v2132, %v2134
  %v2167 = vsel %vm165, %v2134, %v2136
  %v2168 = vsel %vm165, %v2136, %v2138
  %v2169 = vsel %vm165, %v2140, %v2142
  %v2170 = vsel %vm165, %v2142, %v2144
  %v2171 = vsel %vm165, %v2144, %v2146
  %v2172 = vsel %vm165, %v2146, %v2148
  %v2203 = vadd.f32 %v1913, %v2149
  %v2204 = vadd.f32 %v1914, %v2150
  %v2205 = vadd.f32 %v1915, %v2151
  %v2206 = vadd.f32 %v1916, %v2152
  %v2207 = vadd.f32 %v1917, %v2098
  %v2208 = vadd.f32 %v1918, %v2153
  %v2209 = vadd.f32 %v1919, %v2154
  %v2210 = vadd.f32 %v1920, %v2155
  %v2211 = vadd.f32 %v1921, %v2156
  %v2212 = vadd.f32 %v1922, %v2108
  %v2213 = vadd.f32 %v1923, %v2157
  %v2214 = vadd.f32 %v1924, %v2158
  %v2215 = vadd.f32 %v1925, %v2159
  %v2216 = vadd.f32 %v1926, %v2160
  %v2217 = vadd.f32 %v1927, %v2118
  %v2218 = vadd.f32 %v1928, %v2161
  %v2219 = vadd.f32 %v1929, %v2162
  %v2220 = vadd.f32 %v1930, %v2163
  %v2221 = vadd.f32 %v1931, %v2164
  %v2222 = vadd.f32 %v1932, %v2128
  %v2223 = vadd.f32 %v1933, %v2165
  %v2224 = vadd.f32 %v1934, %v2166
  %v2225 = vadd.f32 %v1935, %v2167
  %v2226 = vadd.f32 %v1936, %v2168
  %v2227 = vadd.f32 %v1937, %v2138
  %v2228 = vadd.f32 %v1938, %v2169
  %v2229 = vadd.f32 %v1939, %v2170
  %v2230 = vadd.f32 %v1940, %v2171
  %v2231 = vadd.f32 %v1941, %v2172
  %v2232 = vadd.f32 %v1942, %v2148
  %v2234 = vlaneseq
  %v2235 = vshrl.u32 %v2234, 7
  %v2236 = vsub.s32 0, %v2235
  %v2237 = vrot.slane %v39, %v2236
  %v2238 = vlaneseq
  %v2239 = vshrl.u32 %v2238, 7
  %v2240 = vsub.s32 2, %v2239
  %v2241 = vrot.slane %v39, %v2240
  %v2242 = vlaneseq
  %v2243 = vshrl.u32 %v2242, 7
  %v2244 = vsub.s32 4, %v2243
  %v2245 = vrot.slane %v39, %v2244
  %v2246 = vlaneseq
  %v2247 = vshrl.u32 %v2246, 7
  %v2248 = vsub.s32 6, %v2247
  %v2249 = vrot.slane %v39, %v2248
  %v2254 = vlaneseq
  %v2255 = vshrl.u32 %v2254, 7
  %v2256 = vsub.s32 0, %v2255
  %v2257 = vrot.slane %v2237, %v2256
  %v2258 = vlaneseq
  %v2259 = vshrl.u32 %v2258, 7
  %v2260 = vsub.s32 0, %v2259
  %v2261 = vrot.slane %v2241, %v2260
  %v2262 = vlaneseq
  %v2263 = vshrl.u32 %v2262, 7
  %v2264 = vsub.s32 0, %v2263
  %v2265 = vrot.slane %v2245, %v2264
  %v2266 = vlaneseq
  %v2267 = vshrl.u32 %v2266, 7
  %v2268 = vsub.s32 0, %v2267
  %v2269 = vrot.slane %v2249, %v2268
  %2274 = vrot.lane.b32.xlu0 %v2257, 32
  %v2275 = vpop.permute.xlu0 %2274
  %2276 = vrot.lane.b32.xlu0 %v2261, 32
  %v2277 = vpop.permute.xlu0 %2276
  %2278 = vrot.lane.b32.xlu0 %v2265, 32
  %v2279 = vpop.permute.xlu0 %2278
  %2280 = vrot.lane.b32.xlu0 %v2269, 32
  %v2281 = vpop.permute.xlu0 %2280
  %v2282 = vsel %vm98, %v2275, %v2277
  %v2283 = vsel %vm98, %v2277, %v2279
  %v2284 = vsel %vm98, %v2279, %v2281
  %v2290 = vadd.f32 %v2203, %v2275
  %v2291 = vadd.f32 %v2204, %v2282
  %v2292 = vadd.f32 %v2205, %v2283
  %v2293 = vadd.f32 %v2206, %v2284
  %v2294 = vadd.f32 %v2207, %v2281
  %v2295 = vadd.f32 %v2208, %v2275
  %v2296 = vadd.f32 %v2209, %v2282
  %v2297 = vadd.f32 %v2210, %v2283
  %v2298 = vadd.f32 %v2211, %v2284
  %v2299 = vadd.f32 %v2212, %v2281
  %v2300 = vadd.f32 %v2213, %v2275
  %v2301 = vadd.f32 %v2214, %v2282
  %v2302 = vadd.f32 %v2215, %v2283
  %v2303 = vadd.f32 %v2216, %v2284
  %v2304 = vadd.f32 %v2217, %v2281
  %v2305 = vadd.f32 %v2218, %v2275
  %v2306 = vadd.f32 %v2219, %v2282
  %v2307 = vadd.f32 %v2220, %v2283
  %v2308 = vadd.f32 %v2221, %v2284
  %v2309 = vadd.f32 %v2222, %v2281
  %v2310 = vadd.f32 %v2223, %v2275
  %v2311 = vadd.f32 %v2224, %v2282
  %v2312 = vadd.f32 %v2225, %v2283
  %v2313 = vadd.f32 %v2226, %v2284
  %v2314 = vadd.f32 %v2227, %v2281
  %v2315 = vadd.f32 %v2228, %v2275
  %v2316 = vadd.f32 %v2229, %v2282
  %v2317 = vadd.f32 %v2230, %v2283
  %v2318 = vadd.f32 %v2231, %v2284
  %v2319 = vadd.f32 %v2232, %v2281
  %v2320 = vmax.f32 %v2290, 0.0
  %v2321 = vmax.f32 %v2291, 0.0
  %v2322 = vmax.f32 %v2292, 0.0
  %v2323 = vmax.f32 %v2293, 0.0
  %v2324 = vmax.f32 %v2294, 0.0
  %v2325 = vmax.f32 %v2295, 0.0
  %v2326 = vmax.f32 %v2296, 0.0
  %v2327 = vmax.f32 %v2297, 0.0
  %v2328 = vmax.f32 %v2298, 0.0
  %v2329 = vmax.f32 %v2299, 0.0
  %v2330 = vmax.f32 %v2300, 0.0
  %v2331 = vmax.f32 %v2301, 0.0
  %v2332 = vmax.f32 %v2302, 0.0
  %v2333 = vmax.f32 %v2303, 0.0
  %v2334 = vmax.f32 %v2304, 0.0
  %v2335 = vmax.f32 %v2305, 0.0
  %v2336 = vmax.f32 %v2306, 0.0
  %v2337 = vmax.f32 %v2307, 0.0
  %v2338 = vmax.f32 %v2308, 0.0
  %v2339 = vmax.f32 %v2309, 0.0
  %v2340 = vmax.f32 %v2310, 0.0
  %v2341 = vmax.f32 %v2311, 0.0
  %v2342 = vmax.f32 %v2312, 0.0
  %v2343 = vmax.f32 %v2313, 0.0
  %v2344 = vmax.f32 %v2314, 0.0
  %v2345 = vmax.f32 %v2315, 0.0
  %v2346 = vmax.f32 %v2316, 0.0
  %v2347 = vmax.f32 %v2317, 0.0
  %v2348 = vmax.f32 %v2318, 0.0
  %v2349 = vmax.f32 %v2319, 0.0
  %v2350 = vld [vmem:[%s0] sm:$0xff]
  %v2351 = vld [vmem:[%s0 + $0x8] sm:$0xff]
  %v2352 = vld [vmem:[%s0 + $0x10] sm:$0xff]
  %v2353 = vld [vmem:[%s0 + $0x18] sm:$0xff]
  %v2354 = vld [vmem:[%s0 + $0x20] sm:$0xff]
  %v2355 = vld [vmem:[%s0 + $0x78] sm:$0xff]
  %v2356 = vld [vmem:[%s0 + $0x80] sm:$0xff]
  %v2357 = vld [vmem:[%s0 + $0x88] sm:$0xff]
  %v2358 = vld [vmem:[%s0 + $0x90] sm:$0xff]
  %v2359 = vld [vmem:[%s0 + $0x98] sm:$0xff]
  %v2360 = vlaneseq
  %v2361 = vshrl.u32 %v2360, 7
  %v2362 = vsub.s32 0, %v2361
  %v2363 = vrot.slane %v31, %v2362
  %v2364 = vlaneseq
  %v2365 = vshrl.u32 %v2364, 7
  %v2366 = vsub.s32 0, %v2365
  %v2367 = vrot.slane %v32, %v2366
  %v2368 = vlaneseq
  %v2369 = vshrl.u32 %v2368, 7
  %v2370 = vsub.s32 0, %v2369
  %v2371 = vrot.slane %v33, %v2370
  %v2372 = vlaneseq
  %v2373 = vshrl.u32 %v2372, 7
  %v2374 = vsub.s32 0, %v2373
  %v2375 = vrot.slane %v34, %v2374
  %v2376 = vmul.f32 %v2350, %v2363
  %v2377 = vmul.f32 %v2351, %v2367
  %v2378 = vmul.f32 %v2352, %v2371
  %v2379 = vmul.f32 %v2353, %v2375
  %v2380 = vmul.f32 %v45, %v2363
  %v2381 = vmul.f32 %v46, %v2367
  %v2382 = vmul.f32 %v47, %v2371
  %v2383 = vmul.f32 %v48, %v2375
  %v2384 = vmul.f32 %v2355, %v2363
  %v2385 = vmul.f32 %v2356, %v2367
  %v2386 = vmul.f32 %v2357, %v2371
  %v2387 = vmul.f32 %v2358, %v2375
  %v2388 = vmul.f32 %v60, %v2363
  %v2389 = vmul.f32 %v61, %v2367
  %v2390 = vmul.f32 %v62, %v2371
  %v2391 = vmul.f32 %v63, %v2375
  %v2392 = vlaneseq
  %v2393 = vshrl.u32 %v2392, 7
  %v2394 = vsub.s32 1, %v2393
  %v2395 = vrot.slane %v31, %v2394
  %v2396 = vlaneseq
  %v2397 = vshrl.u32 %v2396, 7
  %v2398 = vsub.s32 1, %v2397
  %v2399 = vrot.slane %v32, %v2398
  %v2400 = vlaneseq
  %v2401 = vshrl.u32 %v2400, 7
  %v2402 = vsub.s32 1, %v2401
  %v2403 = vrot.slane %v33, %v2402
  %v2404 = vlaneseq
  %v2405 = vshrl.u32 %v2404, 7
  %v2406 = vsub.s32 1, %v2405
  %v2407 = vrot.slane %v34, %v2406
  %2412 = vrot.lane.b32.xlu0 %v2395, 64
  %v2413 = vpop.permute.xlu0 %2412
  %2414 = vrot.lane.b32.xlu0 %v2399, 64
  %v2415 = vpop.permute.xlu0 %2414
  %2416 = vrot.lane.b32.xlu0 %v2403, 64
  %v2417 = vpop.permute.xlu0 %2416
  %2418 = vrot.lane.b32.xlu0 %v2407, 64
  %v2419 = vpop.permute.xlu0 %2418
  %v2420 = vsel %vm165, %v2413, %v2415
  %v2421 = vsel %vm165, %v2415, %v2417
  %v2422 = vsel %vm165, %v2417, %v2419
  %v2428 = vmul.f32 %v2350, %v2413
  %v2429 = vmul.f32 %v2351, %v2420
  %v2430 = vmul.f32 %v2352, %v2421
  %v2431 = vmul.f32 %v2353, %v2422
  %v2432 = vmul.f32 %v2354, %v2419
  %v2433 = vmul.f32 %v45, %v2413
  %v2434 = vmul.f32 %v46, %v2420
  %v2435 = vmul.f32 %v47, %v2421
  %v2436 = vmul.f32 %v48, %v2422
  %v2437 = vmul.f32 %v49, %v2419
  %v2438 = vmul.f32 %v2355, %v2413
  %v2439 = vmul.f32 %v2356, %v2420
  %v2440 = vmul.f32 %v2357, %v2421
  %v2441 = vmul.f32 %v2358, %v2422
  %v2442 = vmul.f32 %v2359, %v2419
  %v2443 = vmul.f32 %v60, %v2413
  %v2444 = vmul.f32 %v61, %v2420
  %v2445 = vmul.f32 %v62, %v2421
  %v2446 = vmul.f32 %v63, %v2422
  %v2447 = vmul.f32 %v64, %v2419
  %2468 = vrot.lane.b32.xlu0 %v2428, 64
  %v2469 = vpop.permute.xlu0 %2468
  %2470 = vrot.lane.b32.xlu0 %v2429, 64
  %v2471 = vpop.permute.xlu0 %2470
  %2472 = vrot.lane.b32.xlu0 %v2430, 64
  %v2473 = vpop.permute.xlu0 %2472
  %2474 = vrot.lane.b32.xlu0 %v2431, 64
  %v2475 = vpop.permute.xlu0 %2474
  %2476 = vrot.lane.b32.xlu0 %v2432, 64
  %v2477 = vpop.permute.xlu0 %2476
  %2478 = vrot.lane.b32.xlu0 %v2433, 64
  %v2479 = vpop.permute.xlu0 %2478
  %2480 = vrot.lane.b32.xlu0 %v2434, 64
  %v2481 = vpop.permute.xlu0 %2480
  %2482 = vrot.lane.b32.xlu0 %v2435, 64
  %v2483 = vpop.permute.xlu0 %2482
  %2484 = vrot.lane.b32.xlu0 %v2436, 64
  %v2485 = vpop.permute.xlu0 %2484
  %2486 = vrot.lane.b32.xlu0 %v2437, 64
  %v2487 = vpop.permute.xlu0 %2486
  %2488 = vrot.lane.b32.xlu0 %v2438, 64
  %v2489 = vpop.permute.xlu0 %2488
  %2490 = vrot.lane.b32.xlu0 %v2439, 64
  %v2491 = vpop.permute.xlu0 %2490
  %2492 = vrot.lane.b32.xlu0 %v2440, 64
  %v2493 = vpop.permute.xlu0 %2492
  %2494 = vrot.lane.b32.xlu0 %v2441, 64
  %v2495 = vpop.permute.xlu0 %2494
  %2496 = vrot.lane.b32.xlu0 %v2442, 64
  %v2497 = vpop.permute.xlu0 %2496
  %2498 = vrot.lane.b32.xlu0 %v2443, 64
  %v2499 = vpop.permute.xlu0 %2498
  %2500 = vrot.lane.b32.xlu0 %v2444, 64
  %v2501 = vpop.permute.xlu0 %2500
  %2502 = vrot.lane.b32.xlu0 %v2445, 64
  %v2503 = vpop.permute.xlu0 %2502
  %2504 = vrot.lane.b32.xlu0 %v2446, 64
  %v2505 = vpop.permute.xlu0 %2504
  %2506 = vrot.lane.b32.xlu0 %v2447, 64
  %v2507 = vpop.permute.xlu0 %2506
  %v2508 = vsel %vm165, %v2469, %v2471
  %v2509 = vsel %vm165, %v2471, %v2473
  %v2510 = vsel %vm165, %v2473, %v2475
  %v2511 = vsel %vm165, %v2475, %v2477
  %v2512 = vsel %vm165, %v2479, %v2481
  %v2513 = vsel %vm165, %v2481, %v2483
  %v2514 = vsel %vm165, %v2483, %v2485
  %v2515 = vsel %vm165, %v2485, %v2487
  %v2516 = vsel %vm165, %v2489, %v2491
  %v2517 = vsel %vm165, %v2491, %v2493
  %v2518 = vsel %vm165, %v2493, %v2495
  %v2519 = vsel %vm165, %v2495, %v2497
  %v2520 = vsel %vm165, %v2499, %v2501
  %v2521 = vsel %vm165, %v2501, %v2503
  %v2522 = vsel %vm165, %v2503, %v2505
  %v2523 = vsel %vm165, %v2505, %v2507
  %v2540 = vadd.f32 %v2376, %v2508
  %v2541 = vadd.f32 %v2377, %v2509
  %v2542 = vadd.f32 %v2378, %v2510
  %v2543 = vadd.f32 %v2379, %v2511
  %v2544 = vadd.f32 %v2380, %v2512
  %v2545 = vadd.f32 %v2381, %v2513
  %v2546 = vadd.f32 %v2382, %v2514
  %v2547 = vadd.f32 %v2383, %v2515
  %v2548 = vadd.f32 %v2384, %v2516
  %v2549 = vadd.f32 %v2385, %v2517
  %v2550 = vadd.f32 %v2386, %v2518
  %v2551 = vadd.f32 %v2387, %v2519
  %v2552 = vadd.f32 %v2388, %v2520
  %v2553 = vadd.f32 %v2389, %v2521
  %v2554 = vadd.f32 %v2390, %v2522
  %v2555 = vadd.f32 %v2391, %v2523
  %v2556 = vlaneseq
  %v2557 = vshrl.u32 %v2556, 7
  %v2558 = vsub.s32 2, %v2557
  %v2559 = vrot.slane %v31, %v2558
  %v2560 = vlaneseq
  %v2561 = vshrl.u32 %v2560, 7
  %v2562 = vsub.s32 2, %v2561
  %v2563 = vrot.slane %v32, %v2562
  %v2564 = vlaneseq
  %v2565 = vshrl.u32 %v2564, 7
  %v2566 = vsub.s32 2, %v2565
  %v2567 = vrot.slane %v33, %v2566
  %v2568 = vlaneseq
  %v2569 = vshrl.u32 %v2568, 7
  %v2570 = vsub.s32 2, %v2569
  %v2571 = vrot.slane %v34, %v2570
  %v2572 = vmul.f32 %v2351, %v2559
  %v2573 = vmul.f32 %v2352, %v2563
  %v2574 = vmul.f32 %v2353, %v2567
  %v2575 = vmul.f32 %v2354, %v2571
  %v2576 = vmul.f32 %v46, %v2559
  %v2577 = vmul.f32 %v47, %v2563
  %v2578 = vmul.f32 %v48, %v2567
  %v2579 = vmul.f32 %v49, %v2571
  %v2580 = vmul.f32 %v2356, %v2559
  %v2581 = vmul.f32 %v2357, %v2563
  %v2582 = vmul.f32 %v2358, %v2567
  %v2583 = vmul.f32 %v2359, %v2571
  %v2584 = vmul.f32 %v61, %v2559
  %v2585 = vmul.f32 %v62, %v2563
  %v2586 = vmul.f32 %v63, %v2567
  %v2587 = vmul.f32 %v64, %v2571
  %v2588 = vadd.f32 %v2540, %v2572
  %v2589 = vadd.f32 %v2541, %v2573
  %v2590 = vadd.f32 %v2542, %v2574
  %v2591 = vadd.f32 %v2543, %v2575
  %v2592 = vadd.f32 %v2544, %v2576
  %v2593 = vadd.f32 %v2545, %v2577
  %v2594 = vadd.f32 %v2546, %v2578
  %v2595 = vadd.f32 %v2547, %v2579
  %v2596 = vadd.f32 %v2548, %v2580
  %v2597 = vadd.f32 %v2549, %v2581
  %v2598 = vadd.f32 %v2550, %v2582
  %v2599 = vadd.f32 %v2551, %v2583
  %v2600 = vadd.f32 %v2552, %v2584
  %v2601 = vadd.f32 %v2553, %v2585
  %v2602 = vadd.f32 %v2554, %v2586
  %v2603 = vadd.f32 %v2555, %v2587
  %v2604 = vlaneseq
  %v2605 = vshrl.u32 %v2604, 7
  %v2606 = vsub.s32 3, %v2605
  %v2607 = vrot.slane %v31, %v2606
  %v2608 = vlaneseq
  %v2609 = vshrl.u32 %v2608, 7
  %v2610 = vsub.s32 3, %v2609
  %v2611 = vrot.slane %v32, %v2610
  %v2612 = vlaneseq
  %v2613 = vshrl.u32 %v2612, 7
  %v2614 = vsub.s32 3, %v2613
  %v2615 = vrot.slane %v33, %v2614
  %v2616 = vlaneseq
  %v2617 = vshrl.u32 %v2616, 7
  %v2618 = vsub.s32 3, %v2617
  %v2619 = vrot.slane %v34, %v2618
  %v2620 = vmul.f32 %v619, %v2607
  %v2621 = vmul.f32 %v620, %v2611
  %v2622 = vmul.f32 %v621, %v2615
  %v2623 = vmul.f32 %v622, %v2619
  %v2624 = vmul.f32 %v45, %v2607
  %v2625 = vmul.f32 %v46, %v2611
  %v2626 = vmul.f32 %v47, %v2615
  %v2627 = vmul.f32 %v48, %v2619
  %v2628 = vmul.f32 %v624, %v2607
  %v2629 = vmul.f32 %v625, %v2611
  %v2630 = vmul.f32 %v626, %v2615
  %v2631 = vmul.f32 %v627, %v2619
  %v2632 = vmul.f32 %v629, %v2607
  %v2633 = vmul.f32 %v630, %v2611
  %v2634 = vmul.f32 %v631, %v2615
  %v2635 = vmul.f32 %v632, %v2619
  %v2636 = vmul.f32 %v60, %v2607
  %v2637 = vmul.f32 %v61, %v2611
  %v2638 = vmul.f32 %v62, %v2615
  %v2639 = vmul.f32 %v63, %v2619
  %v2640 = vmul.f32 %v634, %v2607
  %v2641 = vmul.f32 %v635, %v2611
  %v2642 = vmul.f32 %v636, %v2615
  %v2643 = vmul.f32 %v637, %v2619
  %v2668 = vrot.slane %v2620, 2
  %v2669 = vrot.slane %v2624, 2
  %v2670 = vsel %vm1542, %v2668, %v2669
  %v2671 = vrot.slane %v2621, 2
  %v2672 = vrot.slane %v2625, 2
  %v2673 = vsel %vm1542, %v2671, %v2672
  %v2674 = vrot.slane %v2622, 2
  %v2675 = vrot.slane %v2626, 2
  %v2676 = vsel %vm1542, %v2674, %v2675
  %v2677 = vrot.slane %v2623, 2
  %v2678 = vrot.slane %v2627, 2
  %v2679 = vsel %vm1542, %v2677, %v2678
  %v2680 = vrot.slane %v2628, 2
  %v2681 = vsel %vm1542, %v2669, %v2680
  %v2682 = vrot.slane %v2629, 2
  %v2683 = vsel %vm1542, %v2672, %v2682
  %v2684 = vrot.slane %v2630, 2
  %v2685 = vsel %vm1542, %v2675, %v2684
  %v2686 = vrot.slane %v2631, 2
  %v2687 = vsel %vm1542, %v2678, %v2686
  %v2688 = vrot.slane %v2632, 2
  %v2689 = vrot.slane %v2636, 2
  %v2690 = vsel %vm1542, %v2688, %v2689
  %v2691 = vrot.slane %v2633, 2
  %v2692 = vrot.slane %v2637, 2
  %v2693 = vsel %vm1542, %v2691, %v2692
  %v2694 = vrot.slane %v2634, 2
  %v2695 = vrot.slane %v2638, 2
  %v2696 = vsel %vm1542, %v2694, %v2695
  %v2697 = vrot.slane %v2635, 2
  %v2698 = vrot.slane %v2639, 2
  %v2699 = vsel %vm1542, %v2697, %v2698
  %v2700 = vrot.slane %v2640, 2
  %v2701 = vsel %vm1542, %v2689, %v2700
  %v2702 = vrot.slane %v2641, 2
  %v2703 = vsel %vm1542, %v2692, %v2702
  %v2704 = vrot.slane %v2642, 2
  %v2705 = vsel %vm1542, %v2695, %v2704
  %v2706 = vrot.slane %v2643, 2
  %v2707 = vsel %vm1542, %v2698, %v2706
  %v2724 = vadd.f32 %v2588, %v2670
  %v2725 = vadd.f32 %v2589, %v2673
  %v2726 = vadd.f32 %v2590, %v2676
  %v2727 = vadd.f32 %v2591, %v2679
  %v2728 = vadd.f32 %v2592, %v2681
  %v2729 = vadd.f32 %v2593, %v2683
  %v2730 = vadd.f32 %v2594, %v2685
  %v2731 = vadd.f32 %v2595, %v2687
  %v2732 = vadd.f32 %v2596, %v2690
  %v2733 = vadd.f32 %v2597, %v2693
  %v2734 = vadd.f32 %v2598, %v2696
  %v2735 = vadd.f32 %v2599, %v2699
  %v2736 = vadd.f32 %v2600, %v2701
  %v2737 = vadd.f32 %v2601, %v2703
  %v2738 = vadd.f32 %v2602, %v2705
  %v2739 = vadd.f32 %v2603, %v2707
  %v2740 = vlaneseq
  %v2741 = vshrl.u32 %v2740, 7
  %v2742 = vsub.s32 4, %v2741
  %v2743 = vrot.slane %v31, %v2742
  %v2744 = vlaneseq
  %v2745 = vshrl.u32 %v2744, 7
  %v2746 = vsub.s32 4, %v2745
  %v2747 = vrot.slane %v32, %v2746
  %v2748 = vlaneseq
  %v2749 = vshrl.u32 %v2748, 7
  %v2750 = vsub.s32 4, %v2749
  %v2751 = vrot.slane %v33, %v2750
  %v2752 = vlaneseq
  %v2753 = vshrl.u32 %v2752, 7
  %v2754 = vsub.s32 4, %v2753
  %v2755 = vrot.slane %v34, %v2754
  %2760 = vrot.lane.b32.xlu0 %v2743, 64
  %v2761 = vpop.permute.xlu0 %2760
  %2762 = vrot.lane.b32.xlu0 %v2747, 64
  %v2763 = vpop.permute.xlu0 %2762
  %2764 = vrot.lane.b32.xlu0 %v2751, 64
  %v2765 = vpop.permute.xlu0 %2764
  %2766 = vrot.lane.b32.xlu0 %v2755, 64
  %v2767 = vpop.permute.xlu0 %2766
  %v2768 = vsel %vm165, %v2761, %v2763
  %v2769 = vsel %vm165, %v2763, %v2765
  %v2770 = vsel %vm165, %v2765, %v2767
  %v2776 = vmul.f32 %v619, %v2761
  %v2777 = vmul.f32 %v620, %v2768
  %v2778 = vmul.f32 %v621, %v2769
  %v2779 = vmul.f32 %v622, %v2770
  %v2780 = vmul.f32 %v623, %v2767
  %v2781 = vmul.f32 %v45, %v2761
  %v2782 = vmul.f32 %v46, %v2768
  %v2783 = vmul.f32 %v47, %v2769
  %v2784 = vmul.f32 %v48, %v2770
  %v2785 = vmul.f32 %v49, %v2767
  %v2786 = vmul.f32 %v624, %v2761
  %v2787 = vmul.f32 %v625, %v2768
  %v2788 = vmul.f32 %v626, %v2769
  %v2789 = vmul.f32 %v627, %v2770
  %v2790 = vmul.f32 %v628, %v2767
  %v2791 = vmul.f32 %v629, %v2761
  %v2792 = vmul.f32 %v630, %v2768
  %v2793 = vmul.f32 %v631, %v2769
  %v2794 = vmul.f32 %v632, %v2770
  %v2795 = vmul.f32 %v633, %v2767
  %v2796 = vmul.f32 %v60, %v2761
  %v2797 = vmul.f32 %v61, %v2768
  %v2798 = vmul.f32 %v62, %v2769
  %v2799 = vmul.f32 %v63, %v2770
  %v2800 = vmul.f32 %v64, %v2767
  %v2801 = vmul.f32 %v634, %v2761
  %v2802 = vmul.f32 %v635, %v2768
  %v2803 = vmul.f32 %v636, %v2769
  %v2804 = vmul.f32 %v637, %v2770
  %v2805 = vmul.f32 %v638, %v2767
  %v2836 = vrot.slane %v2776, 2
  %v2837 = vrot.slane %v2781, 2
  %v2838 = vsel %vm1542, %v2836, %v2837
  %v2839 = vrot.slane %v2777, 2
  %v2840 = vrot.slane %v2782, 2
  %v2841 = vsel %vm1542, %v2839, %v2840
  %v2842 = vrot.slane %v2778, 2
  %v2843 = vrot.slane %v2783, 2
  %v2844 = vsel %vm1542, %v2842, %v2843
  %v2845 = vrot.slane %v2779, 2
  %v2846 = vrot.slane %v2784, 2
  %v2847 = vsel %vm1542, %v2845, %v2846
  %v2848 = vrot.slane %v2780, 2
  %v2849 = vrot.slane %v2785, 2
  %v2850 = vsel %vm1542, %v2848, %v2849
  %v2851 = vrot.slane %v2786, 2
  %v2852 = vsel %vm1542, %v2837, %v2851
  %v2853 = vrot.slane %v2787, 2
  %v2854 = vsel %vm1542, %v2840, %v2853
  %v2855 = vrot.slane %v2788, 2
  %v2856 = vsel %vm1542, %v2843, %v2855
  %v2857 = vrot.slane %v2789, 2
  %v2858 = vsel %vm1542, %v2846, %v2857
  %v2859 = vrot.slane %v2790, 2
  %v2860 = vsel %vm1542, %v2849, %v2859
  %v2861 = vrot.slane %v2791, 2
  %v2862 = vrot.slane %v2796, 2
  %v2863 = vsel %vm1542, %v2861, %v2862
  %v2864 = vrot.slane %v2792, 2
  %v2865 = vrot.slane %v2797, 2
  %v2866 = vsel %vm1542, %v2864, %v2865
  %v2867 = vrot.slane %v2793, 2
  %v2868 = vrot.slane %v2798, 2
  %v2869 = vsel %vm1542, %v2867, %v2868
  %v2870 = vrot.slane %v2794, 2
  %v2871 = vrot.slane %v2799, 2
  %v2872 = vsel %vm1542, %v2870, %v2871
  %v2873 = vrot.slane %v2795, 2
  %v2874 = vrot.slane %v2800, 2
  %v2875 = vsel %vm1542, %v2873, %v2874
  %v2876 = vrot.slane %v2801, 2
  %v2877 = vsel %vm1542, %v2862, %v2876
  %v2878 = vrot.slane %v2802, 2
  %v2879 = vsel %vm1542, %v2865, %v2878
  %v2880 = vrot.slane %v2803, 2
  %v2881 = vsel %vm1542, %v2868, %v2880
  %v2882 = vrot.slane %v2804, 2
  %v2883 = vsel %vm1542, %v2871, %v2882
  %v2884 = vrot.slane %v2805, 2
  %v2885 = vsel %vm1542, %v2874, %v2884
  %2886 = vrot.lane.b32.xlu0 %v2838, 64
  %v2887 = vpop.permute.xlu0 %2886
  %2888 = vrot.lane.b32.xlu0 %v2841, 64
  %v2889 = vpop.permute.xlu0 %2888
  %2890 = vrot.lane.b32.xlu0 %v2844, 64
  %v2891 = vpop.permute.xlu0 %2890
  %2892 = vrot.lane.b32.xlu0 %v2847, 64
  %v2893 = vpop.permute.xlu0 %2892
  %2894 = vrot.lane.b32.xlu0 %v2850, 64
  %v2895 = vpop.permute.xlu0 %2894
  %2896 = vrot.lane.b32.xlu0 %v2852, 64
  %v2897 = vpop.permute.xlu0 %2896
  %2898 = vrot.lane.b32.xlu0 %v2854, 64
  %v2899 = vpop.permute.xlu0 %2898
  %2900 = vrot.lane.b32.xlu0 %v2856, 64
  %v2901 = vpop.permute.xlu0 %2900
  %2902 = vrot.lane.b32.xlu0 %v2858, 64
  %v2903 = vpop.permute.xlu0 %2902
  %2904 = vrot.lane.b32.xlu0 %v2860, 64
  %v2905 = vpop.permute.xlu0 %2904
  %2906 = vrot.lane.b32.xlu0 %v2863, 64
  %v2907 = vpop.permute.xlu0 %2906
  %2908 = vrot.lane.b32.xlu0 %v2866, 64
  %v2909 = vpop.permute.xlu0 %2908
  %2910 = vrot.lane.b32.xlu0 %v2869, 64
  %v2911 = vpop.permute.xlu0 %2910
  %2912 = vrot.lane.b32.xlu0 %v2872, 64
  %v2913 = vpop.permute.xlu0 %2912
  %2914 = vrot.lane.b32.xlu0 %v2875, 64
  %v2915 = vpop.permute.xlu0 %2914
  %2916 = vrot.lane.b32.xlu0 %v2877, 64
  %v2917 = vpop.permute.xlu0 %2916
  %2918 = vrot.lane.b32.xlu0 %v2879, 64
  %v2919 = vpop.permute.xlu0 %2918
  %2920 = vrot.lane.b32.xlu0 %v2881, 64
  %v2921 = vpop.permute.xlu0 %2920
  %2922 = vrot.lane.b32.xlu0 %v2883, 64
  %v2923 = vpop.permute.xlu0 %2922
  %2924 = vrot.lane.b32.xlu0 %v2885, 64
  %v2925 = vpop.permute.xlu0 %2924
  %v2926 = vsel %vm165, %v2887, %v2889
  %v2927 = vsel %vm165, %v2889, %v2891
  %v2928 = vsel %vm165, %v2891, %v2893
  %v2929 = vsel %vm165, %v2893, %v2895
  %v2930 = vsel %vm165, %v2897, %v2899
  %v2931 = vsel %vm165, %v2899, %v2901
  %v2932 = vsel %vm165, %v2901, %v2903
  %v2933 = vsel %vm165, %v2903, %v2905
  %v2934 = vsel %vm165, %v2907, %v2909
  %v2935 = vsel %vm165, %v2909, %v2911
  %v2936 = vsel %vm165, %v2911, %v2913
  %v2937 = vsel %vm165, %v2913, %v2915
  %v2938 = vsel %vm165, %v2917, %v2919
  %v2939 = vsel %vm165, %v2919, %v2921
  %v2940 = vsel %vm165, %v2921, %v2923
  %v2941 = vsel %vm165, %v2923, %v2925
  %v2958 = vadd.f32 %v2724, %v2926
  %v2959 = vadd.f32 %v2725, %v2927
  %v2960 = vadd.f32 %v2726, %v2928
  %v2961 = vadd.f32 %v2727, %v2929
  %v2962 = vadd.f32 %v2728, %v2930
  %v2963 = vadd.f32 %v2729, %v2931
  %v2964 = vadd.f32 %v2730, %v2932
  %v2965 = vadd.f32 %v2731, %v2933
  %v2966 = vadd.f32 %v2732, %v2934
  %v2967 = vadd.f32 %v2733, %v2935
  %v2968 = vadd.f32 %v2734, %v2936
  %v2969 = vadd.f32 %v2735, %v2937
  %v2970 = vadd.f32 %v2736, %v2938
  %v2971 = vadd.f32 %v2737, %v2939
  %v2972 = vadd.f32 %v2738, %v2940
  %v2973 = vadd.f32 %v2739, %v2941
  %v2974 = vlaneseq
  %v2975 = vshrl.u32 %v2974, 7
  %v2976 = vsub.s32 5, %v2975
  %v2977 = vrot.slane %v31, %v2976
  %v2978 = vlaneseq
  %v2979 = vshrl.u32 %v2978, 7
  %v2980 = vsub.s32 5, %v2979
  %v2981 = vrot.slane %v32, %v2980
  %v2982 = vlaneseq
  %v2983 = vshrl.u32 %v2982, 7
  %v2984 = vsub.s32 5, %v2983
  %v2985 = vrot.slane %v33, %v2984
  %v2986 = vlaneseq
  %v2987 = vshrl.u32 %v2986, 7
  %v2988 = vsub.s32 5, %v2987
  %v2989 = vrot.slane %v34, %v2988
  %v2990 = vmul.f32 %v620, %v2977
  %v2991 = vmul.f32 %v621, %v2981
  %v2992 = vmul.f32 %v622, %v2985
  %v2993 = vmul.f32 %v623, %v2989
  %v2994 = vmul.f32 %v46, %v2977
  %v2995 = vmul.f32 %v47, %v2981
  %v2996 = vmul.f32 %v48, %v2985
  %v2997 = vmul.f32 %v49, %v2989
  %v2998 = vmul.f32 %v625, %v2977
  %v2999 = vmul.f32 %v626, %v2981
  %v3000 = vmul.f32 %v627, %v2985
  %v3001 = vmul.f32 %v628, %v2989
  %v3002 = vmul.f32 %v630, %v2977
  %v3003 = vmul.f32 %v631, %v2981
  %v3004 = vmul.f32 %v632, %v2985
  %v3005 = vmul.f32 %v633, %v2989
  %v3006 = vmul.f32 %v61, %v2977
  %v3007 = vmul.f32 %v62, %v2981
  %v3008 = vmul.f32 %v63, %v2985
  %v3009 = vmul.f32 %v64, %v2989
  %v3010 = vmul.f32 %v635, %v2977
  %v3011 = vmul.f32 %v636, %v2981
  %v3012 = vmul.f32 %v637, %v2985
  %v3013 = vmul.f32 %v638, %v2989
  %v3038 = vrot.slane %v2990, 2
  %v3039 = vrot.slane %v2994, 2
  %v3040 = vsel %vm1542, %v3038, %v3039
  %v3041 = vrot.slane %v2991, 2
  %v3042 = vrot.slane %v2995, 2
  %v3043 = vsel %vm1542, %v3041, %v3042
  %v3044 = vrot.slane %v2992, 2
  %v3045 = vrot.slane %v2996, 2
  %v3046 = vsel %vm1542, %v3044, %v3045
  %v3047 = vrot.slane %v2993, 2
  %v3048 = vrot.slane %v2997, 2
  %v3049 = vsel %vm1542, %v3047, %v3048
  %v3050 = vrot.slane %v2998, 2
  %v3051 = vsel %vm1542, %v3039, %v3050
  %v3052 = vrot.slane %v2999, 2
  %v3053 = vsel %vm1542, %v3042, %v3052
  %v3054 = vrot.slane %v3000, 2
  %v3055 = vsel %vm1542, %v3045, %v3054
  %v3056 = vrot.slane %v3001, 2
  %v3057 = vsel %vm1542, %v3048, %v3056
  %v3058 = vrot.slane %v3002, 2
  %v3059 = vrot.slane %v3006, 2
  %v3060 = vsel %vm1542, %v3058, %v3059
  %v3061 = vrot.slane %v3003, 2
  %v3062 = vrot.slane %v3007, 2
  %v3063 = vsel %vm1542, %v3061, %v3062
  %v3064 = vrot.slane %v3004, 2
  %v3065 = vrot.slane %v3008, 2
  %v3066 = vsel %vm1542, %v3064, %v3065
  %v3067 = vrot.slane %v3005, 2
  %v3068 = vrot.slane %v3009, 2
  %v3069 = vsel %vm1542, %v3067, %v3068
  %v3070 = vrot.slane %v3010, 2
  %v3071 = vsel %vm1542, %v3059, %v3070
  %v3072 = vrot.slane %v3011, 2
  %v3073 = vsel %vm1542, %v3062, %v3072
  %v3074 = vrot.slane %v3012, 2
  %v3075 = vsel %vm1542, %v3065, %v3074
  %v3076 = vrot.slane %v3013, 2
  %v3077 = vsel %vm1542, %v3068, %v3076
  %v3094 = vadd.f32 %v2958, %v3040
  %v3095 = vadd.f32 %v2959, %v3043
  %v3096 = vadd.f32 %v2960, %v3046
  %v3097 = vadd.f32 %v2961, %v3049
  %v3098 = vadd.f32 %v2962, %v3051
  %v3099 = vadd.f32 %v2963, %v3053
  %v3100 = vadd.f32 %v2964, %v3055
  %v3101 = vadd.f32 %v2965, %v3057
  %v3102 = vadd.f32 %v2966, %v3060
  %v3103 = vadd.f32 %v2967, %v3063
  %v3104 = vadd.f32 %v2968, %v3066
  %v3105 = vadd.f32 %v2969, %v3069
  %v3106 = vadd.f32 %v2970, %v3071
  %v3107 = vadd.f32 %v2971, %v3073
  %v3108 = vadd.f32 %v2972, %v3075
  %v3109 = vadd.f32 %v2973, %v3077
  %v3110 = vld [vmem:[%s0] sm:$0xf0]
  %v3111 = vld [vmem:[%s0 + $0x8] sm:$0xf0]
  %v3112 = vld [vmem:[%s0 + $0x10] sm:$0xf0]
  %v3113 = vld [vmem:[%s0 + $0x18] sm:$0xf0]
  %v3114 = vld [vmem:[%s0 + $0x20] sm:$0xf0]
  %v3115 = vld [vmem:[%s0 + $0x50] sm:$0xf]
  %v3116 = vld [vmem:[%s0 + $0x58] sm:$0xf]
  %v3117 = vld [vmem:[%s0 + $0x60] sm:$0xf]
  %v3118 = vld [vmem:[%s0 + $0x68] sm:$0xf]
  %v3119 = vld [vmem:[%s0 + $0x70] sm:$0xf]
  %v3120 = vld [vmem:[%s0 + $0x78] sm:$0xf0]
  %v3121 = vld [vmem:[%s0 + $0x80] sm:$0xf0]
  %v3122 = vld [vmem:[%s0 + $0x88] sm:$0xf0]
  %v3123 = vld [vmem:[%s0 + $0x90] sm:$0xf0]
  %v3124 = vld [vmem:[%s0 + $0x98] sm:$0xf0]
  %v3125 = vld [vmem:[%s0 + $0xc8] sm:$0xf]
  %v3126 = vld [vmem:[%s0 + $0xd0] sm:$0xf]
  %v3127 = vld [vmem:[%s0 + $0xd8] sm:$0xf]
  %v3128 = vld [vmem:[%s0 + $0xe0] sm:$0xf]
  %v3129 = vld [vmem:[%s0 + $0xe8] sm:$0xf]
  %v3130 = vlaneseq
  %v3131 = vshrl.u32 %v3130, 7
  %v3132 = vsub.s32 6, %v3131
  %v3133 = vrot.slane %v31, %v3132
  %v3134 = vlaneseq
  %v3135 = vshrl.u32 %v3134, 7
  %v3136 = vsub.s32 6, %v3135
  %v3137 = vrot.slane %v32, %v3136
  %v3138 = vlaneseq
  %v3139 = vshrl.u32 %v3138, 7
  %v3140 = vsub.s32 6, %v3139
  %v3141 = vrot.slane %v33, %v3140
  %v3142 = vlaneseq
  %v3143 = vshrl.u32 %v3142, 7
  %v3144 = vsub.s32 6, %v3143
  %v3145 = vrot.slane %v34, %v3144
  %v3146 = vmul.f32 %v3110, %v3133
  %v3147 = vmul.f32 %v3111, %v3137
  %v3148 = vmul.f32 %v3112, %v3141
  %v3149 = vmul.f32 %v3113, %v3145
  %v3150 = vmul.f32 %v45, %v3133
  %v3151 = vmul.f32 %v46, %v3137
  %v3152 = vmul.f32 %v47, %v3141
  %v3153 = vmul.f32 %v48, %v3145
  %v3154 = vmul.f32 %v3115, %v3133
  %v3155 = vmul.f32 %v3116, %v3137
  %v3156 = vmul.f32 %v3117, %v3141
  %v3157 = vmul.f32 %v3118, %v3145
  %v3158 = vmul.f32 %v3120, %v3133
  %v3159 = vmul.f32 %v3121, %v3137
  %v3160 = vmul.f32 %v3122, %v3141
  %v3161 = vmul.f32 %v3123, %v3145
  %v3162 = vmul.f32 %v60, %v3133
  %v3163 = vmul.f32 %v61, %v3137
  %v3164 = vmul.f32 %v62, %v3141
  %v3165 = vmul.f32 %v63, %v3145
  %v3166 = vmul.f32 %v3125, %v3133
  %v3167 = vmul.f32 %v3126, %v3137
  %v3168 = vmul.f32 %v3127, %v3141
  %v3169 = vmul.f32 %v3128, %v3145
  %vm3194 = vcmask 1043456
  %v3195 = vrot.slane %v3146, 4
  %v3196 = vrot.slane %v3150, 4
  %v3197 = vsel %vm3194, %v3195, %v3196
  %v3198 = vrot.slane %v3147, 4
  %v3199 = vrot.slane %v3151, 4
  %v3200 = vsel %vm3194, %v3198, %v3199
  %v3201 = vrot.slane %v3148, 4
  %v3202 = vrot.slane %v3152, 4
  %v3203 = vsel %vm3194, %v3201, %v3202
  %v3204 = vrot.slane %v3149, 4
  %v3205 = vrot.slane %v3153, 4
  %v3206 = vsel %vm3194, %v3204, %v3205
  %v3207 = vrot.slane %v3154, 4
  %v3208 = vsel %vm3194, %v3196, %v3207
  %v3209 = vrot.slane %v3155, 4
  %v3210 = vsel %vm3194, %v3199, %v3209
  %v3211 = vrot.slane %v3156, 4
  %v3212 = vsel %vm3194, %v3202, %v3211
  %v3213 = vrot.slane %v3157, 4
  %v3214 = vsel %vm3194, %v3205, %v3213
  %v3215 = vrot.slane %v3158, 4
  %v3216 = vrot.slane %v3162, 4
  %v3217 = vsel %vm3194, %v3215, %v3216
  %v3218 = vrot.slane %v3159, 4
  %v3219 = vrot.slane %v3163, 4
  %v3220 = vsel %vm3194, %v3218, %v3219
  %v3221 = vrot.slane %v3160, 4
  %v3222 = vrot.slane %v3164, 4
  %v3223 = vsel %vm3194, %v3221, %v3222
  %v3224 = vrot.slane %v3161, 4
  %v3225 = vrot.slane %v3165, 4
  %v3226 = vsel %vm3194, %v3224, %v3225
  %v3227 = vrot.slane %v3166, 4
  %v3228 = vsel %vm3194, %v3216, %v3227
  %v3229 = vrot.slane %v3167, 4
  %v3230 = vsel %vm3194, %v3219, %v3229
  %v3231 = vrot.slane %v3168, 4
  %v3232 = vsel %vm3194, %v3222, %v3231
  %v3233 = vrot.slane %v3169, 4
  %v3234 = vsel %vm3194, %v3225, %v3233
  %v3251 = vadd.f32 %v3094, %v3197
  %v3252 = vadd.f32 %v3095, %v3200
  %v3253 = vadd.f32 %v3096, %v3203
  %v3254 = vadd.f32 %v3097, %v3206
  %v3255 = vadd.f32 %v3098, %v3208
  %v3256 = vadd.f32 %v3099, %v3210
  %v3257 = vadd.f32 %v3100, %v3212
  %v3258 = vadd.f32 %v3101, %v3214
  %v3259 = vadd.f32 %v3102, %v3217
  %v3260 = vadd.f32 %v3103, %v3220
  %v3261 = vadd.f32 %v3104, %v3223
  %v3262 = vadd.f32 %v3105, %v3226
  %v3263 = vadd.f32 %v3106, %v3228
  %v3264 = vadd.f32 %v3107, %v3230
  %v3265 = vadd.f32 %v3108, %v3232
  %v3266 = vadd.f32 %v3109, %v3234
  %v3267 = vlaneseq
  %v3268 = vshrl.u32 %v3267, 7
  %v3269 = vsub.s32 7, %v3268
  %v3270 = vrot.slane %v31, %v3269
  %v3271 = vlaneseq
  %v3272 = vshrl.u32 %v3271, 7
  %v3273 = vsub.s32 7, %v3272
  %v3274 = vrot.slane %v32, %v3273
  %v3275 = vlaneseq
  %v3276 = vshrl.u32 %v3275, 7
  %v3277 = vsub.s32 7, %v3276
  %v3278 = vrot.slane %v33, %v3277
  %v3279 = vlaneseq
  %v3280 = vshrl.u32 %v3279, 7
  %v3281 = vsub.s32 7, %v3280
  %v3282 = vrot.slane %v34, %v3281
  %3287 = vrot.lane.b32.xlu0 %v3270, 64
  %v3288 = vpop.permute.xlu0 %3287
  %3289 = vrot.lane.b32.xlu0 %v3274, 64
  %v3290 = vpop.permute.xlu0 %3289
  %3291 = vrot.lane.b32.xlu0 %v3278, 64
  %v3292 = vpop.permute.xlu0 %3291
  %3293 = vrot.lane.b32.xlu0 %v3282, 64
  %v3294 = vpop.permute.xlu0 %3293
  %v3295 = vsel %vm165, %v3288, %v3290
  %v3296 = vsel %vm165, %v3290, %v3292
  %v3297 = vsel %vm165, %v3292, %v3294
  %v3303 = vmul.f32 %v3110, %v3288
  %v3304 = vmul.f32 %v3111, %v3295
  %v3305 = vmul.f32 %v3112, %v3296
  %v3306 = vmul.f32 %v3113, %v3297
  %v3307 = vmul.f32 %v3114, %v3294
  %v3308 = vmul.f32 %v45, %v3288
  %v3309 = vmul.f32 %v46, %v3295
  %v3310 = vmul.f32 %v47, %v3296
  %v3311 = vmul.f32 %v48, %v3297
  %v3312 = vmul.f32 %v49, %v3294
  %v3313 = vmul.f32 %v3115, %v3288
  %v3314 = vmul.f32 %v3116, %v3295
  %v3315 = vmul.f32 %v3117, %v3296
  %v3316 = vmul.f32 %v3118, %v3297
  %v3317 = vmul.f32 %v3119, %v3294
  %v3318 = vmul.f32 %v3120, %v3288
  %v3319 = vmul.f32 %v3121, %v3295
  %v3320 = vmul.f32 %v3122, %v3296
  %v3321 = vmul.f32 %v3123, %v3297
  %v3322 = vmul.f32 %v3124, %v3294
  %v3323 = vmul.f32 %v60, %v3288
  %v3324 = vmul.f32 %v61, %v3295
  %v3325 = vmul.f32 %v62, %v3296
  %v3326 = vmul.f32 %v63, %v3297
  %v3327 = vmul.f32 %v64, %v3294
  %v3328 = vmul.f32 %v3125, %v3288
  %v3329 = vmul.f32 %v3126, %v3295
  %v3330 = vmul.f32 %v3127, %v3296
  %v3331 = vmul.f32 %v3128, %v3297
  %v3332 = vmul.f32 %v3129, %v3294
  %v3363 = vrot.slane %v3303, 4
  %v3364 = vrot.slane %v3308, 4
  %v3365 = vsel %vm3194, %v3363, %v3364
  %v3366 = vrot.slane %v3304, 4
  %v3367 = vrot.slane %v3309, 4
  %v3368 = vsel %vm3194, %v3366, %v3367
  %v3369 = vrot.slane %v3305, 4
  %v3370 = vrot.slane %v3310, 4
  %v3371 = vsel %vm3194, %v3369, %v3370
  %v3372 = vrot.slane %v3306, 4
  %v3373 = vrot.slane %v3311, 4
  %v3374 = vsel %vm3194, %v3372, %v3373
  %v3375 = vrot.slane %v3307, 4
  %v3376 = vrot.slane %v3312, 4
  %v3377 = vsel %vm3194, %v3375, %v3376
  %v3378 = vrot.slane %v3313, 4
  %v3379 = vsel %vm3194, %v3364, %v3378
  %v3380 = vrot.slane %v3314, 4
  %v3381 = vsel %vm3194, %v3367, %v3380
  %v3382 = vrot.slane %v3315, 4
  %v3383 = vsel %vm3194, %v3370, %v3382
  %v3384 = vrot.slane %v3316, 4
  %v3385 = vsel %vm3194, %v3373, %v3384
  %v3386 = vrot.slane %v3317, 4
  %v3387 = vsel %vm3194, %v3376, %v3386
  %v3388 = vrot.slane %v3318, 4
  %v3389 = vrot.slane %v3323, 4
  %v3390 = vsel %vm3194, %v3388, %v3389
  %v3391 = vrot.slane %v3319, 4
  %v3392 = vrot.slane %v3324, 4
  %v3393 = vsel %vm3194, %v3391, %v3392
  %v3394 = vrot.slane %v3320, 4
  %v3395 = vrot.slane %v3325, 4
  %v3396 = vsel %vm3194, %v3394, %v3395
  %v3397 = vrot.slane %v3321, 4
  %v3398 = vrot.slane %v3326, 4
  %v3399 = vsel %vm3194, %v3397, %v3398
  %v3400 = vrot.slane %v3322, 4
  %v3401 = vrot.slane %v3327, 4
  %v3402 = vsel %vm3194, %v3400, %v3401
  %v3403 = vrot.slane %v3328, 4
  %v3404 = vsel %vm3194, %v3389, %v3403
  %v3405 = vrot.slane %v3329, 4
  %v3406 = vsel %vm3194, %v3392, %v3405
  %v3407 = vrot.slane %v3330, 4
  %v3408 = vsel %vm3194, %v3395, %v3407
  %v3409 = vrot.slane %v3331, 4
  %v3410 = vsel %vm3194, %v3398, %v3409
  %v3411 = vrot.slane %v3332, 4
  %v3412 = vsel %vm3194, %v3401, %v3411
  %3413 = vrot.lane.b32.xlu0 %v3365, 64
  %v3414 = vpop.permute.xlu0 %3413
  %3415 = vrot.lane.b32.xlu0 %v3368, 64
  %v3416 = vpop.permute.xlu0 %3415
  %3417 = vrot.lane.b32.xlu0 %v3371, 64
  %v3418 = vpop.permute.xlu0 %3417
  %3419 = vrot.lane.b32.xlu0 %v3374, 64
  %v3420 = vpop.permute.xlu0 %3419
  %3421 = vrot.lane.b32.xlu0 %v3377, 64
  %v3422 = vpop.permute.xlu0 %3421
  %3423 = vrot.lane.b32.xlu0 %v3379, 64
  %v3424 = vpop.permute.xlu0 %3423
  %3425 = vrot.lane.b32.xlu0 %v3381, 64
  %v3426 = vpop.permute.xlu0 %3425
  %3427 = vrot.lane.b32.xlu0 %v3383, 64
  %v3428 = vpop.permute.xlu0 %3427
  %3429 = vrot.lane.b32.xlu0 %v3385, 64
  %v3430 = vpop.permute.xlu0 %3429
  %3431 = vrot.lane.b32.xlu0 %v3387, 64
  %v3432 = vpop.permute.xlu0 %3431
  %3433 = vrot.lane.b32.xlu0 %v3390, 64
  %v3434 = vpop.permute.xlu0 %3433
  %3435 = vrot.lane.b32.xlu0 %v3393, 64
  %v3436 = vpop.permute.xlu0 %3435
  %3437 = vrot.lane.b32.xlu0 %v3396, 64
  %v3438 = vpop.permute.xlu0 %3437
  %3439 = vrot.lane.b32.xlu0 %v3399, 64
  %v3440 = vpop.permute.xlu0 %3439
  %3441 = vrot.lane.b32.xlu0 %v3402, 64
  %v3442 = vpop.permute.xlu0 %3441
  %3443 = vrot.lane.b32.xlu0 %v3404, 64
  %v3444 = vpop.permute.xlu0 %3443
  %3445 = vrot.lane.b32.xlu0 %v3406, 64
  %v3446 = vpop.permute.xlu0 %3445
  %3447 = vrot.lane.b32.xlu0 %v3408, 64
  %v3448 = vpop.permute.xlu0 %3447
  %3449 = vrot.lane.b32.xlu0 %v3410, 64
  %v3450 = vpop.permute.xlu0 %3449
  %3451 = vrot.lane.b32.xlu0 %v3412, 64
  %v3452 = vpop.permute.xlu0 %3451
  %v3453 = vsel %vm165, %v3414, %v3416
  %v3454 = vsel %vm165, %v3416, %v3418
  %v3455 = vsel %vm165, %v3418, %v3420
  %v3456 = vsel %vm165, %v3420, %v3422
  %v3457 = vsel %vm165, %v3424, %v3426
  %v3458 = vsel %vm165, %v3426, %v3428
  %v3459 = vsel %vm165, %v3428, %v3430
  %v3460 = vsel %vm165, %v3430, %v3432
  %v3461 = vsel %vm165, %v3434, %v3436
  %v3462 = vsel %vm165, %v3436, %v3438
  %v3463 = vsel %vm165, %v3438, %v3440
  %v3464 = vsel %vm165, %v3440, %v3442
  %v3465 = vsel %vm165, %v3444, %v3446
  %v3466 = vsel %vm165, %v3446, %v3448
  %v3467 = vsel %vm165, %v3448, %v3450
  %v3468 = vsel %vm165, %v3450, %v3452
  %v3485 = vadd.f32 %v3251, %v3453
  %v3486 = vadd.f32 %v3252, %v3454
  %v3487 = vadd.f32 %v3253, %v3455
  %v3488 = vadd.f32 %v3254, %v3456
  %v3489 = vadd.f32 %v3255, %v3457
  %v3490 = vadd.f32 %v3256, %v3458
  %v3491 = vadd.f32 %v3257, %v3459
  %v3492 = vadd.f32 %v3258, %v3460
  %v3493 = vadd.f32 %v3259, %v3461
  %v3494 = vadd.f32 %v3260, %v3462
  %v3495 = vadd.f32 %v3261, %v3463
  %v3496 = vadd.f32 %v3262, %v3464
  %v3497 = vadd.f32 %v3263, %v3465
  %v3498 = vadd.f32 %v3264, %v3466
  %v3499 = vadd.f32 %v3265, %v3467
  %v3500 = vadd.f32 %v3266, %v3468
  %v3501 = vlaneseq
  %v3502 = vshrl.u32 %v3501, 7
  %v3503 = vsub.s32 0, %v3502
  %v3504 = vrot.slane %v35, %v3503
  %v3505 = vlaneseq
  %v3506 = vshrl.u32 %v3505, 7
  %v3507 = vsub.s32 0, %v3506
  %v3508 = vrot.slane %v36, %v3507
  %v3509 = vlaneseq
  %v3510 = vshrl.u32 %v3509, 7
  %v3511 = vsub.s32 0, %v3510
  %v3512 = vrot.slane %v37, %v3511
  %v3513 = vlaneseq
  %v3514 = vshrl.u32 %v3513, 7
  %v3515 = vsub.s32 0, %v3514
  %v3516 = vrot.slane %v38, %v3515
  %v3517 = vmul.f32 %v3111, %v3504
  %v3518 = vmul.f32 %v3112, %v3508
  %v3519 = vmul.f32 %v3113, %v3512
  %v3520 = vmul.f32 %v3114, %v3516
  %v3521 = vmul.f32 %v46, %v3504
  %v3522 = vmul.f32 %v47, %v3508
  %v3523 = vmul.f32 %v48, %v3512
  %v3524 = vmul.f32 %v49, %v3516
  %v3525 = vmul.f32 %v3116, %v3504
  %v3526 = vmul.f32 %v3117, %v3508
  %v3527 = vmul.f32 %v3118, %v3512
  %v3528 = vmul.f32 %v3119, %v3516
  %v3529 = vmul.f32 %v3121, %v3504
  %v3530 = vmul.f32 %v3122, %v3508
  %v3531 = vmul.f32 %v3123, %v3512
  %v3532 = vmul.f32 %v3124, %v3516
  %v3533 = vmul.f32 %v61, %v3504
  %v3534 = vmul.f32 %v62, %v3508
  %v3535 = vmul.f32 %v63, %v3512
  %v3536 = vmul.f32 %v64, %v3516
  %v3537 = vmul.f32 %v3126, %v3504
  %v3538 = vmul.f32 %v3127, %v3508
  %v3539 = vmul.f32 %v3128, %v3512
  %v3540 = vmul.f32 %v3129, %v3516
  %v3565 = vrot.slane %v3517, 4
  %v3566 = vrot.slane %v3521, 4
  %v3567 = vsel %vm3194, %v3565, %v3566
  %v3568 = vrot.slane %v3518, 4
  %v3569 = vrot.slane %v3522, 4
  %v3570 = vsel %vm3194, %v3568, %v3569
  %v3571 = vrot.slane %v3519, 4
  %v3572 = vrot.slane %v3523, 4
  %v3573 = vsel %vm3194, %v3571, %v3572
  %v3574 = vrot.slane %v3520, 4
  %v3575 = vrot.slane %v3524, 4
  %v3576 = vsel %vm3194, %v3574, %v3575
  %v3577 = vrot.slane %v3525, 4
  %v3578 = vsel %vm3194, %v3566, %v3577
  %v3579 = vrot.slane %v3526, 4
  %v3580 = vsel %vm3194, %v3569, %v3579
  %v3581 = vrot.slane %v3527, 4
  %v3582 = vsel %vm3194, %v3572, %v3581
  %v3583 = vrot.slane %v3528, 4
  %v3584 = vsel %vm3194, %v3575, %v3583
  %v3585 = vrot.slane %v3529, 4
  %v3586 = vrot.slane %v3533, 4
  %v3587 = vsel %vm3194, %v3585, %v3586
  %v3588 = vrot.slane %v3530, 4
  %v3589 = vrot.slane %v3534, 4
  %v3590 = vsel %vm3194, %v3588, %v3589
  %v3591 = vrot.slane %v3531, 4
  %v3592 = vrot.slane %v3535, 4
  %v3593 = vsel %vm3194, %v3591, %v3592
  %v3594 = vrot.slane %v3532, 4
  %v3595 = vrot.slane %v3536, 4
  %v3596 = vsel %vm3194, %v3594, %v3595
  %v3597 = vrot.slane %v3537, 4
  %v3598 = vsel %vm3194, %v3586, %v3597
  %v3599 = vrot.slane %v3538, 4
  %v3600 = vsel %vm3194, %v3589, %v3599
  %v3601 = vrot.slane %v3539, 4
  %v3602 = vsel %vm3194, %v3592, %v3601
  %v3603 = vrot.slane %v3540, 4
  %v3604 = vsel %vm3194, %v3595, %v3603
  %v3621 = vadd.f32 %v3485, %v3567
  %v3622 = vadd.f32 %v3486, %v3570
  %v3623 = vadd.f32 %v3487, %v3573
  %v3624 = vadd.f32 %v3488, %v3576
  %v3625 = vadd.f32 %v3489, %v3578
  %v3626 = vadd.f32 %v3490, %v3580
  %v3627 = vadd.f32 %v3491, %v3582
  %v3628 = vadd.f32 %v3492, %v3584
  %v3629 = vadd.f32 %v3493, %v3587
  %v3630 = vadd.f32 %v3494, %v3590
  %v3631 = vadd.f32 %v3495, %v3593
  %v3632 = vadd.f32 %v3496, %v3596
  %v3633 = vadd.f32 %v3497, %v3598
  %v3634 = vadd.f32 %v3498, %v3600
  %v3635 = vadd.f32 %v3499, %v3602
  %v3636 = vadd.f32 %v3500, %v3604
  %v3637 = vlaneseq
  %v3638 = vshrl.u32 %v3637, 7
  %v3639 = vsub.s32 1, %v3638
  %v3640 = vrot.slane %v39, %v3639
  %v3641 = vlaneseq
  %v3642 = vshrl.u32 %v3641, 7
  %v3643 = vsub.s32 3, %v3642
  %v3644 = vrot.slane %v39, %v3643
  %v3645 = vlaneseq
  %v3646 = vshrl.u32 %v3645, 7
  %v3647 = vsub.s32 5, %v3646
  %v3648 = vrot.slane %v39, %v3647
  %v3649 = vlaneseq
  %v3650 = vshrl.u32 %v3649, 7
  %v3651 = vsub.s32 7, %v3650
  %v3652 = vrot.slane %v39, %v3651
  %v3657 = vlaneseq
  %v3658 = vshrl.u32 %v3657, 7
  %v3659 = vsub.s32 1, %v3658
  %v3660 = vrot.slane %v3640, %v3659
  %v3661 = vlaneseq
  %v3662 = vshrl.u32 %v3661, 7
  %v3663 = vsub.s32 1, %v3662
  %v3664 = vrot.slane %v3644, %v3663
  %v3665 = vlaneseq
  %v3666 = vshrl.u32 %v3665, 7
  %v3667 = vsub.s32 1, %v3666
  %v3668 = vrot.slane %v3648, %v3667
  %v3669 = vlaneseq
  %v3670 = vshrl.u32 %v3669, 7
  %v3671 = vsub.s32 1, %v3670
  %v3672 = vrot.slane %v3652, %v3671
  %v3673 = vadd.f32 %v3621, %v3660
  %v3674 = vadd.f32 %v3622, %v3664
  %v3675 = vadd.f32 %v3623, %v3668
  %v3676 = vadd.f32 %v3624, %v3672
  %v3677 = vadd.f32 %v3625, %v3660
  %v3678 = vadd.f32 %v3626, %v3664
  %v3679 = vadd.f32 %v3627, %v3668
  %v3680 = vadd.f32 %v3628, %v3672
  %v3681 = vadd.f32 %v3629, %v3660
  %v3682 = vadd.f32 %v3630, %v3664
  %v3683 = vadd.f32 %v3631, %v3668
  %v3684 = vadd.f32 %v3632, %v3672
  %v3685 = vadd.f32 %v3633, %v3660
  %v3686 = vadd.f32 %v3634, %v3664
  %v3687 = vadd.f32 %v3635, %v3668
  %v3688 = vadd.f32 %v3636, %v3672
  %v3689 = vmax.f32 %v3673, 0.0
  %v3690 = vmax.f32 %v3674, 0.0
  %v3691 = vmax.f32 %v3675, 0.0
  %v3692 = vmax.f32 %v3676, 0.0
  %v3693 = vmax.f32 %v3677, 0.0
  %v3694 = vmax.f32 %v3678, 0.0
  %v3695 = vmax.f32 %v3679, 0.0
  %v3696 = vmax.f32 %v3680, 0.0
  %v3697 = vmax.f32 %v3681, 0.0
  %v3698 = vmax.f32 %v3682, 0.0
  %v3699 = vmax.f32 %v3683, 0.0
  %v3700 = vmax.f32 %v3684, 0.0
  %v3701 = vmax.f32 %v3685, 0.0
  %v3702 = vmax.f32 %v3686, 0.0
  %v3703 = vmax.f32 %v3687, 0.0
  %v3704 = vmax.f32 %v3688, 0.0
  %vm3721 = vcmask 1040384
  %v3722 = vrot.slane %v3689, 7
  %v3723 = vrot.slane %v3690, 7
  %v3724 = vrot.slane %v3691, 7
  %v3725 = vrot.slane %v3692, 7
  %v3726 = vrot.slane %v3693, 7
  %v3727 = vsel %vm3721, %v3722, %v3726
  %v3728 = vrot.slane %v3694, 7
  %v3729 = vsel %vm3721, %v3723, %v3728
  %v3730 = vrot.slane %v3695, 7
  %v3731 = vsel %vm3721, %v3724, %v3730
  %v3732 = vrot.slane %v3696, 7
  %v3733 = vsel %vm3721, %v3725, %v3732
  %v3734 = vrot.slane %v3697, 7
  %v3735 = vrot.slane %v3698, 7
  %v3736 = vrot.slane %v3699, 7
  %v3737 = vrot.slane %v3700, 7
  %v3738 = vrot.slane %v3701, 7
  %v3739 = vsel %vm3721, %v3734, %v3738
  %v3740 = vrot.slane %v3702, 7
  %v3741 = vsel %vm3721, %v3735, %v3740
  %v3742 = vrot.slane %v3703, 7
  %v3743 = vsel %vm3721, %v3736, %v3742
  %v3744 = vrot.slane %v3704, 7
  %v3745 = vsel %vm3721, %v3737, %v3744
  %3746 = vrot.lane.b32.xlu0 %v3722, 32
  %v3747 = vpop.permute.xlu0 %3746
  %3748 = vrot.lane.b32.xlu0 %v3723, 32
  %v3749 = vpop.permute.xlu0 %3748
  %3750 = vrot.lane.b32.xlu0 %v3724, 32
  %v3751 = vpop.permute.xlu0 %3750
  %3752 = vrot.lane.b32.xlu0 %v3725, 32
  %v3753 = vpop.permute.xlu0 %3752
  %3754 = vrot.lane.b32.xlu0 %v3727, 32
  %v3755 = vpop.permute.xlu0 %3754
  %3756 = vrot.lane.b32.xlu0 %v3729, 32
  %v3757 = vpop.permute.xlu0 %3756
  %3758 = vrot.lane.b32.xlu0 %v3731, 32
  %v3759 = vpop.permute.xlu0 %3758
  %3760 = vrot.lane.b32.xlu0 %v3733, 32
  %v3761 = vpop.permute.xlu0 %3760
  %3762 = vrot.lane.b32.xlu0 %v3726, 32
  %v3763 = vpop.permute.xlu0 %3762
  %3764 = vrot.lane.b32.xlu0 %v3728, 32
  %v3765 = vpop.permute.xlu0 %3764
  %3766 = vrot.lane.b32.xlu0 %v3730, 32
  %v3767 = vpop.permute.xlu0 %3766
  %3768 = vrot.lane.b32.xlu0 %v3732, 32
  %v3769 = vpop.permute.xlu0 %3768
  %3770 = vrot.lane.b32.xlu0 %v3734, 32
  %v3771 = vpop.permute.xlu0 %3770
  %3772 = vrot.lane.b32.xlu0 %v3735, 32
  %v3773 = vpop.permute.xlu0 %3772
  %3774 = vrot.lane.b32.xlu0 %v3736, 32
  %v3775 = vpop.permute.xlu0 %3774
  %3776 = vrot.lane.b32.xlu0 %v3737, 32
  %v3777 = vpop.permute.xlu0 %3776
  %3778 = vrot.lane.b32.xlu0 %v3739, 32
  %v3779 = vpop.permute.xlu0 %3778
  %3780 = vrot.lane.b32.xlu0 %v3741, 32
  %v3781 = vpop.permute.xlu0 %3780
  %3782 = vrot.lane.b32.xlu0 %v3743, 32
  %v3783 = vpop.permute.xlu0 %3782
  %3784 = vrot.lane.b32.xlu0 %v3745, 32
  %v3785 = vpop.permute.xlu0 %3784
  %3786 = vrot.lane.b32.xlu0 %v3738, 32
  %v3787 = vpop.permute.xlu0 %3786
  %3788 = vrot.lane.b32.xlu0 %v3740, 32
  %v3789 = vpop.permute.xlu0 %3788
  %3790 = vrot.lane.b32.xlu0 %v3742, 32
  %v3791 = vpop.permute.xlu0 %3790
  %3792 = vrot.lane.b32.xlu0 %v3744, 32
  %v3793 = vpop.permute.xlu0 %3792
  %v3794 = vsel %vm98, %v3747, %v3749
  %v3795 = vsel %vm98, %v3749, %v3751
  %v3796 = vsel %vm98, %v3751, %v3753
  %v3797 = vsel %vm98, %v3755, %v3757
  %v3798 = vsel %vm98, %v3757, %v3759
  %v3799 = vsel %vm98, %v3759, %v3761
  %v3800 = vsel %vm98, %v3763, %v3765
  %v3801 = vsel %vm98, %v3765, %v3767
  %v3802 = vsel %vm98, %v3767, %v3769
  %v3803 = vsel %vm98, %v3771, %v3773
  %v3804 = vsel %vm98, %v3773, %v3775
  %v3805 = vsel %vm98, %v3775, %v3777
  %v3806 = vsel %vm98, %v3779, %v3781
  %v3807 = vsel %vm98, %v3781, %v3783
  %v3808 = vsel %vm98, %v3783, %v3785
  %v3809 = vsel %vm98, %v3787, %v3789
  %v3810 = vsel %vm98, %v3789, %v3791
  %v3811 = vsel %vm98, %v3791, %v3793
  %v3842 = vadd.f32 %v2320, %v3747
  %v3843 = vadd.f32 %v2321, %v3794
  %v3844 = vadd.f32 %v2322, %v3795
  %v3845 = vadd.f32 %v2323, %v3796
  %v3846 = vadd.f32 %v2324, %v3753
  %v3847 = vadd.f32 %v2325, %v3755
  %v3848 = vadd.f32 %v2326, %v3797
  %v3849 = vadd.f32 %v2327, %v3798
  %v3850 = vadd.f32 %v2328, %v3799
  %v3851 = vadd.f32 %v2329, %v3761
  %v3852 = vadd.f32 %v2330, %v3763
  %v3853 = vadd.f32 %v2331, %v3800
  %v3854 = vadd.f32 %v2332, %v3801
  %v3855 = vadd.f32 %v2333, %v3802
  %v3856 = vadd.f32 %v2334, %v3769
  %v3857 = vadd.f32 %v2335, %v3771
  %v3858 = vadd.f32 %v2336, %v3803
  %v3859 = vadd.f32 %v2337, %v3804
  %v3860 = vadd.f32 %v2338, %v3805
  %v3861 = vadd.f32 %v2339, %v3777
  %v3862 = vadd.f32 %v2340, %v3779
  %v3863 = vadd.f32 %v2341, %v3806
  %v3864 = vadd.f32 %v2342, %v3807
  %v3865 = vadd.f32 %v2343, %v3808
  %v3866 = vadd.f32 %v2344, %v3785
  %v3867 = vadd.f32 %v2345, %v3787
  %v3868 = vadd.f32 %v2346, %v3809
  %v3869 = vadd.f32 %v2347, %v3810
  %v3870 = vadd.f32 %v2348, %v3811
  %v3871 = vadd.f32 %v2349, %v3793
  %v3902 = vrot.slane %v3842, 1
  %v3903 = vrot.slane %v3847, 1
  %v3904 = vsel %vm735, %v3902, %v3903
  %v3905 = vrot.slane %v3843, 1
  %v3906 = vrot.slane %v3848, 1
  %v3907 = vsel %vm735, %v3905, %v3906
  %v3908 = vrot.slane %v3844, 1
  %v3909 = vrot.slane %v3849, 1
  %v3910 = vsel %vm735, %v3908, %v3909
  %v3911 = vrot.slane %v3845, 1
  %v3912 = vrot.slane %v3850, 1
  %v3913 = vsel %vm735, %v3911, %v3912
  %v3914 = vrot.slane %v3846, 1
  %v3915 = vrot.slane %v3851, 1
  %v3916 = vsel %vm735, %v3914, %v3915
  %v3917 = vrot.slane %v3852, 1
  %v3918 = vsel %vm735, %v3903, %v3917
  %v3919 = vrot.slane %v3853, 1
  %v3920 = vsel %vm735, %v3906, %v3919
  %v3921 = vrot.slane %v3854, 1
  %v3922 = vsel %vm735, %v3909, %v3921
  %v3923 = vrot.slane %v3855, 1
  %v3924 = vsel %vm735, %v3912, %v3923
  %v3925 = vrot.slane %v3856, 1
  %v3926 = vsel %vm735, %v3915, %v3925
  %v3927 = vrot.slane %v3857, 1
  %v3928 = vrot.slane %v3862, 1
  %v3929 = vsel %vm735, %v3927, %v3928
  %v3930 = vrot.slane %v3858, 1
  %v3931 = vrot.slane %v3863, 1
  %v3932 = vsel %vm735, %v3930, %v3931
  %v3933 = vrot.slane %v3859, 1
  %v3934 = vrot.slane %v3864, 1
  %v3935 = vsel %vm735, %v3933, %v3934
  %v3936 = vrot.slane %v3860, 1
  %v3937 = vrot.slane %v3865, 1
  %v3938 = vsel %vm735, %v3936, %v3937
  %v3939 = vrot.slane %v3861, 1
  %v3940 = vrot.slane %v3866, 1
  %v3941 = vsel %vm735, %v3939, %v3940
  %v3942 = vrot.slane %v3867, 1
  %v3943 = vsel %vm735, %v3928, %v3942
  %v3944 = vrot.slane %v3868, 1
  %v3945 = vsel %vm735, %v3931, %v3944
  %v3946 = vrot.slane %v3869, 1
  %v3947 = vsel %vm735, %v3934, %v3946
  %v3948 = vrot.slane %v3870, 1
  %v3949 = vsel %vm735, %v3937, %v3948
  %v3950 = vrot.slane %v3871, 1
  %v3951 = vsel %vm735, %v3940, %v3950
  %vm3972 = vcmask 1047808
  %v3973 = vsel %vm3972, %v3904, 0.0
  %v3974 = vsel %vm3972, %v3918, 0.0
  %v3975 = vadd.f32 %v3973, %v3974
  %v3976 = vrot.slane %v3975, 4
  %v3977 = vadd.f32 %v3975, %v3976
  %v3978 = vrot.slane %v3977, 2
  %v3979 = vadd.f32 %v3977, %v3978
  %v3980 = vrot.slane %v3979, 1
  %v3981 = vadd.f32 %v3979, %v3980
  %v3982 = vadd.f32 %v3907, %v3920
  %v3983 = vrot.slane %v3982, 4
  %v3984 = vadd.f32 %v3982, %v3983
  %v3985 = vrot.slane %v3984, 2
  %v3986 = vadd.f32 %v3984, %v3985
  %v3987 = vrot.slane %v3986, 1
  %v3988 = vadd.f32 %v3986, %v3987
  %v3989 = vadd.f32 %v3910, %v3922
  %v3990 = vrot.slane %v3989, 4
  %v3991 = vadd.f32 %v3989, %v3990
  %v3992 = vrot.slane %v3991, 2
  %v3993 = vadd.f32 %v3991, %v3992
  %v3994 = vrot.slane %v3993, 1
  %v3995 = vadd.f32 %v3993, %v3994
  %v3996 = vadd.f32 %v3913, %v3924
  %v3997 = vrot.slane %v3996, 4
  %v3998 = vadd.f32 %v3996, %v3997
  %v3999 = vrot.slane %v3998, 2
  %v4000 = vadd.f32 %v3998, %v3999
  %v4001 = vrot.slane %v4000, 1
  %v4002 = vadd.f32 %v4000, %v4001
  %v4003 = vsel %vm98, %v3916, 0.0
  %v4004 = vsel %vm98, %v3926, 0.0
  %v4005 = vadd.f32 %v4003, %v4004
  %v4006 = vrot.slane %v4005, 4
  %v4007 = vadd.f32 %v4005, %v4006
  %v4008 = vrot.slane %v4007, 2
  %v4009 = vadd.f32 %v4007, %v4008
  %v4010 = vrot.slane %v4009, 1
  %v4011 = vadd.f32 %v4009, %v4010
  %v4012 = vsel %vm3972, %v3929, 0.0
  %v4013 = vsel %vm3972, %v3943, 0.0
  %v4014 = vadd.f32 %v4012, %v4013
  %v4015 = vrot.slane %v4014, 4
  %v4016 = vadd.f32 %v4014, %v4015
  %v4017 = vrot.slane %v4016, 2
  %v4018 = vadd.f32 %v4016, %v4017
  %v4019 = vrot.slane %v4018, 1
  %v4020 = vadd.f32 %v4018, %v4019
  %v4021 = vadd.f32 %v3932, %v3945
  %v4022 = vrot.slane %v4021, 4
  %v4023 = vadd.f32 %v4021, %v4022
  %v4024 = vrot.slane %v4023, 2
  %v4025 = vadd.f32 %v4023, %v4024
  %v4026 = vrot.slane %v4025, 1
  %v4027 = vadd.f32 %v4025, %v4026
  %v4028 = vadd.f32 %v3935, %v3947
  %v4029 = vrot.slane %v4028, 4
  %v4030 = vadd.f32 %v4028, %v4029
  %v4031 = vrot.slane %v4030, 2
  %v4032 = vadd.f32 %v4030, %v4031
  %v4033 = vrot.slane %v4032, 1
  %v4034 = vadd.f32 %v4032, %v4033
  %v4035 = vadd.f32 %v3938, %v3949
  %v4036 = vrot.slane %v4035, 4
  %v4037 = vadd.f32 %v4035, %v4036
  %v4038 = vrot.slane %v4037, 2
  %v4039 = vadd.f32 %v4037, %v4038
  %v4040 = vrot.slane %v4039, 1
  %v4041 = vadd.f32 %v4039, %v4040
  %v4042 = vsel %vm98, %v3941, 0.0
  %v4043 = vsel %vm98, %v3951, 0.0
  %v4044 = vadd.f32 %v4042, %v4043
  %v4045 = vrot.slane %v4044, 4
  %v4046 = vadd.f32 %v4044, %v4045
  %v4047 = vrot.slane %v4046, 2
  %v4048 = vadd.f32 %v4046, %v4047
  %v4049 = vrot.slane %v4048, 1
  %v4050 = vadd.f32 %v4048, %v4049
  %v4051 = vld [vmem:[%s3] sm:$0xff]
  %v4052 = vld [vmem:[%s3 + $0x8] sm:$0xff]
  %v4053 = vld [vmem:[%s3 + $0x10] sm:$0xff]
  %v4054 = vld [vmem:[%s3 + $0x18] sm:$0xff]
  %v4055 = vld [vmem:[%s3 + $0x20] sm:$0xff]
  %v4056 = vld [vmem:[%s3 + $0x28] sm:$0xff]
  %v4057 = vld [vmem:[%s3 + $0x30] sm:$0xff]
  %v4058 = vld [vmem:[%s3 + $0x38] sm:$0xff]
  %v4059 = vld [vmem:[%s3 + $0x40] sm:$0xff]
  %v4060 = vld [vmem:[%s3 + $0x48] sm:$0xff]
  %v4061 = vld [vmem:[%s3 + $0x50] sm:$0xff]
  %v4062 = vld [vmem:[%s3 + $0x58] sm:$0xff]
  %v4063 = vld [vmem:[%s3 + $0x60] sm:$0xff]
  %v4064 = vld [vmem:[%s3 + $0x68] sm:$0xff]
  %v4065 = vld [vmem:[%s3 + $0x70] sm:$0xff]
  %v4066 = vld [vmem:[%s3 + $0x78] sm:$0xff]
  %v4067 = vld [vmem:[%s3 + $0x80] sm:$0xff]
  %v4068 = vld [vmem:[%s3 + $0x88] sm:$0xff]
  %v4069 = vld [vmem:[%s3 + $0x90] sm:$0xff]
  %v4070 = vld [vmem:[%s3 + $0x98] sm:$0xff]
  %v4071 = vld [vmem:[%s3 + $0xa0] sm:$0xff]
  %v4072 = vld [vmem:[%s3 + $0xa8] sm:$0xff]
  %v4073 = vld [vmem:[%s3 + $0xb0] sm:$0xff]
  %v4074 = vld [vmem:[%s3 + $0xb8] sm:$0xff]
  %v4075 = vld [vmem:[%s3 + $0xc0] sm:$0xff]
  %v4076 = vld [vmem:[%s3 + $0xc8] sm:$0xff]
  %v4077 = vld [vmem:[%s3 + $0xd0] sm:$0xff]
  %v4078 = vld [vmem:[%s3 + $0xd8] sm:$0xff]
  %v4079 = vld [vmem:[%s3 + $0xe0] sm:$0xff]
  %v4080 = vld [vmem:[%s3 + $0xe8] sm:$0xff]
  %v4081 = vld [vmem:[%s3 + $0xf0] sm:$0xff]
  %v4082 = vld [vmem:[%s3 + $0xf8] sm:$0xff]
  %v4083 = vld [vmem:[%s3 + $0x100] sm:$0xff]
  %v4084 = vld [vmem:[%s3 + $0x108] sm:$0xff]
  %v4085 = vld [vmem:[%s3 + $0x110] sm:$0xff]
  %v4086 = vld [vmem:[%s3 + $0x118] sm:$0xff]
  %v4087 = vld [vmem:[%s3 + $0x120] sm:$0xff]
  %v4088 = vld [vmem:[%s3 + $0x128] sm:$0xff]
  %v4089 = vld [vmem:[%s3 + $0x130] sm:$0xff]
  %v4090 = vld [vmem:[%s3 + $0x138] sm:$0xff]
  %v4091 = vld [vmem:[%s3 + $0x140] sm:$0xff]
  %v4092 = vld [vmem:[%s3 + $0x148] sm:$0xff]
  %v4093 = vld [vmem:[%s3 + $0x150] sm:$0xff]
  %v4094 = vld [vmem:[%s3 + $0x158] sm:$0xff]
  %v4095 = vld [vmem:[%s3 + $0x160] sm:$0xff]
  %v4096 = vld [vmem:[%s3 + $0x168] sm:$0xff]
  %v4097 = vld [vmem:[%s3 + $0x170] sm:$0xff]
  %v4098 = vld [vmem:[%s3 + $0x178] sm:$0xff]
  %v4099 = vld [vmem:[%s3 + $0x180] sm:$0xff]
  %v4100 = vld [vmem:[%s3 + $0x188] sm:$0xff]
  %v4101 = vld [vmem:[%s3 + $0x190] sm:$0xff]
  %v4102 = vld [vmem:[%s3 + $0x198] sm:$0xff]
  %v4103 = vld [vmem:[%s3 + $0x1a0] sm:$0xff]
  %v4104 = vld [vmem:[%s3 + $0x1a8] sm:$0xff]
  %v4105 = vld [vmem:[%s3 + $0x1b0] sm:$0xff]
  %v4106 = vld [vmem:[%s3 + $0x1b8] sm:$0xff]
  %v4107 = vld [vmem:[%s3 + $0x1c0] sm:$0xff]
  %v4108 = vld [vmem:[%s3 + $0x1c8] sm:$0xff]
  %v4109 = vld [vmem:[%s3 + $0x1d0] sm:$0xff]
  %v4110 = vld [vmem:[%s3 + $0x1d8] sm:$0xff]
  %v4111 = vld [vmem:[%s3 + $0x1e0] sm:$0xff]
  %v4112 = vld [vmem:[%s3 + $0x1e8] sm:$0xff]
  %v4113 = vld [vmem:[%s3 + $0x1f0] sm:$0xff]
  %v4114 = vld [vmem:[%s3 + $0x1f8] sm:$0xff]
  %v4115 = vld [vmem:[%s4] sm:$0x1]
  %v4117 = vlaneseq
  %v4118 = vshrl.u32 %v4117, 7
  %v4119 = vsub.s32 0, %v4118
  %v4120 = vrot.slane %v4115, %v4119
  %vm4132 = vcmask 1041409
  %v4133 = vsel %vm4132, %v4020, %v3981
  %v4134 = vsel %vm4132, %v4027, %v3988
  %v4135 = vsel %vm4132, %v4034, %v3995
  %v4136 = vsel %vm4132, %v4041, %v4002
  %v4137 = vsel %vm4132, %v4050, %v4011
  %4138 = vrot.lane.b32.xlu0 %v4133, 96
  %v4139 = vpop.permute.xlu0 %4138
  %4140 = vrot.lane.b32.xlu0 %v4134, 96
  %v4141 = vpop.permute.xlu0 %4140
  %4142 = vrot.lane.b32.xlu0 %v4135, 96
  %v4143 = vpop.permute.xlu0 %4142
  %4144 = vrot.lane.b32.xlu0 %v4136, 96
  %v4145 = vpop.permute.xlu0 %4144
  %4146 = vrot.lane.b32.xlu0 %v4137, 96
  %v4147 = vpop.permute.xlu0 %4146
  %v4148 = vsel %vm294, %v4139, %v4141
  %v4149 = vsel %vm294, %v4141, %v4143
  %v4150 = vsel %vm294, %v4143, %v4145
  %v4151 = vsel %vm294, %v4145, %v4147
  %4156 = vmatprep.subr.mxu0 0.0
  %4157 = vmatpush1.msra.mxu0 %v4066
  %4158 = vmatprep.subr.mxu0 0.0
  %4159 = vmatpush1.msra.mxu0 %v4065
  %4160 = vmatprep.subr.mxu0 0.0
  %4161 = vmatpush1.msra.mxu0 %v4064
  %4162 = vmatprep.subr.mxu0 0.0
  %4163 = vmatpush1.msra.mxu0 %v4063
  %4164 = vmatprep.subr.mxu0 0.0
  %4165 = vmatpush1.msra.mxu0 %v4062
  %4166 = vmatprep.subr.mxu0 0.0
  %4167 = vmatpush1.msra.mxu0 %v4061
  %4168 = vmatprep.subr.mxu0 0.0
  %4169 = vmatpush1.msra.mxu0 %v4060
  %4170 = vmatprep.subr.mxu0 0.0
  %4171 = vmatpush1.msra.mxu0 %v4059
  %4172 = vmatprep.subr.mxu0 0.0
  %4173 = vmatpush1.msra.mxu0 %v4058
  %4174 = vmatprep.subr.mxu0 0.0
  %4175 = vmatpush1.msra.mxu0 %v4057
  %4176 = vmatprep.subr.mxu0 0.0
  %4177 = vmatpush1.msra.mxu0 %v4056
  %4178 = vmatprep.subr.mxu0 0.0
  %4179 = vmatpush1.msra.mxu0 %v4055
  %4180 = vmatprep.subr.mxu0 0.0
  %4181 = vmatpush1.msra.mxu0 %v4054
  %4182 = vmatprep.subr.mxu0 0.0
  %4183 = vmatpush1.msra.mxu0 %v4053
  %4184 = vmatprep.subr.mxu0 0.0
  %4185 = vmatpush1.msra.mxu0 %v4052
  %4186 = vmatprep.subr.mxu0 0.0
  %4187 = vmatpush1.msra.mxu0 %v4051
  %4188 = vmatprep.subr.mxu0 0.0
  %4189 = vmatpush2.msra.mxu0 %v4082
  %4190 = vmatprep.subr.mxu0 0.0
  %4191 = vmatpush2.msra.mxu0 %v4081
  %4192 = vmatprep.subr.mxu0 0.0
  %4193 = vmatpush2.msra.mxu0 %v4080
  %4194 = vmatprep.subr.mxu0 0.0
  %4195 = vmatpush2.msra.mxu0 %v4079
  %4196 = vmatprep.subr.mxu0 0.0
  %4197 = vmatpush2.msra.mxu0 %v4078
  %4198 = vmatprep.subr.mxu0 0.0
  %4199 = vmatpush2.msra.mxu0 %v4077
  %4200 = vmatprep.subr.mxu0 0.0
  %4201 = vmatpush2.msra.mxu0 %v4076
  %4202 = vmatprep.subr.mxu0 0.0
  %4203 = vmatpush2.msra.mxu0 %v4075
  %4204 = vmatprep.subr.mxu0 0.0
  %4205 = vmatpush2.msra.mxu0 %v4074
  %4206 = vmatprep.subr.mxu0 0.0
  %4207 = vmatpush2.msra.mxu0 %v4073
  %4208 = vmatprep.subr.mxu0 0.0
  %4209 = vmatpush2.msra.mxu0 %v4072
  %4210 = vmatprep.subr.mxu0 0.0
  %4211 = vmatpush2.msra.mxu0 %v4071
  %4212 = vmatprep.subr.mxu0 0.0
  %4213 = vmatpush2.msra.mxu0 %v4070
  %4214 = vmatprep.subr.mxu0 0.0
  %4215 = vmatpush2.msra.mxu0 %v4069
  %4216 = vmatprep.subr.mxu0 0.0
  %4217 = vmatpush2.msra.mxu0 %v4068
  %4218 = vmatprep.subr.mxu0 0.0
  %4219 = vmatpush2.msra.mxu0 %v4067
  %4220 = vmatprep.mubr.f32.mxu0 %v4149
  %4221 = vmatmul.mubr.f32.gmra.mxu0 %v4148
  %v4222 = vpop.f32.mrf.mxu0
  %v4223 = vadd.f32 %v4120, %v4222
  %v4224 = vpop.f32.mrf.mxu0
  %4225 = vdwg.mxu0
  %4226 = vmatprep.subr.mxu0 0.0
  %4227 = vmatpush1.msra.mxu0 %v4098
  %4228 = vmatprep.subr.mxu0 0.0
  %4229 = vmatpush1.msra.mxu0 %v4097
  %4230 = vmatprep.subr.mxu0 0.0
  %4231 = vmatpush1.msra.mxu0 %v4096
  %4232 = vmatprep.subr.mxu0 0.0
  %4233 = vmatpush1.msra.mxu0 %v4095
  %4234 = vmatprep.subr.mxu0 0.0
  %4235 = vmatpush1.msra.mxu0 %v4094
  %4236 = vmatprep.subr.mxu0 0.0
  %4237 = vmatpush1.msra.mxu0 %v4093
  %4238 = vmatprep.subr.mxu0 0.0
  %4239 = vmatpush1.msra.mxu0 %v4092
  %4240 = vmatprep.subr.mxu0 0.0
  %4241 = vmatpush1.msra.mxu0 %v4091
  %4242 = vmatprep.subr.mxu0 0.0
  %4243 = vmatpush1.msra.mxu0 %v4090
  %4244 = vmatprep.subr.mxu0 0.0
  %4245 = vmatpush1.msra.mxu0 %v4089
  %4246 = vmatprep.subr.mxu0 0.0
  %4247 = vmatpush1.msra.mxu0 %v4088
  %4248 = vmatprep.subr.mxu0 0.0
  %4249 = vmatpush1.msra.mxu0 %v4087
  %4250 = vmatprep.subr.mxu0 0.0
  %4251 = vmatpush1.msra.mxu0 %v4086
  %4252 = vmatprep.subr.mxu0 0.0
  %4253 = vmatpush1.msra.mxu0 %v4085
  %4254 = vmatprep.subr.mxu0 0.0
  %4255 = vmatpush1.msra.mxu0 %v4084
  %4256 = vmatprep.subr.mxu0 0.0
  %4257 = vmatpush1.msra.mxu0 %v4083
  %4258 = vmatprep.subr.mxu0 0.0
  %4259 = vmatpush2.msra.mxu0 %v4114
  %4260 = vmatprep.subr.mxu0 0.0
  %4261 = vmatpush2.msra.mxu0 %v4113
  %4262 = vmatprep.subr.mxu0 0.0
  %4263 = vmatpush2.msra.mxu0 %v4112
  %4264 = vmatprep.subr.mxu0 0.0
  %4265 = vmatpush2.msra.mxu0 %v4111
  %4266 = vmatprep.subr.mxu0 0.0
  %4267 = vmatpush2.msra.mxu0 %v4110
  %4268 = vmatprep.subr.mxu0 0.0
  %4269 = vmatpush2.msra.mxu0 %v4109
  %4270 = vmatprep.subr.mxu0 0.0
  %4271 = vmatpush2.msra.mxu0 %v4108
  %4272 = vmatprep.subr.mxu0 0.0
  %4273 = vmatpush2.msra.mxu0 %v4107
  %4274 = vmatprep.subr.mxu0 0.0
  %4275 = vmatpush2.msra.mxu0 %v4106
  %4276 = vmatprep.subr.mxu0 0.0
  %4277 = vmatpush2.msra.mxu0 %v4105
  %4278 = vmatprep.subr.mxu0 0.0
  %4279 = vmatpush2.msra.mxu0 %v4104
  %4280 = vmatprep.subr.mxu0 0.0
  %4281 = vmatpush2.msra.mxu0 %v4103
  %4282 = vmatprep.subr.mxu0 0.0
  %4283 = vmatpush2.msra.mxu0 %v4102
  %4284 = vmatprep.subr.mxu0 0.0
  %4285 = vmatpush2.msra.mxu0 %v4101
  %4286 = vmatprep.subr.mxu0 0.0
  %4287 = vmatpush2.msra.mxu0 %v4100
  %4288 = vmatprep.subr.mxu0 0.0
  %4289 = vmatpush2.msra.mxu0 %v4099
  %4290 = vmatprep.mubr.f32.mxu0 %v4151
  %4291 = vmatmul.mubr.f32.gmra.mxu0 %v4150
  %v4292 = vpop.f32.mrf.mxu0
  %v4293 = vadd.f32 %v4223, %v4292
  %v4294 = vpop.f32.mrf.mxu0
  %4295 = vdwg.mxu0
  %v4296 = vmax.f32 %v4293, 0.0
  %v4297 = vld [vmem:[%s5] sm:$0xff]
  %v4298 = vld [vmem:[%s5 + $0x8] sm:$0xff]
  %v4299 = vld [vmem:[%s5 + $0x10] sm:$0xff]
  %v4300 = vld [vmem:[%s5 + $0x18] sm:$0xff]
  %v4301 = vld [vmem:[%s5 + $0x20] sm:$0xff]
  %v4302 = vld [vmem:[%s5 + $0x28] sm:$0xff]
  %v4303 = vld [vmem:[%s5 + $0x30] sm:$0xff]
  %v4304 = vld [vmem:[%s5 + $0x38] sm:$0xff]
  %v4305 = vld [vmem:[%s5 + $0x40] sm:$0xff]
  %v4306 = vld [vmem:[%s5 + $0x48] sm:$0xff]
  %v4307 = vld [vmem:[%s5 + $0x50] sm:$0xff]
  %v4308 = vld [vmem:[%s5 + $0x58] sm:$0xff]
  %v4309 = vld [vmem:[%s5 + $0x60] sm:$0xff]
  %v4310 = vld [vmem:[%s5 + $0x68] sm:$0xff]
  %v4311 = vld [vmem:[%s5 + $0x70] sm:$0xff]
  %v4312 = vld [vmem:[%s5 + $0x78] sm:$0xff]
  %v4313 = vld [vmem:[%s5 + $0x80] sm:$0xff]
  %v4314 = vld [vmem:[%s5 + $0x88] sm:$0xff]
  %v4315 = vld [vmem:[%s5 + $0x90] sm:$0xff]
  %v4316 = vld [vmem:[%s5 + $0x98] sm:$0xff]
  %v4317 = vld [vmem:[%s5 + $0xa0] sm:$0xff]
  %v4318 = vld [vmem:[%s5 + $0xa8] sm:$0xff]
  %v4319 = vld [vmem:[%s5 + $0xb0] sm:$0xff]
  %v4320 = vld [vmem:[%s5 + $0xb8] sm:$0xff]
  %v4321 = vld [vmem:[%s5 + $0xc0] sm:$0xff]
  %v4322 = vld [vmem:[%s5 + $0xc8] sm:$0xff]
  %v4323 = vld [vmem:[%s5 + $0xd0] sm:$0xff]
  %v4324 = vld [vmem:[%s5 + $0xd8] sm:$0xff]
  %v4325 = vld [vmem:[%s5 + $0xe0] sm:$0xff]
  %v4326 = vld [vmem:[%s5 + $0xe8] sm:$0xff]
  %v4327 = vld [vmem:[%s5 + $0xf0] sm:$0xff]
  %v4328 = vld [vmem:[%s5 + $0xf8] sm:$0xff]
  %v4330 = vsel %vm98, %v4296, 0
  %4332 = vmatprep.subr.mxu0 0.0
  %4333 = vmatpush1.msra.mxu0 0.0
  %4334 = vmatprep.subr.mxu0 0.0
  %4335 = vmatpush1.msra.mxu0 0.0
  %4336 = vmatprep.subr.mxu0 0.0
  %4337 = vmatpush1.msra.mxu0 0.0
  %4338 = vmatprep.subr.mxu0 0.0
  %4339 = vmatpush1.msra.mxu0 0.0
  %4340 = vmatprep.subr.mxu0 0.0
  %4341 = vmatpush1.msra.mxu0 0.0
  %4342 = vmatprep.subr.mxu0 0.0
  %4343 = vmatpush1.msra.mxu0 0.0
  %4344 = vmatprep.subr.mxu0 0.0
  %4345 = vmatpush1.msra.mxu0 0.0
  %4346 = vmatprep.subr.mxu0 0.0
  %4347 = vmatpush1.msra.mxu0 0.0
  %4348 = vmatprep.subr.mxu0 0.0
  %4349 = vmatpush1.msra.mxu0 0.0
  %4350 = vmatprep.subr.mxu0 0.0
  %4351 = vmatpush1.msra.mxu0 0.0
  %4352 = vmatprep.subr.mxu0 0.0
  %4353 = vmatpush1.msra.mxu0 0.0
  %4354 = vmatprep.subr.mxu0 0.0
  %4355 = vmatpush1.msra.mxu0 0.0
  %4356 = vmatprep.subr.mxu0 %v4322
  %4357 = vmatpush1.msra.mxu0 %v4321
  %4358 = vmatprep.subr.mxu0 %v4314
  %4359 = vmatpush1.msra.mxu0 %v4313
  %4360 = vmatprep.subr.mxu0 %v4306
  %4361 = vmatpush1.msra.mxu0 %v4305
  %4362 = vmatprep.subr.mxu0 %v4298
  %4363 = vmatpush1.msra.mxu0 %v4297
  %4364 = vmatprep.subr.mxu0 0.0
  %4365 = vmatpush2.msra.mxu0 0.0
  %4366 = vmatprep.subr.mxu0 0.0
  %4367 = vmatpush2.msra.mxu0 0.0
  %4368 = vmatprep.subr.mxu0 0.0
  %4369 = vmatpush2.msra.mxu0 0.0
  %4370 = vmatprep.subr.mxu0 0.0
  %4371 = vmatpush2.msra.mxu0 0.0
  %4372 = vmatprep.subr.mxu0 0.0
  %4373 = vmatpush2.msra.mxu0 0.0
  %4374 = vmatprep.subr.mxu0 0.0
  %4375 = vmatpush2.msra.mxu0 0.0
  %4376 = vmatprep.subr.mxu0 0.0
  %4377 = vmatpush2.msra.mxu0 0.0
  %4378 = vmatprep.subr.mxu0 0.0
  %4379 = vmatpush2.msra.mxu0 0.0
  %4380 = vmatprep.subr.mxu0 0.0
  %4381 = vmatpush2.msra.mxu0 0.0
  %4382 = vmatprep.subr.mxu0 0.0
  %4383 = vmatpush2.msra.mxu0 0.0
  %4384 = vmatprep.subr.mxu0 0.0
  %4385 = vmatpush2.msra.mxu0 0.0
  %4386 = vmatprep.subr.mxu0 0.0
  %4387 = vmatpush2.msra.mxu0 0.0
  %4388 = vmatprep.subr.mxu0 0.0
  %4389 = vmatpush2.msra.mxu0 0.0
  %4390 = vmatprep.subr.mxu0 0.0
  %4391 = vmatpush2.msra.mxu0 0.0
  %4392 = vmatprep.subr.mxu0 0.0
  %4393 = vmatpush2.msra.mxu0 0.0
  %4394 = vmatprep.subr.mxu0 0.0
  %4395 = vmatpush2.msra.mxu0 0.0
  %4396 = vmatprep.mubr.f32.mxu0 0.0
  %4397 = vmatmul.mubr.f32.gmra.mxu0 %v4330
  %v4398 = vpop.f32.mrf.mxu0
  %v4399 = vadd.f32 0.0, %v4398
  %v4400 = vpop.f32.mrf.mxu0
  %v4401 = vadd.f32 0.0, %v4400
  %4402 = vdwg.mxu0
  %4403 = vmatprep.subr.mxu0 0.0
  %4404 = vmatpush1.msra.mxu0 0.0
  %4405 = vmatprep.subr.mxu0 0.0
  %4406 = vmatpush1.msra.mxu0 0.0
  %4407 = vmatprep.subr.mxu0 0.0
  %4408 = vmatpush1.msra.mxu0 0.0
  %4409 = vmatprep.subr.mxu0 0.0
  %4410 = vmatpush1.msra.mxu0 0.0
  %4411 = vmatprep.subr.mxu0 0.0
  %4412 = vmatpush1.msra.mxu0 0.0
  %4413 = vmatprep.subr.mxu0 0.0
  %4414 = vmatpush1.msra.mxu0 0.0
  %4415 = vmatprep.subr.mxu0 0.0
  %4416 = vmatpush1.msra.mxu0 0.0
  %4417 = vmatprep.subr.mxu0 0.0
  %4418 = vmatpush1.msra.mxu0 0.0
  %4419 = vmatprep.subr.mxu0 0.0
  %4420 = vmatpush1.msra.mxu0 0.0
  %4421 = vmatprep.subr.mxu0 0.0
  %4422 = vmatpush1.msra.mxu0 0.0
  %4423 = vmatprep.subr.mxu0 0.0
  %4424 = vmatpush1.msra.mxu0 0.0
  %4425 = vmatprep.subr.mxu0 0.0
  %4426 = vmatpush1.msra.mxu0 0.0
  %4427 = vmatprep.subr.mxu0 %v4324
  %4428 = vmatpush1.msra.mxu0 %v4323
  %4429 = vmatprep.subr.mxu0 %v4316
  %4430 = vmatpush1.msra.mxu0 %v4315
  %4431 = vmatprep.subr.mxu0 %v4308
  %4432 = vmatpush1.msra.mxu0 %v4307
  %4433 = vmatprep.subr.mxu0 %v4300
  %4434 = vmatpush1.msra.mxu0 %v4299
  %4435 = vmatprep.subr.mxu0 0.0
  %4436 = vmatpush2.msra.mxu0 0.0
  %4437 = vmatprep.subr.mxu0 0.0
  %4438 = vmatpush2.msra.mxu0 0.0
  %4439 = vmatprep.subr.mxu0 0.0
  %4440 = vmatpush2.msra.mxu0 0.0
  %4441 = vmatprep.subr.mxu0 0.0
  %4442 = vmatpush2.msra.mxu0 0.0
  %4443 = vmatprep.subr.mxu0 0.0
  %4444 = vmatpush2.msra.mxu0 0.0
  %4445 = vmatprep.subr.mxu0 0.0
  %4446 = vmatpush2.msra.mxu0 0.0
  %4447 = vmatprep.subr.mxu0 0.0
  %4448 = vmatpush2.msra.mxu0 0.0
  %4449 = vmatprep.subr.mxu0 0.0
  %4450 = vmatpush2.msra.mxu0 0.0
  %4451 = vmatprep.subr.mxu0 0.0
  %4452 = vmatpush2.msra.mxu0 0.0
  %4453 = vmatprep.subr.mxu0 0.0
  %4454 = vmatpush2.msra.mxu0 0.0
  %4455 = vmatprep.subr.mxu0 0.0
  %4456 = vmatpush2.msra.mxu0 0.0
  %4457 = vmatprep.subr.mxu0 0.0
  %4458 = vmatpush2.msra.mxu0 0.0
  %4459 = vmatprep.subr.mxu0 0.0
  %4460 = vmatpush2.msra.mxu0 0.0
  %4461 = vmatprep.subr.mxu0 0.0
  %4462 = vmatpush2.msra.mxu0 0.0
  %4463 = vmatprep.subr.mxu0 0.0
  %4464 = vmatpush2.msra.mxu0 0.0
  %4465 = vmatprep.subr.mxu0 0.0
  %4466 = vmatpush2.msra.mxu0 0.0
  %4467 = vmatprep.mubr.f32.mxu0 0.0
  %4468 = vmatmul.mubr.f32.gmra.mxu0 %v4330
  %v4469 = vpop.f32.mrf.mxu0
  %v4470 = vadd.f32 0.0, %v4469
  %v4471 = vpop.f32.mrf.mxu0
  %v4472 = vadd.f32 0.0, %v4471
  %4473 = vdwg.mxu0
  %4474 = vmatprep.subr.mxu0 0.0
  %4475 = vmatpush1.msra.mxu0 0.0
  %4476 = vmatprep.subr.mxu0 0.0
  %4477 = vmatpush1.msra.mxu0 0.0
  %4478 = vmatprep.subr.mxu0 0.0
  %4479 = vmatpush1.msra.mxu0 0.0
  %4480 = vmatprep.subr.mxu0 0.0
  %4481 = vmatpush1.msra.mxu0 0.0
  %4482 = vmatprep.subr.mxu0 0.0
  %4483 = vmatpush1.msra.mxu0 0.0
  %4484 = vmatprep.subr.mxu0 0.0
  %4485 = vmatpush1.msra.mxu0 0.0
  %4486 = vmatprep.subr.mxu0 0.0
  %4487 = vmatpush1.msra.mxu0 0.0
  %4488 = vmatprep.subr.mxu0 0.0
  %4489 = vmatpush1.msra.mxu0 0.0
  %4490 = vmatprep.subr.mxu0 0.0
  %4491 = vmatpush1.msra.mxu0 0.0
  %4492 = vmatprep.subr.mxu0 0.0
  %4493 = vmatpush1.msra.mxu0 0.0
  %4494 = vmatprep.subr.mxu0 0.0
  %4495 = vmatpush1.msra.mxu0 0.0
  %4496 = vmatprep.subr.mxu0 0.0
  %4497 = vmatpush1.msra.mxu0 0.0
  %4498 = vmatprep.subr.mxu0 %v4326
  %4499 = vmatpush1.msra.mxu0 %v4325
  %4500 = vmatprep.subr.mxu0 %v4318
  %4501 = vmatpush1.msra.mxu0 %v4317
  %4502 = vmatprep.subr.mxu0 %v4310
  %4503 = vmatpush1.msra.mxu0 %v4309
  %4504 = vmatprep.subr.mxu0 %v4302
  %4505 = vmatpush1.msra.mxu0 %v4301
  %4506 = vmatprep.subr.mxu0 0.0
  %4507 = vmatpush2.msra.mxu0 0.0
  %4508 = vmatprep.subr.mxu0 0.0
  %4509 = vmatpush2.msra.mxu0 0.0
  %4510 = vmatprep.subr.mxu0 0.0
  %4511 = vmatpush2.msra.mxu0 0.0
  %4512 = vmatprep.subr.mxu0 0.0
  %4513 = vmatpush2.msra.mxu0 0.0
  %4514 = vmatprep.subr.mxu0 0.0
  %4515 = vmatpush2.msra.mxu0 0.0
  %4516 = vmatprep.subr.mxu0 0.0
  %4517 = vmatpush2.msra.mxu0 0.0
  %4518 = vmatprep.subr.mxu0 0.0
  %4519 = vmatpush2.msra.mxu0 0.0
  %4520 = vmatprep.subr.mxu0 0.0
  %4521 = vmatpush2.msra.mxu0 0.0
  %4522 = vmatprep.subr.mxu0 0.0
  %4523 = vmatpush2.msra.mxu0 0.0
  %4524 = vmatprep.subr.mxu0 0.0
  %4525 = vmatpush2.msra.mxu0 0.0
  %4526 = vmatprep.subr.mxu0 0.0
  %4527 = vmatpush2.msra.mxu0 0.0
  %4528 = vmatprep.subr.mxu0 0.0
  %4529 = vmatpush2.msra.mxu0 0.0
  %4530 = vmatprep.subr.mxu0 0.0
  %4531 = vmatpush2.msra.mxu0 0.0
  %4532 = vmatprep.subr.mxu0 0.0
  %4533 = vmatpush2.msra.mxu0 0.0
  %4534 = vmatprep.subr.mxu0 0.0
  %4535 = vmatpush2.msra.mxu0 0.0
  %4536 = vmatprep.subr.mxu0 0.0
  %4537 = vmatpush2.msra.mxu0 0.0
  %4538 = vmatprep.mubr.f32.mxu0 0.0
  %4539 = vmatmul.mubr.f32.gmra.mxu0 %v4330
  %v4540 = vpop.f32.mrf.mxu0
  %v4541 = vadd.f32 0.0, %v4540
  %v4542 = vpop.f32.mrf.mxu0
  %v4543 = vadd.f32 0.0, %v4542
  %4544 = vdwg.mxu0
  %4545 = vmatprep.subr.mxu0 0.0
  %4546 = vmatpush1.msra.mxu0 0.0
  %4547 = vmatprep.subr.mxu0 0.0
  %4548 = vmatpush1.msra.mxu0 0.0
  %4549 = vmatprep.subr.mxu0 0.0
  %4550 = vmatpush1.msra.mxu0 0.0
  %4551 = vmatprep.subr.mxu0 0.0
  %4552 = vmatpush1.msra.mxu0 0.0
  %4553 = vmatprep.subr.mxu0 0.0
  %4554 = vmatpush1.msra.mxu0 0.0
  %4555 = vmatprep.subr.mxu0 0.0
  %4556 = vmatpush1.msra.mxu0 0.0
  %4557 = vmatprep.subr.mxu0 0.0
  %4558 = vmatpush1.msra.mxu0 0.0
  %4559 = vmatprep.subr.mxu0 0.0
  %4560 = vmatpush1.msra.mxu0 0.0
  %4561 = vmatprep.subr.mxu0 0.0
  %4562 = vmatpush1.msra.mxu0 0.0
  %4563 = vmatprep.subr.mxu0 0.0
  %4564 = vmatpush1.msra.mxu0 0.0
  %4565 = vmatprep.subr.mxu0 0.0
  %4566 = vmatpush1.msra.mxu0 0.0
  %4567 = vmatprep.subr.mxu0 0.0
  %4568 = vmatpush1.msra.mxu0 0.0
  %4569 = vmatprep.subr.mxu0 %v4328
  %4570 = vmatpush1.msra.mxu0 %v4327
  %4571 = vmatprep.subr.mxu0 %v4320
  %4572 = vmatpush1.msra.mxu0 %v4319
  %4573 = vmatprep.subr.mxu0 %v4312
  %4574 = vmatpush1.msra.mxu0 %v4311
  %4575 = vmatprep.subr.mxu0 %v4304
  %4576 = vmatpush1.msra.mxu0 %v4303
  %4577 = vmatprep.subr.mxu0 0.0
  %4578 = vmatpush2.msra.mxu0 0.0
  %4579 = vmatprep.subr.mxu0 0.0
  %4580 = vmatpush2.msra.mxu0 0.0
  %4581 = vmatprep.subr.mxu0 0.0
  %4582 = vmatpush2.msra.mxu0 0.0
  %4583 = vmatprep.subr.mxu0 0.0
  %4584 = vmatpush2.msra.mxu0 0.0
  %4585 = vmatprep.subr.mxu0 0.0
  %4586 = vmatpush2.msra.mxu0 0.0
  %4587 = vmatprep.subr.mxu0 0.0
  %4588 = vmatpush2.msra.mxu0 0.0
  %4589 = vmatprep.subr.mxu0 0.0
  %4590 = vmatpush2.msra.mxu0 0.0
  %4591 = vmatprep.subr.mxu0 0.0
  %4592 = vmatpush2.msra.mxu0 0.0
  %4593 = vmatprep.subr.mxu0 0.0
  %4594 = vmatpush2.msra.mxu0 0.0
  %4595 = vmatprep.subr.mxu0 0.0
  %4596 = vmatpush2.msra.mxu0 0.0
  %4597 = vmatprep.subr.mxu0 0.0
  %4598 = vmatpush2.msra.mxu0 0.0
  %4599 = vmatprep.subr.mxu0 0.0
  %4600 = vmatpush2.msra.mxu0 0.0
  %4601 = vmatprep.subr.mxu0 0.0
  %4602 = vmatpush2.msra.mxu0 0.0
  %4603 = vmatprep.subr.mxu0 0.0
  %4604 = vmatpush2.msra.mxu0 0.0
  %4605 = vmatprep.subr.mxu0 0.0
  %4606 = vmatpush2.msra.mxu0 0.0
  %4607 = vmatprep.subr.mxu0 0.0
  %4608 = vmatpush2.msra.mxu0 0.0
  %4609 = vmatprep.mubr.f32.mxu0 0.0
  %4610 = vmatmul.mubr.f32.gmra.mxu0 %v4330
  %v4611 = vpop.f32.mrf.mxu0
  %v4612 = vadd.f32 0.0, %v4611
  %v4613 = vpop.f32.mrf.mxu0
  %v4614 = vadd.f32 0.0, %v4613
  %4615 = vdwg.mxu0
  %v4616 = vsub.f32 %v4541, %v4399
  %v4617 = vsub.f32 %v4543, %v4401
  %v4618 = vsub.f32 %v4612, %v4470
  %v4619 = vsub.f32 %v4614, %v4472
  %v4620 = vmul.f32 %v4616, 1.442695
  %v4621 = vpow.pop %v4620
  %v4622 = vmul.f32 %v4617, 1.442695
  %v4623 = vpow.pop %v4622
  %v4624 = vmul.f32 %v4618, 1.442695
  %v4625 = vpow.pop %v4624
  %v4626 = vmul.f32 %v4619, 1.442695
  %v4627 = vpow.pop %v4626
  %v4628 = vadd.f32 %v4621, 1.0
  %v4629 = vadd.f32 %v4623, 1.0
  %v4630 = vadd.f32 %v4625, 1.0
  %v4631 = vadd.f32 %v4627, 1.0
  %v4632 = vrcp.pop %v4628
  %v4633 = vmul.f32 1.0, %v4632
  %v4634 = vrcp.pop %v4629
  %v4635 = vmul.f32 1.0, %v4634
  %v4636 = vrcp.pop %v4630
  %v4637 = vmul.f32 1.0, %v4636
  %v4638 = vrcp.pop %v4631
  %v4639 = vmul.f32 1.0, %v4638
  %v4644 = vcombine.low %v4633, %v4635
  %v4645 = vcombine.low %v4637, %v4639
  %v4647 = vunpack.c.l.s4 1966171168
  %v4648 = vunpack.c.0.s8 %v4647
  %v4649 = vlaneseq
  %v4650 = vshrl.u32 %v4649, 7
  %v4651 = vsub.s32 %v4648, %v4650
  %v4652 = vrot.slane %v4644, %v4651
  %v4654 = vunpack.c.l.s4 1966171168
  %v4655 = vunpack.c.0.s8 %v4654
  %v4656 = vlaneseq
  %v4657 = vshrl.u32 %v4656, 7
  %v4658 = vsub.s32 %v4655, %v4657
  %v4659 = vrot.slane %v4645, %v4658
  %v4660 = vcombine.low %v4652, %v4659
  %v4661 = vcombine.high %v4652, %v4659
  %v4663 = vunpack.c.l.s4 1966171168
  %v4664 = vunpack.c.0.s8 %v4663
  %v4665 = vlaneseq
  %v4666 = vshrl.u32 %v4665, 7
  %v4667 = vsub.s32 %v4664, %v4666
  %v4668 = vrot.slane %v4660, %v4667
  %v4670 = vunpack.c.l.s4 1966171168
  %v4671 = vunpack.c.0.s8 %v4670
  %v4672 = vlaneseq
  %v4673 = vshrl.u32 %v4672, 7
  %v4674 = vsub.s32 %v4671, %v4673
  %v4675 = vrot.slane %v4661, %v4674
  %v4676 = vsub.f32 %v2320, %v3747
  %v4677 = vsub.f32 %v2321, %v3794
  %v4678 = vsub.f32 %v2322, %v3795
  %v4679 = vsub.f32 %v2323, %v3796
  %v4680 = vsub.f32 %v2324, %v3753
  %v4681 = vsub.f32 %v2325, %v3755
  %v4682 = vsub.f32 %v2326, %v3797
  %v4683 = vsub.f32 %v2327, %v3798
  %v4684 = vsub.f32 %v2328, %v3799
  %v4685 = vsub.f32 %v2329, %v3761
  %v4686 = vsub.f32 %v2330, %v3763
  %v4687 = vsub.f32 %v2331, %v3800
  %v4688 = vsub.f32 %v2332, %v3801
  %v4689 = vsub.f32 %v2333, %v3802
  %v4690 = vsub.f32 %v2334, %v3769
  %v4691 = vsub.f32 %v2335, %v3771
  %v4692 = vsub.f32 %v2336, %v3803
  %v4693 = vsub.f32 %v2337, %v3804
  %v4694 = vsub.f32 %v2338, %v3805
  %v4695 = vsub.f32 %v2339, %v3777
  %v4696 = vsub.f32 %v2340, %v3779
  %v4697 = vsub.f32 %v2341, %v3806
  %v4698 = vsub.f32 %v2342, %v3807
  %v4699 = vsub.f32 %v2343, %v3808
  %v4700 = vsub.f32 %v2344, %v3785
  %v4701 = vsub.f32 %v2345, %v3787
  %v4702 = vsub.f32 %v2346, %v3809
  %v4703 = vsub.f32 %v2347, %v3810
  %v4704 = vsub.f32 %v2348, %v3811
  %v4705 = vsub.f32 %v2349, %v3793
  %v4706 = vlaneseq
  %v4707 = vshrl.u32 %v4706, 7
  %v4708 = vsub.s32 0, %v4707
  %v4709 = vrot.slane %v4668, %v4708
  %v4710 = vlaneseq
  %v4711 = vshrl.u32 %v4710, 7
  %v4712 = vsub.s32 1, %v4711
  %v4713 = vrot.slane %v4668, %v4712
  %v4714 = vlaneseq
  %v4715 = vshrl.u32 %v4714, 7
  %v4716 = vsub.s32 2, %v4715
  %v4717 = vrot.slane %v4668, %v4716
  %v4718 = vlaneseq
  %v4719 = vshrl.u32 %v4718, 7
  %v4720 = vsub.s32 3, %v4719
  %v4721 = vrot.slane %v4668, %v4720
  %v4722 = vlaneseq
  %v4723 = vshrl.u32 %v4722, 7
  %v4724 = vsub.s32 0, %v4723
  %v4725 = vrot.slane %v4675, %v4724
  %v4726 = vlaneseq
  %v4727 = vshrl.u32 %v4726, 7
  %v4728 = vsub.s32 1, %v4727
  %v4729 = vrot.slane %v4675, %v4728
  %v4730 = vlaneseq
  %v4731 = vshrl.u32 %v4730, 7
  %v4732 = vsub.s32 2, %v4731
  %v4733 = vrot.slane %v4675, %v4732
  %v4734 = vlaneseq
  %v4735 = vshrl.u32 %v4734, 7
  %v4736 = vsub.s32 3, %v4735
  %v4737 = vrot.slane %v4675, %v4736
  %v4776 = vrot.slane %v4676, 1
  %v4777 = vrot.slane %v4681, 1
  %v4778 = vsel %vm735, %v4776, %v4777
  %v4779 = vrot.slane %v4677, 1
  %v4780 = vrot.slane %v4682, 1
  %v4781 = vsel %vm735, %v4779, %v4780
  %v4782 = vrot.slane %v4678, 1
  %v4783 = vrot.slane %v4683, 1
  %v4784 = vsel %vm735, %v4782, %v4783
  %v4785 = vrot.slane %v4679, 1
  %v4786 = vrot.slane %v4684, 1
  %v4787 = vsel %vm735, %v4785, %v4786
  %v4788 = vrot.slane %v4680, 1
  %v4789 = vrot.slane %v4685, 1
  %v4790 = vsel %vm735, %v4788, %v4789
  %v4791 = vrot.slane %v4686, 1
  %v4792 = vsel %vm735, %v4777, %v4791
  %v4793 = vrot.slane %v4687, 1
  %v4794 = vsel %vm735, %v4780, %v4793
  %v4795 = vrot.slane %v4688, 1
  %v4796 = vsel %vm735, %v4783, %v4795
  %v4797 = vrot.slane %v4689, 1
  %v4798 = vsel %vm735, %v4786, %v4797
  %v4799 = vrot.slane %v4690, 1
  %v4800 = vsel %vm735, %v4789, %v4799
  %v4801 = vrot.slane %v4691, 1
  %v4802 = vrot.slane %v4696, 1
  %v4803 = vsel %vm735, %v4801, %v4802
  %v4804 = vrot.slane %v4692, 1
  %v4805 = vrot.slane %v4697, 1
  %v4806 = vsel %vm735, %v4804, %v4805
  %v4807 = vrot.slane %v4693, 1
  %v4808 = vrot.slane %v4698, 1
  %v4809 = vsel %vm735, %v4807, %v4808
  %v4810 = vrot.slane %v4694, 1
  %v4811 = vrot.slane %v4699, 1
  %v4812 = vsel %vm735, %v4810, %v4811
  %v4813 = vrot.slane %v4695, 1
  %v4814 = vrot.slane %v4700, 1
  %v4815 = vsel %vm735, %v4813, %v4814
  %v4816 = vrot.slane %v4701, 1
  %v4817 = vsel %vm735, %v4802, %v4816
  %v4818 = vrot.slane %v4702, 1
  %v4819 = vsel %vm735, %v4805, %v4818
  %v4820 = vrot.slane %v4703, 1
  %v4821 = vsel %vm735, %v4808, %v4820
  %v4822 = vrot.slane %v4704, 1
  %v4823 = vsel %vm735, %v4811, %v4822
  %v4824 = vrot.slane %v4705, 1
  %v4825 = vsel %vm735, %v4814, %v4824
  %4826 = vrot.lane.b32.xlu0 %v4778, 96
  %v4827 = vpop.permute.xlu0 %4826
  %4828 = vrot.lane.b32.xlu0 %v4781, 96
  %v4829 = vpop.permute.xlu0 %4828
  %4830 = vrot.lane.b32.xlu0 %v4784, 96
  %v4831 = vpop.permute.xlu0 %4830
  %4832 = vrot.lane.b32.xlu0 %v4787, 96
  %v4833 = vpop.permute.xlu0 %4832
  %4834 = vrot.lane.b32.xlu0 %v4790, 96
  %v4835 = vpop.permute.xlu0 %4834
  %4836 = vrot.lane.b32.xlu0 %v4792, 96
  %v4837 = vpop.permute.xlu0 %4836
  %4838 = vrot.lane.b32.xlu0 %v4794, 96
  %v4839 = vpop.permute.xlu0 %4838
  %4840 = vrot.lane.b32.xlu0 %v4796, 96
  %v4841 = vpop.permute.xlu0 %4840
  %4842 = vrot.lane.b32.xlu0 %v4798, 96
  %v4843 = vpop.permute.xlu0 %4842
  %4844 = vrot.lane.b32.xlu0 %v4800, 96
  %v4845 = vpop.permute.xlu0 %4844
  %4846 = vrot.lane.b32.xlu0 %v4803, 96
  %v4847 = vpop.permute.xlu0 %4846
  %4848 = vrot.lane.b32.xlu0 %v4806, 96
  %v4849 = vpop.permute.xlu0 %4848
  %4850 = vrot.lane.b32.xlu0 %v4809, 96
  %v4851 = vpop.permute.xlu0 %4850
  %4852 = vrot.lane.b32.xlu0 %v4812, 96
  %v4853 = vpop.permute.xlu0 %4852
  %4854 = vrot.lane.b32.xlu0 %v4815, 96
  %v4855 = vpop.permute.xlu0 %4854
  %4856 = vrot.lane.b32.xlu0 %v4817, 96
  %v4857 = vpop.permute.xlu0 %4856
  %4858 = vrot.lane.b32.xlu0 %v4819, 96
  %v4859 = vpop.permute.xlu0 %4858
  %4860 = vrot.lane.b32.xlu0 %v4821, 96
  %v4861 = vpop.permute.xlu0 %4860
  %4862 = vrot.lane.b32.xlu0 %v4823, 96
  %v4863 = vpop.permute.xlu0 %4862
  %4864 = vrot.lane.b32.xlu0 %v4825, 96
  %v4865 = vpop.permute.xlu0 %4864
  %v4866 = vsel %vm294, %v4827, %v4829
  %v4867 = vsel %vm294, %v4829, %v4831
  %v4868 = vsel %vm294, %v4831, %v4833
  %v4869 = vsel %vm294, %v4833, %v4835
  %v4870 = vsel %vm294, %v4837, %v4839
  %v4871 = vsel %vm294, %v4839, %v4841
  %v4872 = vsel %vm294, %v4841, %v4843
  %v4873 = vsel %vm294, %v4843, %v4845
  %v4874 = vsel %vm294, %v4847, %v4849
  %v4875 = vsel %vm294, %v4849, %v4851
  %v4876 = vsel %vm294, %v4851, %v4853
  %v4877 = vsel %vm294, %v4853, %v4855
  %v4878 = vsel %vm294, %v4857, %v4859
  %v4879 = vsel %vm294, %v4859, %v4861
  %v4880 = vsel %vm294, %v4861, %v4863
  %v4881 = vsel %vm294, %v4863, %v4865
  %v4898 = vmul.f32 %v4709, %v4866
  %v4899 = vmul.f32 %v4713, %v4867
  %v4900 = vmul.f32 %v4717, %v4868
  %v4901 = vmul.f32 %v4721, %v4869
  %v4902 = vmul.f32 %v4709, %v4870
  %v4903 = vmul.f32 %v4713, %v4871
  %v4904 = vmul.f32 %v4717, %v4872
  %v4905 = vmul.f32 %v4721, %v4873
  %v4906 = vmul.f32 %v4725, %v4874
  %v4907 = vmul.f32 %v4729, %v4875
  %v4908 = vmul.f32 %v4733, %v4876
  %v4909 = vmul.f32 %v4737, %v4877
  %v4910 = vmul.f32 %v4725, %v4878
  %v4911 = vmul.f32 %v4729, %v4879
  %v4912 = vmul.f32 %v4733, %v4880
  %v4913 = vmul.f32 %v4737, %v4881
  %v4914 = vadd.f32 %v3689, %v4898
  %v4915 = vadd.f32 %v3690, %v4899
  %v4916 = vadd.f32 %v3691, %v4900
  %v4917 = vadd.f32 %v3692, %v4901
  %v4918 = vadd.f32 %v3693, %v4902
  %v4919 = vadd.f32 %v3694, %v4903
  %v4920 = vadd.f32 %v3695, %v4904
  %v4921 = vadd.f32 %v3696, %v4905
  %v4922 = vadd.f32 %v3697, %v4906
  %v4923 = vadd.f32 %v3698, %v4907
  %v4924 = vadd.f32 %v3699, %v4908
  %v4925 = vadd.f32 %v3700, %v4909
  %v4926 = vadd.f32 %v3701, %v4910
  %v4927 = vadd.f32 %v3702, %v4911
  %v4928 = vadd.f32 %v3703, %v4912
  %v4929 = vadd.f32 %v3704, %v4913
  %4930 = vst [vmem:[%s6] sm:$0xff] %v4914
  %4931 = vst [vmem:[%s6 + $0x8] sm:$0xff] %v4915
  %4932 = vst [vmem:[%s6 + $0x10] sm:$0xff] %v4916
  %4933 = vst [vmem:[%s6 + $0x18] sm:$0xff] %v4917
  %4934 = vst [vmem:[%s6 + $0x20] sm:$0xff] %v4918
  %4935 = vst [vmem:[%s6 + $0x28] sm:$0xff] %v4919
  %4936 = vst [vmem:[%s6 + $0x30] sm:$0xff] %v4920
  %4937 = vst [vmem:[%s6 + $0x38] sm:$0xff] %v4921
  %4938 = vst [vmem:[%s6 + $0x40] sm:$0xff] %v4922
  %4939 = vst [vmem:[%s6 + $0x48] sm:$0xff] %v4923
  %4940 = vst [vmem:[%s6 + $0x50] sm:$0xff] %v4924
  %4941 = vst [vmem:[%s6 + $0x58] sm:$0xff] %v4925
  %4942 = vst [vmem:[%s6 + $0x60] sm:$0xff] %v4926
  %4943 = vst [vmem:[%s6 + $0x68] sm:$0xff] %v4927
  %4944 = vst [vmem:[%s6 + $0x70] sm:$0xff] %v4928
  %4945 = vst [vmem:[%s6 + $0x78] sm:$0xff] %v4929
  // Predicated region
  $region26: #{skconv_pallas.1} parent=0 // pred_check
    _
  $region27: #{skconv_pallas.1} parent=0 // pred_check_branch
    %4947 = sbr.rel (0) target = $region29
  $region28: #{skconv_pallas.1} parent=0 // pred_region
    _
  $region29: #{skconv_pallas.1} parent=0 // pred_fallthru
    _
  // Predicated region
  $region30: #{skconv_pallas.1} parent=0 // pred_check
    _
  $region31: #{skconv_pallas.1} parent=0 // pred_check_branch
    %4949 = sbr.rel (0) target = $region33
  $region32: #{skconv_pallas.1} parent=0 // pred_region
    _
  $region33: #{skconv_pallas.1} parent=0 // pred_fallthru
    _

</llo_original>
